<compile_context>
chip_gen: v6e
topology: v6e:2x2x1
jax: 0.10.0
libtpu: 0.0.40
codegen_flags: <defaults>
</compile_context>

<pallas_src>
import functools

import jax
import jax.numpy as jnp
from jax.experimental import pallas as pl
from jax.experimental.pallas import tpu as pltpu


def _layer_norm(x, g, b, eps=1e-5):
    mu = jnp.mean(x, axis=-1, keepdims=True)
    var = jnp.mean((x - mu) ** 2, axis=-1, keepdims=True)
    return (x - mu) * jax.lax.rsqrt(var + eps) * g + b


def _gelu_exact(x):
    # exact (erf) GELU, matching torch.nn.GELU default
    return 0.5 * x * (1.0 + jax.lax.erf(x * 0.7071067811865475))


def block_ca_kernel(xc_ref, xp_ref,
                    g1_ref, b1_ref, wq_ref, wk_ref, wv_ref, wp_ref, bp_ref,
                    g2_ref, b2_ref, w1_ref, bm1_ref, w2_ref, bm2_ref,
                    seg_ref, segT_ref,
                    out_ref, *, n_valid, approx_recip):
    f32 = jnp.float32
    TB, Np, C = xp_ref.shape
    cdt = wq_ref.dtype                       # matmul compute dtype (f32 or bf16)

    xc = xc_ref[0].astype(f32)               # original cls tokens (TB, C)
    xp = xp_ref[...].astype(f32)             # patch tokens (TB, Np, C)

    # ---- norm1 (per-token; concat(x_cls, x) is never materialized in HBM) --
    g1 = g1_ref[...]
    b1 = b1_ref[...]
    nc = _layer_norm(xc, g1, b1)                      # (TB, C)
    npn = _layer_norm(xp, g1, b1)                     # (TB, Np, C)

    # ---- q / k / v projections ----------------------------------------------
    # cls rows are stacked UNDER the patch rows (TB*Np is a multiple of 8, so
    # the slices below are sublane-tile aligned) -> kc/vc come out of the same
    # MXU pass as kp/vp instead of two extra M=TB matmuls.
    nc_c = nc.astype(cdt)
    np2 = npn.reshape(TB * Np, C).astype(cdt)
    stacked = jnp.concatenate([np2, nc_c], axis=0)            # (TB*Np + TB, C)

    q = jnp.dot(nc_c, wq_ref[...], preferred_element_type=f32)   # (TB, C); scale pre-folded
    k_all = jnp.dot(stacked, wk_ref[...], preferred_element_type=f32)
    v_all = jnp.dot(stacked, wv_ref[...], preferred_element_type=f32)
    kp = k_all[:TB * Np]                                      # (TB*Np, C)
    kc = k_all[TB * Np:]                                      # (TB, C)
    vp = v_all[:TB * Np].reshape(TB, Np, C)                    # (TB, Np, C)
    vc = v_all[TB * Np:]                                       # (TB, C)

    # ---- class-attention scores: VPU broadcast-mult + per-head segment sum --
    seg = seg_ref[...]                                # (C, H)  one-hot head map
    segT = segT_ref[...]                              # (H, C)
    H = seg.shape[1]

    s_cls = jnp.dot(q * kc, seg, preferred_element_type=f32)             # (TB, H)
    qk = (q.reshape(TB, 1, C) * kp.reshape(TB, Np, C)).reshape(TB * Np, C)
    s_pat = jnp.dot(qk, seg, preferred_element_type=f32).reshape(TB, Np, H)

    if n_valid < Np:  # mask padded key rows (scores stay f32 -> -1e30 is safe)
        row = jax.lax.broadcasted_iota(jnp.int32, (TB, Np, H), 1)
        s_pat = jnp.where(row < n_valid, s_pat, jnp.float32(-1e30))

    # ---- softmax over {cls} U {patches}, shared across heads ----------------
    m = jnp.maximum(s_cls, jnp.max(s_pat, axis=1))                        # (TB, H)
    e_cls = jnp.exp(s_cls - m)                                            # (TB, H)
    e_pat = jnp.exp(s_pat - m.reshape(TB, 1, H))                          # (TB, Np, H)
    denom = e_cls + jnp.sum(e_pat, axis=1)                                # (TB, H)
    inv = pl.reciprocal(denom, approx=approx_recip)                       # (TB, H)
    a_cls = e_cls * inv
    a_pat = e_pat * inv.reshape(TB, 1, H)

    # ---- attn @ v: expand per-head weights back to channels, reduce keys ----
    a_cls_full = jnp.dot(a_cls, segT, preferred_element_type=f32)         # (TB, C)
    a_pat_full = jnp.dot(a_pat.reshape(TB * Np, H), segT,
                         preferred_element_type=f32).reshape(TB, Np, C)
    attn = a_cls_full * vc + jnp.sum(a_pat_full * vp, axis=1)             # (TB, C)

    # ---- output projection + residual on the ORIGINAL (pre-norm) cls token --
    o = jnp.dot(attn.astype(cdt), wp_ref[...],
                preferred_element_type=f32) + bp_ref[...]
    x_cls = xc + o                                                        # (TB, C)

    # ---- norm2 + MLP(GELU) + residual ----------------------------------------
    xn = _layer_norm(x_cls, g2_ref[...], b2_ref[...])
    h1 = jnp.dot(xn.astype(cdt), w1_ref[...],
                 preferred_element_type=f32) + bm1_ref[...]
    h1 = _gelu_exact(h1)
    mlp = jnp.dot(h1.astype(cdt), w2_ref[...],
                  preferred_element_type=f32) + bm2_ref[...]

    out_ref[0] = (x_cls + mlp).astype(out_ref.dtype)                      # (TB, C)


def layerscale_block_ca(x, x_cls, params, num_heads, *, tb=None,
                        compute_dtype=jnp.bfloat16):
    """x: (B, N, C) patch tokens, x_cls: (B, 1, C) class token -> (B, 1, C)."""
    B, N, C = x.shape
    assert x_cls.shape == (B, 1, C)
    assert C % num_heads == 0
    hd = C // num_heads
    scale = hd ** (-0.5)
    Hm = params['w1'].shape[1]

    cdt = jnp.dtype(compute_dtype)
    itemsize = cdt.itemsize

    # pad patch count to a sublane-aligned multiple of 8; masked in-kernel
    Np = ((N + 7) // 8) * 8
    if Np != N:
        x = jnp.pad(x, ((0, 0), (0, Np - N), (0, 0)))
    x = x.astype(cdt)       # big tensor carries compute dtype (halves HBM in bf16)

    def wcast(a):
        return a.astype(cdt)

    # per-channel -> per-head one-hot segment matrix (and its transpose)
    seg = (jnp.arange(C)[:, None] // hd
           == jnp.arange(num_heads)[None, :]).astype(jnp.float32)        # (C, H)
    segT = jnp.transpose(seg)                                            # (H, C)

    weights = [params['g1'], params['b1'],
               wcast(params['wq'] * scale),       # attention scale folded into wq
               wcast(params['wk']), wcast(params['wv']),
               wcast(params['wp']), params['bp'],
               params['g2'], params['b2'],
               wcast(params['w1']), params['bm1'],
               wcast(params['w2']), params['bm2'],
               seg, segT]
    w_bytes = sum(int(w.size) * w.dtype.itemsize for w in weights)

    def vmem_estimate(tb_):
        # single-buffered weights + double-buffered activation tiles + live f32 temps
        tiles = 2 * tb_ * Np * C * itemsize + 4 * tb_ * C * 4
        temps = 10 * tb_ * Np * C * 4 + 8 * tb_ * max(C, Hm) * 4
        return w_bytes + tiles + temps

    if tb is None:
        # bigger batch tile -> better MXU row utilization for the cls-path
        # matmuls; shrink until the estimate fits a v7x-safe budget, then make
        # sure there are >= 2 grid steps so both v7x TensorCores get work.
        tb = min(B, 32)
        while tb > 1 and vmem_estimate(tb) > (44 << 20):
            tb = (tb + 1) // 2
        if B >= 2 and -(-B // tb) < 2:
            tb = -(-B // 2)
    tb = max(1, min(int(tb), B))

    # pad batch so tb always divides it (handles prime B); padded rows are zeros
    Bp = -(-B // tb) * tb
    if Bp != B:
        x = jnp.pad(x, ((0, Bp - B), (0, 0), (0, 0)))
        x_cls = jnp.pad(x_cls, ((0, Bp - B), (0, 0), (0, 0)))
    grid_n = Bp // tb

    # cls token / output laid out as (grid, tb, C) -> sublane-dense, (8,128)-safe
    xc3 = x_cls.reshape(grid_n, tb, C)

    vmem_limit = int(min(max(vmem_estimate(tb) + w_bytes + (8 << 20), 32 << 20),
                         64 << 20))

    kernel = functools.partial(block_ca_kernel, n_valid=N,
                               approx_recip=(cdt == jnp.bfloat16))

    def build(single_buffer_weights):
        def weight_spec(a):
            nd = a.ndim
            idx = lambda b, _nd=nd: (0,) * _nd
            if single_buffer_weights:
                # grid-invariant weights: one VMEM copy instead of two
                return pl.BlockSpec(a.shape, idx, pipeline_mode=pl.Buffered(1))
            return pl.BlockSpec(a.shape, idx)

        in_specs = [pl.BlockSpec((1, tb, C), lambda b: (b, 0, 0)),
                    pl.BlockSpec((tb, Np, C), lambda b: (b, 0, 0))] + \
                   [weight_spec(a) for a in weights]

        return pl.pallas_call(
            kernel,
            out_shape=jax.ShapeDtypeStruct((grid_n, tb, C), x_cls.dtype),
            grid_spec=pltpu.PrefetchScalarGridSpec(
                num_scalar_prefetch=0,
                grid=(grid_n,),
                in_specs=in_specs,
                out_specs=pl.BlockSpec((1, tb, C), lambda b: (b, 0, 0)),
            ),
            compiler_params=pltpu.CompilerParams(
                dimension_semantics=("parallel",),
                vmem_limit_bytes=vmem_limit),
        )

    try:
        out = build(True)(xc3, x, *weights)
    except Exception:
        # pl.Buffered(1) not supported by this JAX build -> default buffering
        out = build(False)(xc3, x, *weights)

    return out.reshape(Bp, C)[:B].reshape(B, 1, C)


def ref_forward(x, x_cls, params, num_heads):
    """Pure-JAX reference mirroring the PyTorch forward (eval mode, no mask)."""
    B, N, C = x.shape
    N1 = N + 1
    hd = C // num_heads
    scale = hd ** (-0.5)
    u = jnp.concatenate([x_cls, x], axis=1)
    un = _layer_norm(u, params['g1'], params['b1'])
    q = un[:, 0:1] @ params['wq']
    k = un @ params['wk']
    v = un @ params['wv']
    qh = q.reshape(B, 1, num_heads, hd).transpose(0, 2, 1, 3) * scale
    kh = k.reshape(B, N1, num_heads, hd).transpose(0, 2, 1, 3)
    vh = v.reshape(B, N1, num_heads, hd).transpose(0, 2, 1, 3)
    attn = jax.nn.softmax(qh @ kh.transpose(0, 1, 3, 2), axis=-1)
    o = (attn @ vh).transpose(0, 2, 1, 3).reshape(B, 1, C)
    o = o @ params['wp'] + params['bp']
    xc = x_cls + o
    xn = _layer_norm(xc, params['g2'], params['b2'])
    h1 = _gelu_exact(xn @ params['w1'] + params['bm1'])
    return xc + (h1 @ params['w2'] + params['bm2'])


if __name__ == "__main__":
    # drop / attn_drop / drop_path = 0 (module defaults) -> identity at eval;
    # qkv_bias=False -> no q/k/v bias.
    # TODO(synk): the optional `mask=`/`attention=True` code paths of the PyTorch
    # forward are not implemented (default inference path only).

    def make_params(key, C, H4):
        ks = jax.random.split(key, 13)

        def w(k, shape, s=0.02):
            return s * jax.random.normal(k, shape, jnp.float32)

        return dict(
            g1=1.0 + 0.1 * jax.random.normal(ks[0], (1, C), jnp.float32),
            b1=0.1 * jax.random.normal(ks[1], (1, C), jnp.float32),
            wq=w(ks[2], (C, C)), wk=w(ks[3], (C, C)), wv=w(ks[4], (C, C)),
            wp=w(ks[5], (C, C)), bp=w(ks[6], (1, C)),
            g2=1.0 + 0.1 * jax.random.normal(ks[7], (1, C), jnp.float32),
            b2=0.1 * jax.random.normal(ks[8], (1, C), jnp.float32),
            w1=w(ks[9], (C, H4)), bm1=w(ks[10], (1, H4)),
            w2=w(ks[11], (H4, C)), bm2=w(ks[12], (1, C)),
        )

    key = jax.random.PRNGKey(0)
    k_p, k_x1, k_c1, k_x2, k_c2, k_x3, k_c3 = jax.random.split(key, 7)

    B, N, C, H = 4, 16, 64, 4
    params = make_params(k_p, C, 4 * C)

    # config 1: aligned patch count, f32 matmul path, tight tolerance
    x = jax.random.normal(k_x1, (B, N, C), jnp.float32)
    x_cls = jax.random.normal(k_c1, (B, 1, C), jnp.float32)
    ref = ref_forward(x, x_cls, params, H)
    out = jax.block_until_ready(
        layerscale_block_ca(x, x_cls, params, H, tb=2,
                            compute_dtype=jnp.float32))
    assert out.shape == (B, 1, C)
    err1 = float(jnp.max(jnp.abs(out - ref)))
    assert jnp.allclose(out, ref, atol=1e-3, rtol=1e-3), err1

    # config 2: unaligned patch count -> exercises in-kernel padded-key masking
    N2 = 13
    x2 = jax.random.normal(k_x2, (B, N2, C), jnp.float32)
    x_cls2 = jax.random.normal(k_c2, (B, 1, C), jnp.float32)
    out2 = jax.block_until_ready(
        layerscale_block_ca(x2, x_cls2, params, H, tb=2,
                            compute_dtype=jnp.float32))
    ref2 = ref_forward(x2, x_cls2, params, H)
    err2 = float(jnp.max(jnp.abs(out2 - ref2)))
    assert jnp.allclose(out2, ref2, atol=1e-3, rtol=1e-3), err2

    # config 3: batch that tb does not divide -> exercises batch padding path
    B3 = 5
    x3 = jax.random.normal(k_x3, (B3, N2, C), jnp.float32)
    x_cls3 = jax.random.normal(k_c3, (B3, 1, C), jnp.float32)
    out3 = jax.block_until_ready(
        layerscale_block_ca(x3, x_cls3, params, H, tb=2,
                            compute_dtype=jnp.float32))
    ref3 = ref_forward(x3, x_cls3, params, H)
    err3 = float(jnp.max(jnp.abs(out3 - ref3)))
    assert jnp.allclose(out3, ref3, atol=1e-3, rtol=1e-3), err3

    # config 4: default path (bf16 matmuls, auto tb heuristic), loose tolerance
    out4 = jax.block_until_ready(layerscale_block_ca(x, x_cls, params, H))
    err4 = float(jnp.max(jnp.abs(out4 - ref)))
    assert err4 < 1e-1, err4

    print("KERNEL_OK")
</pallas_src>

<mosaic_0001>
module attributes {stable_mosaic.version = 11 : i64} {
  func.func @block_ca_kernel(%arg0: i32, %arg1: memref<1x2x64xf32, #tpu.memory_space<vmem>>, %arg2: memref<2x16x64xf32, #tpu.memory_space<vmem>>, %arg3: memref<1x64xf32, #tpu.memory_space<vmem>>, %arg4: memref<1x64xf32, #tpu.memory_space<vmem>>, %arg5: memref<64x64xf32, #tpu.memory_space<vmem>>, %arg6: memref<64x64xf32, #tpu.memory_space<vmem>>, %arg7: memref<64x64xf32, #tpu.memory_space<vmem>>, %arg8: memref<64x64xf32, #tpu.memory_space<vmem>>, %arg9: memref<1x64xf32, #tpu.memory_space<vmem>>, %arg10: memref<1x64xf32, #tpu.memory_space<vmem>>, %arg11: memref<1x64xf32, #tpu.memory_space<vmem>>, %arg12: memref<64x256xf32, #tpu.memory_space<vmem>>, %arg13: memref<1x256xf32, #tpu.memory_space<vmem>>, %arg14: memref<256x64xf32, #tpu.memory_space<vmem>>, %arg15: memref<1x64xf32, #tpu.memory_space<vmem>>, %arg16: memref<64x4xf32, #tpu.memory_space<vmem>>, %arg17: memref<4x64xf32, #tpu.memory_space<vmem>>, %arg18: memref<1x2x64xf32, #tpu.memory_space<vmem>>) attributes {dimension_semantics = [#tpu.dimension_semantics<parallel>], iteration_bounds = array<i64: 2>, scalar_prefetch = 0 : i64, scratch_operands = 0 : i64, tpu.core_type = #tpu.core_type<tc>, window_params = [{transform_indices = @transform_0, window_bounds = array<i64: 1, 2, 64>}, {transform_indices = @transform_1, window_bounds = array<i64: 2, 16, 64>}, {pipeline_mode = #tpu.pipeline_mode<synchronous>, transform_indices = @transform_2, window_bounds = array<i64: 1, 64>}, {pipeline_mode = #tpu.pipeline_mode<synchronous>, transform_indices = @transform_3, window_bounds = array<i64: 1, 64>}, {pipeline_mode = #tpu.pipeline_mode<synchronous>, transform_indices = @transform_4, window_bounds = array<i64: 64, 64>}, {pipeline_mode = #tpu.pipeline_mode<synchronous>, transform_indices = @transform_5, window_bounds = array<i64: 64, 64>}, {pipeline_mode = #tpu.pipeline_mode<synchronous>, transform_indices = @transform_6, window_bounds = array<i64: 64, 64>}, {pipeline_mode = #tpu.pipeline_mode<synchronous>, transform_indices = @transform_7, window_bounds = array<i64: 64, 64>}, {pipeline_mode = #tpu.pipeline_mode<synchronous>, transform_indices = @transform_8, window_bounds = array<i64: 1, 64>}, {pipeline_mode = #tpu.pipeline_mode<synchronous>, transform_indices = @transform_9, window_bounds = array<i64: 1, 64>}, {pipeline_mode = #tpu.pipeline_mode<synchronous>, transform_indices = @transform_10, window_bounds = array<i64: 1, 64>}, {pipeline_mode = #tpu.pipeline_mode<synchronous>, transform_indices = @transform_11, window_bounds = array<i64: 64, 256>}, {pipeline_mode = #tpu.pipeline_mode<synchronous>, transform_indices = @transform_12, window_bounds = array<i64: 1, 256>}, {pipeline_mode = #tpu.pipeline_mode<synchronous>, transform_indices = @transform_13, window_bounds = array<i64: 256, 64>}, {pipeline_mode = #tpu.pipeline_mode<synchronous>, transform_indices = @transform_14, window_bounds = array<i64: 1, 64>}, {pipeline_mode = #tpu.pipeline_mode<synchronous>, transform_indices = @transform_15, window_bounds = array<i64: 64, 4>}, {pipeline_mode = #tpu.pipeline_mode<synchronous>, transform_indices = @transform_16, window_bounds = array<i64: 4, 64>}, {transform_indices = @transform_17, window_bounds = array<i64: 1, 2, 64>}]} {
    %c0 = arith.constant 0 : index
    %c0_0 = arith.constant 0 : index
    %c0_1 = arith.constant 0 : index
    %0 = vector.load %arg1[%c0, %c0_0, %c0_1] : memref<1x2x64xf32, #tpu.memory_space<vmem>>, vector<1x2x64xf32>
    %1 = vector.shape_cast %0 : vector<1x2x64xf32> to vector<2x64xf32>
    %c0_2 = arith.constant 0 : index
    %c0_3 = arith.constant 0 : index
    %c0_4 = arith.constant 0 : index
    %2 = vector.load %arg2[%c0_2, %c0_3, %c0_4] : memref<2x16x64xf32, #tpu.memory_space<vmem>>, vector<2x16x64xf32>
    %c0_5 = arith.constant 0 : index
    %c0_6 = arith.constant 0 : index
    %3 = vector.load %arg3[%c0_5, %c0_6] : memref<1x64xf32, #tpu.memory_space<vmem>>, vector<1x64xf32>
    %c0_7 = arith.constant 0 : index
    %c0_8 = arith.constant 0 : index
    %4 = vector.load %arg4[%c0_7, %c0_8] : memref<1x64xf32, #tpu.memory_space<vmem>>, vector<1x64xf32>
    %cst = arith.constant dense<0.000000e+00> : vector<2xf32>
    %5 = vector.multi_reduction <add>, %1, %cst [1] : vector<2x64xf32> to vector<2xf32>
    %6 = vector.shape_cast %5 : vector<2xf32> to vector<2x1xf32>
    %cst_9 = arith.constant 6.400000e+01 : f32
    %7 = vector.broadcast %cst_9 : f32 to vector<2x1xf32>
    %8 = arith.divf %6, %7 : vector<2x1xf32>
    %9 = vector.broadcast %8 : vector<2x1xf32> to vector<2x64xf32>
    %10 = arith.subf %1, %9 : vector<2x64xf32>
    %11 = arith.mulf %10, %10 : vector<2x64xf32>
    %cst_10 = arith.constant dense<0.000000e+00> : vector<2xf32>
    %12 = vector.multi_reduction <add>, %11, %cst_10 [1] : vector<2x64xf32> to vector<2xf32>
    %13 = vector.shape_cast %12 : vector<2xf32> to vector<2x1xf32>
    %cst_11 = arith.constant 6.400000e+01 : f32
    %14 = vector.broadcast %cst_11 : f32 to vector<2x1xf32>
    %15 = arith.divf %13, %14 : vector<2x1xf32>
    %16 = vector.broadcast %8 : vector<2x1xf32> to vector<2x64xf32>
    %17 = arith.subf %1, %16 : vector<2x64xf32>
    %cst_12 = arith.constant 9.99999974E-6 : f32
    %18 = vector.broadcast %cst_12 : f32 to vector<2x1xf32>
    %19 = arith.addf %15, %18 : vector<2x1xf32>
    %20 = math.rsqrt %19 : vector<2x1xf32>
    %21 = vector.broadcast %20 : vector<2x1xf32> to vector<2x64xf32>
    %22 = arith.mulf %17, %21 : vector<2x64xf32>
    %23 = vector.broadcast %3 : vector<1x64xf32> to vector<2x64xf32>
    %24 = arith.mulf %22, %23 : vector<2x64xf32>
    %25 = vector.broadcast %4 : vector<1x64xf32> to vector<2x64xf32>
    %26 = arith.addf %24, %25 : vector<2x64xf32>
    %cst_13 = arith.constant dense<0.000000e+00> : vector<2x16xf32>
    %27 = vector.multi_reduction <add>, %2, %cst_13 [2] : vector<2x16x64xf32> to vector<2x16xf32>
    %28 = vector.shape_cast %27 : vector<2x16xf32> to vector<2x16x1xf32>
    %cst_14 = arith.constant 6.400000e+01 : f32
    %29 = vector.broadcast %cst_14 : f32 to vector<2x16x1xf32>
    %30 = arith.divf %28, %29 : vector<2x16x1xf32>
    %31 = vector.broadcast %30 : vector<2x16x1xf32> to vector<2x16x64xf32>
    %32 = arith.subf %2, %31 : vector<2x16x64xf32>
    %33 = arith.mulf %32, %32 : vector<2x16x64xf32>
    %cst_15 = arith.constant dense<0.000000e+00> : vector<2x16xf32>
    %34 = vector.multi_reduction <add>, %33, %cst_15 [2] : vector<2x16x64xf32> to vector<2x16xf32>
    %35 = vector.shape_cast %34 : vector<2x16xf32> to vector<2x16x1xf32>
    %cst_16 = arith.constant 6.400000e+01 : f32
    %36 = vector.broadcast %cst_16 : f32 to vector<2x16x1xf32>
    %37 = arith.divf %35, %36 : vector<2x16x1xf32>
    %38 = vector.broadcast %30 : vector<2x16x1xf32> to vector<2x16x64xf32>
    %39 = arith.subf %2, %38 : vector<2x16x64xf32>
    %cst_17 = arith.constant 9.99999974E-6 : f32
    %40 = vector.broadcast %cst_17 : f32 to vector<2x16x1xf32>
    %41 = arith.addf %37, %40 : vector<2x16x1xf32>
    %42 = math.rsqrt %41 : vector<2x16x1xf32>
    %43 = vector.broadcast %42 : vector<2x16x1xf32> to vector<2x16x64xf32>
    %44 = arith.mulf %39, %43 : vector<2x16x64xf32>
    %45 = vector.shape_cast %3 : vector<1x64xf32> to vector<1x1x64xf32>
    %46 = vector.broadcast %45 : vector<1x1x64xf32> to vector<2x16x64xf32>
    %47 = arith.mulf %44, %46 : vector<2x16x64xf32>
    %48 = vector.shape_cast %4 : vector<1x64xf32> to vector<1x1x64xf32>
    %49 = vector.broadcast %48 : vector<1x1x64xf32> to vector<2x16x64xf32>
    %50 = arith.addf %47, %49 : vector<2x16x64xf32>
    %51 = vector.shape_cast %50 : vector<2x16x64xf32> to vector<32x64xf32>
    %52 = tpu.concatenate %51, %26 in 0 : vector<32x64xf32>, vector<2x64xf32> -> vector<34x64xf32>
    %c0_18 = arith.constant 0 : index
    %c0_19 = arith.constant 0 : index
    %53 = vector.load %arg5[%c0_18, %c0_19] : memref<64x64xf32, #tpu.memory_space<vmem>>, vector<64x64xf32>
    %cst_20 = arith.constant dense<0.000000e+00> : vector<2x64xf32>
    %54 = tpu.matmul %26, %53, %cst_20 {dimension_numbers = #tpu.dot_dimension_numbers<[1], [0], [0], [1], [0, 0, 1, 1], [], []>} : vector<2x64xf32>, vector<64x64xf32>, vector<2x64xf32> -> vector<2x64xf32>
    %c0_21 = arith.constant 0 : index
    %c0_22 = arith.constant 0 : index
    %55 = vector.load %arg6[%c0_21, %c0_22] : memref<64x64xf32, #tpu.memory_space<vmem>>, vector<64x64xf32>
    %cst_23 = arith.constant dense<0.000000e+00> : vector<34x64xf32>
    %56 = tpu.matmul %52, %55, %cst_23 {dimension_numbers = #tpu.dot_dimension_numbers<[1], [0], [0], [1], [0, 0, 1, 1], [], []>} : vector<34x64xf32>, vector<64x64xf32>, vector<34x64xf32> -> vector<34x64xf32>
    %c0_24 = arith.constant 0 : index
    %c0_25 = arith.constant 0 : index
    %57 = vector.load %arg7[%c0_24, %c0_25] : memref<64x64xf32, #tpu.memory_space<vmem>>, vector<64x64xf32>
    %cst_26 = arith.constant dense<0.000000e+00> : vector<34x64xf32>
    %58 = tpu.matmul %52, %57, %cst_26 {dimension_numbers = #tpu.dot_dimension_numbers<[1], [0], [0], [1], [0, 0, 1, 1], [], []>} : vector<34x64xf32>, vector<64x64xf32>, vector<34x64xf32> -> vector<34x64xf32>
    %59 = vector.extract_strided_slice %56 {offsets = [0, 0], sizes = [32, 64], strides = [1, 1]} : vector<34x64xf32> to vector<32x64xf32>
    %60 = vector.extract_strided_slice %56 {offsets = [32, 0], sizes = [2, 64], strides = [1, 1]} : vector<34x64xf32> to vector<2x64xf32>
    %61 = vector.extract_strided_slice %58 {offsets = [0, 0], sizes = [32, 64], strides = [1, 1]} : vector<34x64xf32> to vector<32x64xf32>
    %62 = vector.shape_cast %61 : vector<32x64xf32> to vector<2x16x64xf32>
    %63 = vector.extract_strided_slice %58 {offsets = [32, 0], sizes = [2, 64], strides = [1, 1]} : vector<34x64xf32> to vector<2x64xf32>
    %c0_27 = arith.constant 0 : index
    %c0_28 = arith.constant 0 : index
    %64 = vector.load %arg16[%c0_27, %c0_28] : memref<64x4xf32, #tpu.memory_space<vmem>>, vector<64x4xf32>
    %c0_29 = arith.constant 0 : index
    %c0_30 = arith.constant 0 : index
    %65 = vector.load %arg17[%c0_29, %c0_30] : memref<4x64xf32, #tpu.memory_space<vmem>>, vector<4x64xf32>
    %66 = arith.mulf %54, %60 : vector<2x64xf32>
    %cst_31 = arith.constant dense<0.000000e+00> : vector<2x4xf32>
    %67 = tpu.matmul %66, %64, %cst_31 {dimension_numbers = #tpu.dot_dimension_numbers<[1], [0], [0], [1], [0, 0, 1, 1], [], []>} : vector<2x64xf32>, vector<64x4xf32>, vector<2x4xf32> -> vector<2x4xf32>
    %68 = vector.shape_cast %54 : vector<2x64xf32> to vector<2x1x64xf32>
    %69 = vector.shape_cast %59 : vector<32x64xf32> to vector<2x16x64xf32>
    %70 = vector.broadcast %68 : vector<2x1x64xf32> to vector<2x16x64xf32>
    %71 = arith.mulf %70, %69 : vector<2x16x64xf32>
    %72 = vector.shape_cast %71 : vector<2x16x64xf32> to vector<32x64xf32>
    %cst_32 = arith.constant dense<0.000000e+00> : vector<32x4xf32>
    %73 = tpu.matmul %72, %64, %cst_32 {dimension_numbers = #tpu.dot_dimension_numbers<[1], [0], [0], [1], [0, 0, 1, 1], [], []>} : vector<32x64xf32>, vector<64x4xf32>, vector<32x4xf32> -> vector<32x4xf32>
    %74 = vector.shape_cast %73 : vector<32x4xf32> to vector<2x16x4xf32>
    %cst_33 = arith.constant dense<0xFF800000> : vector<2x4xf32>
    %75 = vector.multi_reduction <maximumf>, %74, %cst_33 [1] : vector<2x16x4xf32> to vector<2x4xf32>
    %76 = arith.maximumf %67, %75 : vector<2x4xf32>
    %77 = arith.subf %67, %76 : vector<2x4xf32>
    %78 = math.exp %77 : vector<2x4xf32>
    %79 = vector.shape_cast %76 : vector<2x4xf32> to vector<2x1x4xf32>
    %80 = vector.broadcast %79 : vector<2x1x4xf32> to vector<2x16x4xf32>
    %81 = arith.subf %74, %80 : vector<2x16x4xf32>
    %82 = math.exp %81 : vector<2x16x4xf32>
    %cst_34 = arith.constant dense<0.000000e+00> : vector<2x4xf32>
    %83 = vector.multi_reduction <add>, %82, %cst_34 [1] : vector<2x16x4xf32> to vector<2x4xf32>
    %84 = arith.addf %78, %83 : vector<2x4xf32>
    %85 = tpu.reciprocal %84 : vector<2x4xf32> -> vector<2x4xf32>
    %86 = arith.mulf %78, %85 : vector<2x4xf32>
    %87 = vector.shape_cast %85 : vector<2x4xf32> to vector<2x1x4xf32>
    %88 = vector.broadcast %87 : vector<2x1x4xf32> to vector<2x16x4xf32>
    %89 = arith.mulf %82, %88 : vector<2x16x4xf32>
    %cst_35 = arith.constant dense<0.000000e+00> : vector<2x64xf32>
    %90 = tpu.matmul %86, %65, %cst_35 {dimension_numbers = #tpu.dot_dimension_numbers<[1], [0], [0], [1], [0, 0, 1, 1], [], []>} : vector<2x4xf32>, vector<4x64xf32>, vector<2x64xf32> -> vector<2x64xf32>
    %91 = vector.shape_cast %89 : vector<2x16x4xf32> to vector<32x4xf32>
    %cst_36 = arith.constant dense<0.000000e+00> : vector<32x64xf32>
    %92 = tpu.matmul %91, %65, %cst_36 {dimension_numbers = #tpu.dot_dimension_numbers<[1], [0], [0], [1], [0, 0, 1, 1], [], []>} : vector<32x4xf32>, vector<4x64xf32>, vector<32x64xf32> -> vector<32x64xf32>
    %93 = vector.shape_cast %92 : vector<32x64xf32> to vector<2x16x64xf32>
    %94 = arith.mulf %90, %63 : vector<2x64xf32>
    %95 = arith.mulf %93, %62 : vector<2x16x64xf32>
    %cst_37 = arith.constant dense<0.000000e+00> : vector<2x64xf32>
    %96 = vector.multi_reduction <add>, %95, %cst_37 [1] : vector<2x16x64xf32> to vector<2x64xf32>
    %97 = arith.addf %94, %96 : vector<2x64xf32>
    %c0_38 = arith.constant 0 : index
    %c0_39 = arith.constant 0 : index
    %98 = vector.load %arg8[%c0_38, %c0_39] : memref<64x64xf32, #tpu.memory_space<vmem>>, vector<64x64xf32>
    %cst_40 = arith.constant dense<0.000000e+00> : vector<2x64xf32>
    %99 = tpu.matmul %97, %98, %cst_40 {dimension_numbers = #tpu.dot_dimension_numbers<[1], [0], [0], [1], [0, 0, 1, 1], [], []>} : vector<2x64xf32>, vector<64x64xf32>, vector<2x64xf32> -> vector<2x64xf32>
    %c0_41 = arith.constant 0 : index
    %c0_42 = arith.constant 0 : index
    %100 = vector.load %arg9[%c0_41, %c0_42] : memref<1x64xf32, #tpu.memory_space<vmem>>, vector<1x64xf32>
    %101 = vector.broadcast %100 : vector<1x64xf32> to vector<2x64xf32>
    %102 = arith.addf %99, %101 : vector<2x64xf32>
    %103 = arith.addf %1, %102 : vector<2x64xf32>
    %c0_43 = arith.constant 0 : index
    %c0_44 = arith.constant 0 : index
    %104 = vector.load %arg10[%c0_43, %c0_44] : memref<1x64xf32, #tpu.memory_space<vmem>>, vector<1x64xf32>
    %c0_45 = arith.constant 0 : index
    %c0_46 = arith.constant 0 : index
    %105 = vector.load %arg11[%c0_45, %c0_46] : memref<1x64xf32, #tpu.memory_space<vmem>>, vector<1x64xf32>
    %cst_47 = arith.constant dense<0.000000e+00> : vector<2xf32>
    %106 = vector.multi_reduction <add>, %103, %cst_47 [1] : vector<2x64xf32> to vector<2xf32>
    %107 = vector.shape_cast %106 : vector<2xf32> to vector<2x1xf32>
    %cst_48 = arith.constant 6.400000e+01 : f32
    %108 = vector.broadcast %cst_48 : f32 to vector<2x1xf32>
    %109 = arith.divf %107, %108 : vector<2x1xf32>
    %110 = vector.broadcast %109 : vector<2x1xf32> to vector<2x64xf32>
    %111 = arith.subf %103, %110 : vector<2x64xf32>
    %112 = arith.mulf %111, %111 : vector<2x64xf32>
    %cst_49 = arith.constant dense<0.000000e+00> : vector<2xf32>
    %113 = vector.multi_reduction <add>, %112, %cst_49 [1] : vector<2x64xf32> to vector<2xf32>
    %114 = vector.shape_cast %113 : vector<2xf32> to vector<2x1xf32>
    %cst_50 = arith.constant 6.400000e+01 : f32
    %115 = vector.broadcast %cst_50 : f32 to vector<2x1xf32>
    %116 = arith.divf %114, %115 : vector<2x1xf32>
    %117 = vector.broadcast %109 : vector<2x1xf32> to vector<2x64xf32>
    %118 = arith.subf %103, %117 : vector<2x64xf32>
    %cst_51 = arith.constant 9.99999974E-6 : f32
    %119 = vector.broadcast %cst_51 : f32 to vector<2x1xf32>
    %120 = arith.addf %116, %119 : vector<2x1xf32>
    %121 = math.rsqrt %120 : vector<2x1xf32>
    %122 = vector.broadcast %121 : vector<2x1xf32> to vector<2x64xf32>
    %123 = arith.mulf %118, %122 : vector<2x64xf32>
    %124 = vector.broadcast %104 : vector<1x64xf32> to vector<2x64xf32>
    %125 = arith.mulf %123, %124 : vector<2x64xf32>
    %126 = vector.broadcast %105 : vector<1x64xf32> to vector<2x64xf32>
    %127 = arith.addf %125, %126 : vector<2x64xf32>
    %c0_52 = arith.constant 0 : index
    %c0_53 = arith.constant 0 : index
    %128 = vector.load %arg12[%c0_52, %c0_53] : memref<64x256xf32, #tpu.memory_space<vmem>>, vector<64x256xf32>
    %cst_54 = arith.constant dense<0.000000e+00> : vector<2x256xf32>
    %129 = tpu.matmul %127, %128, %cst_54 {dimension_numbers = #tpu.dot_dimension_numbers<[1], [0], [0], [1], [0, 0, 1, 1], [], []>} : vector<2x64xf32>, vector<64x256xf32>, vector<2x256xf32> -> vector<2x256xf32>
    %c0_55 = arith.constant 0 : index
    %c0_56 = arith.constant 0 : index
    %130 = vector.load %arg13[%c0_55, %c0_56] : memref<1x256xf32, #tpu.memory_space<vmem>>, vector<1x256xf32>
    %131 = vector.broadcast %130 : vector<1x256xf32> to vector<2x256xf32>
    %132 = arith.addf %129, %131 : vector<2x256xf32>
    %cst_57 = arith.constant 5.000000e-01 : f32
    %133 = vector.broadcast %cst_57 : f32 to vector<2x256xf32>
    %134 = arith.mulf %133, %132 : vector<2x256xf32>
    %cst_58 = arith.constant 0.707106769 : f32
    %135 = vector.broadcast %cst_58 : f32 to vector<2x256xf32>
    %136 = arith.mulf %132, %135 : vector<2x256xf32>
    %137 = math.erf %136 : vector<2x256xf32>
    %cst_59 = arith.constant 1.000000e+00 : f32
    %138 = vector.broadcast %cst_59 : f32 to vector<2x256xf32>
    %139 = arith.addf %138, %137 : vector<2x256xf32>
    %140 = arith.mulf %134, %139 : vector<2x256xf32>
    %c0_60 = arith.constant 0 : index
    %c0_61 = arith.constant 0 : index
    %141 = vector.load %arg14[%c0_60, %c0_61] : memref<256x64xf32, #tpu.memory_space<vmem>>, vector<256x64xf32>
    %cst_62 = arith.constant dense<0.000000e+00> : vector<2x64xf32>
    %142 = tpu.matmul %140, %141, %cst_62 {dimension_numbers = #tpu.dot_dimension_numbers<[1], [0], [0], [1], [0, 0, 1, 1], [], []>} : vector<2x256xf32>, vector<256x64xf32>, vector<2x64xf32> -> vector<2x64xf32>
    %c0_63 = arith.constant 0 : index
    %c0_64 = arith.constant 0 : index
    %143 = vector.load %arg15[%c0_63, %c0_64] : memref<1x64xf32, #tpu.memory_space<vmem>>, vector<1x64xf32>
    %144 = vector.broadcast %143 : vector<1x64xf32> to vector<2x64xf32>
    %145 = arith.addf %142, %144 : vector<2x64xf32>
    %146 = arith.addf %103, %145 : vector<2x64xf32>
    %c0_65 = arith.constant 0 : index
    %c0_66 = arith.constant 0 : index
    %c0_67 = arith.constant 0 : index
    %147 = vector.load %arg18[%c0_65, %c0_66, %c0_67] : memref<1x2x64xf32, #tpu.memory_space<vmem>>, vector<1x2x64xf32>
    %148 = vector.shape_cast %147 : vector<1x2x64xf32> to vector<2x64xf32>
    %149 = vector.shape_cast %146 : vector<2x64xf32> to vector<1x2x64xf32>
    tpu.vector_store %arg18[%c0_65, %c0_66, %c0_67], %149 {strides = array<i32>} : memref<1x2x64xf32, #tpu.memory_space<vmem>>, vector<1x2x64xf32>,
    return
  }
  func.func @transform_0(%arg0: i32) -> (i32, i32, i32) {
    %c0_i32 = arith.constant 0 : i32
    %c0_i32_0 = arith.constant 0 : i32
    %c0_i32_1 = arith.constant 0 : i32
    return %arg0, %c0_i32, %c0_i32_0 : i32, i32, i32
  }
  func.func @transform_1(%arg0: i32) -> (i32, i32, i32) {
    %c0_i32 = arith.constant 0 : i32
    %c0_i32_0 = arith.constant 0 : i32
    %c0_i32_1 = arith.constant 0 : i32
    return %arg0, %c0_i32, %c0_i32_0 : i32, i32, i32
  }
  func.func @transform_2(%arg0: i32) -> (i32, i32) {
    %c0_i32 = arith.constant 0 : i32
    %c0_i32_0 = arith.constant 0 : i32
    %c0_i32_1 = arith.constant 0 : i32
    return %c0_i32, %c0_i32_0 : i32, i32
  }
  func.func @transform_3(%arg0: i32) -> (i32, i32) {
    %c0_i32 = arith.constant 0 : i32
    %c0_i32_0 = arith.constant 0 : i32
    %c0_i32_1 = arith.constant 0 : i32
    return %c0_i32, %c0_i32_0 : i32, i32
  }
  func.func @transform_4(%arg0: i32) -> (i32, i32) {
    %c0_i32 = arith.constant 0 : i32
    %c0_i32_0 = arith.constant 0 : i32
    %c0_i32_1 = arith.constant 0 : i32
    return %c0_i32, %c0_i32_0 : i32, i32
  }
  func.func @transform_5(%arg0: i32) -> (i32, i32) {
    %c0_i32 = arith.constant 0 : i32
    %c0_i32_0 = arith.constant 0 : i32
    %c0_i32_1 = arith.constant 0 : i32
    return %c0_i32, %c0_i32_0 : i32, i32
  }
  func.func @transform_6(%arg0: i32) -> (i32, i32) {
    %c0_i32 = arith.constant 0 : i32
    %c0_i32_0 = arith.constant 0 : i32
    %c0_i32_1 = arith.constant 0 : i32
    return %c0_i32, %c0_i32_0 : i32, i32
  }
  func.func @transform_7(%arg0: i32) -> (i32, i32) {
    %c0_i32 = arith.constant 0 : i32
    %c0_i32_0 = arith.constant 0 : i32
    %c0_i32_1 = arith.constant 0 : i32
    return %c0_i32, %c0_i32_0 : i32, i32
  }
  func.func @transform_8(%arg0: i32) -> (i32, i32) {
    %c0_i32 = arith.constant 0 : i32
    %c0_i32_0 = arith.constant 0 : i32
    %c0_i32_1 = arith.constant 0 : i32
    return %c0_i32, %c0_i32_0 : i32, i32
  }
  func.func @transform_9(%arg0: i32) -> (i32, i32) {
    %c0_i32 = arith.constant 0 : i32
    %c0_i32_0 = arith.constant 0 : i32
    %c0_i32_1 = arith.constant 0 : i32
    return %c0_i32, %c0_i32_0 : i32, i32
  }
  func.func @transform_10(%arg0: i32) -> (i32, i32) {
    %c0_i32 = arith.constant 0 : i32
    %c0_i32_0 = arith.constant 0 : i32
    %c0_i32_1 = arith.constant 0 : i32
    return %c0_i32, %c0_i32_0 : i32, i32
  }
  func.func @transform_11(%arg0: i32) -> (i32, i32) {
    %c0_i32 = arith.constant 0 : i32
    %c0_i32_0 = arith.constant 0 : i32
    %c0_i32_1 = arith.constant 0 : i32
    return %c0_i32, %c0_i32_0 : i32, i32
  }
  func.func @transform_12(%arg0: i32) -> (i32, i32) {
    %c0_i32 = arith.constant 0 : i32
    %c0_i32_0 = arith.constant 0 : i32
    %c0_i32_1 = arith.constant 0 : i32
    return %c0_i32, %c0_i32_0 : i32, i32
  }
  func.func @transform_13(%arg0: i32) -> (i32, i32) {
    %c0_i32 = arith.constant 0 : i32
    %c0_i32_0 = arith.constant 0 : i32
    %c0_i32_1 = arith.constant 0 : i32
    return %c0_i32, %c0_i32_0 : i32, i32
  }
  func.func @transform_14(%arg0: i32) -> (i32, i32) {
    %c0_i32 = arith.constant 0 : i32
    %c0_i32_0 = arith.constant 0 : i32
    %c0_i32_1 = arith.constant 0 : i32
    return %c0_i32, %c0_i32_0 : i32, i32
  }
  func.func @transform_15(%arg0: i32) -> (i32, i32) {
    %c0_i32 = arith.constant 0 : i32
    %c0_i32_0 = arith.constant 0 : i32
    %c0_i32_1 = arith.constant 0 : i32
    return %c0_i32, %c0_i32_0 : i32, i32
  }
  func.func @transform_16(%arg0: i32) -> (i32, i32) {
    %c0_i32 = arith.constant 0 : i32
    %c0_i32_0 = arith.constant 0 : i32
    %c0_i32_1 = arith.constant 0 : i32
    return %c0_i32, %c0_i32_0 : i32, i32
  }
  func.func @transform_17(%arg0: i32) -> (i32, i32, i32) {
    %c0_i32 = arith.constant 0 : i32
    %c0_i32_0 = arith.constant 0 : i32
    %c0_i32_1 = arith.constant 0 : i32
    return %arg0, %c0_i32, %c0_i32_0 : i32, i32, i32
  }
}

module attributes {stable_mosaic.version = 11 : i64} {
  func.func @block_ca_kernel(%arg0: i32, %arg1: memref<1x2x64xf32, #tpu.memory_space<vmem>>, %arg2: memref<2x16x64xf32, #tpu.memory_space<vmem>>, %arg3: memref<1x64xf32, #tpu.memory_space<vmem>>, %arg4: memref<1x64xf32, #tpu.memory_space<vmem>>, %arg5: memref<64x64xf32, #tpu.memory_space<vmem>>, %arg6: memref<64x64xf32, #tpu.memory_space<vmem>>, %arg7: memref<64x64xf32, #tpu.memory_space<vmem>>, %arg8: memref<64x64xf32, #tpu.memory_space<vmem>>, %arg9: memref<1x64xf32, #tpu.memory_space<vmem>>, %arg10: memref<1x64xf32, #tpu.memory_space<vmem>>, %arg11: memref<1x64xf32, #tpu.memory_space<vmem>>, %arg12: memref<64x256xf32, #tpu.memory_space<vmem>>, %arg13: memref<1x256xf32, #tpu.memory_space<vmem>>, %arg14: memref<256x64xf32, #tpu.memory_space<vmem>>, %arg15: memref<1x64xf32, #tpu.memory_space<vmem>>, %arg16: memref<64x4xf32, #tpu.memory_space<vmem>>, %arg17: memref<4x64xf32, #tpu.memory_space<vmem>>, %arg18: memref<1x2x64xf32, #tpu.memory_space<vmem>>) attributes {dimension_semantics = [#tpu.dimension_semantics<parallel>], iteration_bounds = array<i64: 2>, scalar_prefetch = 0 : i64, scratch_operands = 0 : i64, tpu.core_type = #tpu.core_type<tc>, window_params = [{transform_indices = @transform_0, window_bounds = array<i64: 1, 2, 64>}, {transform_indices = @transform_1, window_bounds = array<i64: 2, 16, 64>}, {pipeline_mode = #tpu.pipeline_mode<synchronous>, transform_indices = @transform_2, window_bounds = array<i64: 1, 64>}, {pipeline_mode = #tpu.pipeline_mode<synchronous>, transform_indices = @transform_3, window_bounds = array<i64: 1, 64>}, {pipeline_mode = #tpu.pipeline_mode<synchronous>, transform_indices = @transform_4, window_bounds = array<i64: 64, 64>}, {pipeline_mode = #tpu.pipeline_mode<synchronous>, transform_indices = @transform_5, window_bounds = array<i64: 64, 64>}, {pipeline_mode = #tpu.pipeline_mode<synchronous>, transform_indices = @transform_6, window_bounds = array<i64: 64, 64>}, {pipeline_mode = #tpu.pipeline_mode<synchronous>, transform_indices = @transform_7, window_bounds = array<i64: 64, 64>}, {pipeline_mode = #tpu.pipeline_mode<synchronous>, transform_indices = @transform_8, window_bounds = array<i64: 1, 64>}, {pipeline_mode = #tpu.pipeline_mode<synchronous>, transform_indices = @transform_9, window_bounds = array<i64: 1, 64>}, {pipeline_mode = #tpu.pipeline_mode<synchronous>, transform_indices = @transform_10, window_bounds = array<i64: 1, 64>}, {pipeline_mode = #tpu.pipeline_mode<synchronous>, transform_indices = @transform_11, window_bounds = array<i64: 64, 256>}, {pipeline_mode = #tpu.pipeline_mode<synchronous>, transform_indices = @transform_12, window_bounds = array<i64: 1, 256>}, {pipeline_mode = #tpu.pipeline_mode<synchronous>, transform_indices = @transform_13, window_bounds = array<i64: 256, 64>}, {pipeline_mode = #tpu.pipeline_mode<synchronous>, transform_indices = @transform_14, window_bounds = array<i64: 1, 64>}, {pipeline_mode = #tpu.pipeline_mode<synchronous>, transform_indices = @transform_15, window_bounds = array<i64: 64, 4>}, {pipeline_mode = #tpu.pipeline_mode<synchronous>, transform_indices = @transform_16, window_bounds = array<i64: 4, 64>}, {transform_indices = @transform_17, window_bounds = array<i64: 1, 2, 64>}]} {
    %c0 = arith.constant 0 : index
    %c0_0 = arith.constant 0 : index
    %c0_1 = arith.constant 0 : index
    %0 = vector.load %arg1[%c0, %c0_0, %c0_1] : memref<1x2x64xf32, #tpu.memory_space<vmem>>, vector<1x2x64xf32>
    %1 = vector.shape_cast %0 : vector<1x2x64xf32> to vector<2x64xf32>
    %c0_2 = arith.constant 0 : index
    %c0_3 = arith.constant 0 : index
    %c0_4 = arith.constant 0 : index
    %2 = vector.load %arg2[%c0_2, %c0_3, %c0_4] : memref<2x16x64xf32, #tpu.memory_space<vmem>>, vector<2x16x64xf32>
    %c0_5 = arith.constant 0 : index
    %c0_6 = arith.constant 0 : index
    %3 = vector.load %arg3[%c0_5, %c0_6] : memref<1x64xf32, #tpu.memory_space<vmem>>, vector<1x64xf32>
    %c0_7 = arith.constant 0 : index
    %c0_8 = arith.constant 0 : index
    %4 = vector.load %arg4[%c0_7, %c0_8] : memref<1x64xf32, #tpu.memory_space<vmem>>, vector<1x64xf32>
    %cst = arith.constant dense<0.000000e+00> : vector<2xf32>
    %5 = vector.multi_reduction <add>, %1, %cst [1] : vector<2x64xf32> to vector<2xf32>
    %6 = vector.shape_cast %5 : vector<2xf32> to vector<2x1xf32>
    %cst_9 = arith.constant 6.400000e+01 : f32
    %7 = vector.broadcast %cst_9 : f32 to vector<2x1xf32>
    %8 = arith.divf %6, %7 : vector<2x1xf32>
    %9 = vector.broadcast %8 : vector<2x1xf32> to vector<2x64xf32>
    %10 = arith.subf %1, %9 : vector<2x64xf32>
    %11 = arith.mulf %10, %10 : vector<2x64xf32>
    %cst_10 = arith.constant dense<0.000000e+00> : vector<2xf32>
    %12 = vector.multi_reduction <add>, %11, %cst_10 [1] : vector<2x64xf32> to vector<2xf32>
    %13 = vector.shape_cast %12 : vector<2xf32> to vector<2x1xf32>
    %cst_11 = arith.constant 6.400000e+01 : f32
    %14 = vector.broadcast %cst_11 : f32 to vector<2x1xf32>
    %15 = arith.divf %13, %14 : vector<2x1xf32>
    %16 = vector.broadcast %8 : vector<2x1xf32> to vector<2x64xf32>
    %17 = arith.subf %1, %16 : vector<2x64xf32>
    %cst_12 = arith.constant 9.99999974E-6 : f32
    %18 = vector.broadcast %cst_12 : f32 to vector<2x1xf32>
    %19 = arith.addf %15, %18 : vector<2x1xf32>
    %20 = math.rsqrt %19 : vector<2x1xf32>
    %21 = vector.broadcast %20 : vector<2x1xf32> to vector<2x64xf32>
    %22 = arith.mulf %17, %21 : vector<2x64xf32>
    %23 = vector.broadcast %3 : vector<1x64xf32> to vector<2x64xf32>
    %24 = arith.mulf %22, %23 : vector<2x64xf32>
    %25 = vector.broadcast %4 : vector<1x64xf32> to vector<2x64xf32>
    %26 = arith.addf %24, %25 : vector<2x64xf32>
    %cst_13 = arith.constant dense<0.000000e+00> : vector<2x16xf32>
    %27 = vector.multi_reduction <add>, %2, %cst_13 [2] : vector<2x16x64xf32> to vector<2x16xf32>
    %28 = vector.shape_cast %27 : vector<2x16xf32> to vector<2x16x1xf32>
    %cst_14 = arith.constant 6.400000e+01 : f32
    %29 = vector.broadcast %cst_14 : f32 to vector<2x16x1xf32>
    %30 = arith.divf %28, %29 : vector<2x16x1xf32>
    %31 = vector.broadcast %30 : vector<2x16x1xf32> to vector<2x16x64xf32>
    %32 = arith.subf %2, %31 : vector<2x16x64xf32>
    %33 = arith.mulf %32, %32 : vector<2x16x64xf32>
    %cst_15 = arith.constant dense<0.000000e+00> : vector<2x16xf32>
    %34 = vector.multi_reduction <add>, %33, %cst_15 [2] : vector<2x16x64xf32> to vector<2x16xf32>
    %35 = vector.shape_cast %34 : vector<2x16xf32> to vector<2x16x1xf32>
    %cst_16 = arith.constant 6.400000e+01 : f32
    %36 = vector.broadcast %cst_16 : f32 to vector<2x16x1xf32>
    %37 = arith.divf %35, %36 : vector<2x16x1xf32>
    %38 = vector.broadcast %30 : vector<2x16x1xf32> to vector<2x16x64xf32>
    %39 = arith.subf %2, %38 : vector<2x16x64xf32>
    %cst_17 = arith.constant 9.99999974E-6 : f32
    %40 = vector.broadcast %cst_17 : f32 to vector<2x16x1xf32>
    %41 = arith.addf %37, %40 : vector<2x16x1xf32>
    %42 = math.rsqrt %41 : vector<2x16x1xf32>
    %43 = vector.broadcast %42 : vector<2x16x1xf32> to vector<2x16x64xf32>
    %44 = arith.mulf %39, %43 : vector<2x16x64xf32>
    %45 = vector.shape_cast %3 : vector<1x64xf32> to vector<1x1x64xf32>
    %46 = vector.broadcast %45 : vector<1x1x64xf32> to vector<2x16x64xf32>
    %47 = arith.mulf %44, %46 : vector<2x16x64xf32>
    %48 = vector.shape_cast %4 : vector<1x64xf32> to vector<1x1x64xf32>
    %49 = vector.broadcast %48 : vector<1x1x64xf32> to vector<2x16x64xf32>
    %50 = arith.addf %47, %49 : vector<2x16x64xf32>
    %51 = vector.shape_cast %50 : vector<2x16x64xf32> to vector<32x64xf32>
    %52 = tpu.concatenate %51, %26 in 0 : vector<32x64xf32>, vector<2x64xf32> -> vector<34x64xf32>
    %c0_18 = arith.constant 0 : index
    %c0_19 = arith.constant 0 : index
    %53 = vector.load %arg5[%c0_18, %c0_19] : memref<64x64xf32, #tpu.memory_space<vmem>>, vector<64x64xf32>
    %cst_20 = arith.constant dense<0.000000e+00> : vector<2x64xf32>
    %54 = tpu.matmul %26, %53, %cst_20 {dimension_numbers = #tpu.dot_dimension_numbers<[1], [0], [0], [1], [0, 0, 1, 1], [], []>} : vector<2x64xf32>, vector<64x64xf32>, vector<2x64xf32> -> vector<2x64xf32>
    %c0_21 = arith.constant 0 : index
    %c0_22 = arith.constant 0 : index
    %55 = vector.load %arg6[%c0_21, %c0_22] : memref<64x64xf32, #tpu.memory_space<vmem>>, vector<64x64xf32>
    %cst_23 = arith.constant dense<0.000000e+00> : vector<34x64xf32>
    %56 = tpu.matmul %52, %55, %cst_23 {dimension_numbers = #tpu.dot_dimension_numbers<[1], [0], [0], [1], [0, 0, 1, 1], [], []>} : vector<34x64xf32>, vector<64x64xf32>, vector<34x64xf32> -> vector<34x64xf32>
    %c0_24 = arith.constant 0 : index
    %c0_25 = arith.constant 0 : index
    %57 = vector.load %arg7[%c0_24, %c0_25] : memref<64x64xf32, #tpu.memory_space<vmem>>, vector<64x64xf32>
    %cst_26 = arith.constant dense<0.000000e+00> : vector<34x64xf32>
    %58 = tpu.matmul %52, %57, %cst_26 {dimension_numbers = #tpu.dot_dimension_numbers<[1], [0], [0], [1], [0, 0, 1, 1], [], []>} : vector<34x64xf32>, vector<64x64xf32>, vector<34x64xf32> -> vector<34x64xf32>
    %59 = vector.extract_strided_slice %56 {offsets = [0, 0], sizes = [32, 64], strides = [1, 1]} : vector<34x64xf32> to vector<32x64xf32>
    %60 = vector.extract_strided_slice %56 {offsets = [32, 0], sizes = [2, 64], strides = [1, 1]} : vector<34x64xf32> to vector<2x64xf32>
    %61 = vector.extract_strided_slice %58 {offsets = [0, 0], sizes = [32, 64], strides = [1, 1]} : vector<34x64xf32> to vector<32x64xf32>
    %62 = vector.shape_cast %61 : vector<32x64xf32> to vector<2x16x64xf32>
    %63 = vector.extract_strided_slice %58 {offsets = [32, 0], sizes = [2, 64], strides = [1, 1]} : vector<34x64xf32> to vector<2x64xf32>
    %c0_27 = arith.constant 0 : index
    %c0_28 = arith.constant 0 : index
    %64 = vector.load %arg16[%c0_27, %c0_28] : memref<64x4xf32, #tpu.memory_space<vmem>>, vector<64x4xf32>
    %c0_29 = arith.constant 0 : index
    %c0_30 = arith.constant 0 : index
    %65 = vector.load %arg17[%c0_29, %c0_30] : memref<4x64xf32, #tpu.memory_space<vmem>>, vector<4x64xf32>
    %66 = arith.mulf %54, %60 : vector<2x64xf32>
    %cst_31 = arith.constant dense<0.000000e+00> : vector<2x4xf32>
    %67 = tpu.matmul %66, %64, %cst_31 {dimension_numbers = #tpu.dot_dimension_numbers<[1], [0], [0], [1], [0, 0, 1, 1], [], []>} : vector<2x64xf32>, vector<64x4xf32>, vector<2x4xf32> -> vector<2x4xf32>
    %68 = vector.shape_cast %54 : vector<2x64xf32> to vector<2x1x64xf32>
    %69 = vector.shape_cast %59 : vector<32x64xf32> to vector<2x16x64xf32>
    %70 = vector.broadcast %68 : vector<2x1x64xf32> to vector<2x16x64xf32>
    %71 = arith.mulf %70, %69 : vector<2x16x64xf32>
    %72 = vector.shape_cast %71 : vector<2x16x64xf32> to vector<32x64xf32>
    %cst_32 = arith.constant dense<0.000000e+00> : vector<32x4xf32>
    %73 = tpu.matmul %72, %64, %cst_32 {dimension_numbers = #tpu.dot_dimension_numbers<[1], [0], [0], [1], [0, 0, 1, 1], [], []>} : vector<32x64xf32>, vector<64x4xf32>, vector<32x4xf32> -> vector<32x4xf32>
    %74 = vector.shape_cast %73 : vector<32x4xf32> to vector<2x16x4xf32>
    %cst_33 = arith.constant dense<0xFF800000> : vector<2x4xf32>
    %75 = vector.multi_reduction <maximumf>, %74, %cst_33 [1] : vector<2x16x4xf32> to vector<2x4xf32>
    %76 = arith.maximumf %67, %75 : vector<2x4xf32>
    %77 = arith.subf %67, %76 : vector<2x4xf32>
    %78 = math.exp %77 : vector<2x4xf32>
    %79 = vector.shape_cast %76 : vector<2x4xf32> to vector<2x1x4xf32>
    %80 = vector.broadcast %79 : vector<2x1x4xf32> to vector<2x16x4xf32>
    %81 = arith.subf %74, %80 : vector<2x16x4xf32>
    %82 = math.exp %81 : vector<2x16x4xf32>
    %cst_34 = arith.constant dense<0.000000e+00> : vector<2x4xf32>
    %83 = vector.multi_reduction <add>, %82, %cst_34 [1] : vector<2x16x4xf32> to vector<2x4xf32>
    %84 = arith.addf %78, %83 : vector<2x4xf32>
    %85 = tpu.reciprocal %84 : vector<2x4xf32> -> vector<2x4xf32>
    %86 = arith.mulf %78, %85 : vector<2x4xf32>
    %87 = vector.shape_cast %85 : vector<2x4xf32> to vector<2x1x4xf32>
    %88 = vector.broadcast %87 : vector<2x1x4xf32> to vector<2x16x4xf32>
    %89 = arith.mulf %82, %88 : vector<2x16x4xf32>
    %cst_35 = arith.constant dense<0.000000e+00> : vector<2x64xf32>
    %90 = tpu.matmul %86, %65, %cst_35 {dimension_numbers = #tpu.dot_dimension_numbers<[1], [0], [0], [1], [0, 0, 1, 1], [], []>} : vector<2x4xf32>, vector<4x64xf32>, vector<2x64xf32> -> vector<2x64xf32>
    %91 = vector.shape_cast %89 : vector<2x16x4xf32> to vector<32x4xf32>
    %cst_36 = arith.constant dense<0.000000e+00> : vector<32x64xf32>
    %92 = tpu.matmul %91, %65, %cst_36 {dimension_numbers = #tpu.dot_dimension_numbers<[1], [0], [0], [1], [0, 0, 1, 1], [], []>} : vector<32x4xf32>, vector<4x64xf32>, vector<32x64xf32> -> vector<32x64xf32>
    %93 = vector.shape_cast %92 : vector<32x64xf32> to vector<2x16x64xf32>
    %94 = arith.mulf %90, %63 : vector<2x64xf32>
    %95 = arith.mulf %93, %62 : vector<2x16x64xf32>
    %cst_37 = arith.constant dense<0.000000e+00> : vector<2x64xf32>
    %96 = vector.multi_reduction <add>, %95, %cst_37 [1] : vector<2x16x64xf32> to vector<2x64xf32>
    %97 = arith.addf %94, %96 : vector<2x64xf32>
    %c0_38 = arith.constant 0 : index
    %c0_39 = arith.constant 0 : index
    %98 = vector.load %arg8[%c0_38, %c0_39] : memref<64x64xf32, #tpu.memory_space<vmem>>, vector<64x64xf32>
    %cst_40 = arith.constant dense<0.000000e+00> : vector<2x64xf32>
    %99 = tpu.matmul %97, %98, %cst_40 {dimension_numbers = #tpu.dot_dimension_numbers<[1], [0], [0], [1], [0, 0, 1, 1], [], []>} : vector<2x64xf32>, vector<64x64xf32>, vector<2x64xf32> -> vector<2x64xf32>
    %c0_41 = arith.constant 0 : index
    %c0_42 = arith.constant 0 : index
    %100 = vector.load %arg9[%c0_41, %c0_42] : memref<1x64xf32, #tpu.memory_space<vmem>>, vector<1x64xf32>
    %101 = vector.broadcast %100 : vector<1x64xf32> to vector<2x64xf32>
    %102 = arith.addf %99, %101 : vector<2x64xf32>
    %103 = arith.addf %1, %102 : vector<2x64xf32>
    %c0_43 = arith.constant 0 : index
    %c0_44 = arith.constant 0 : index
    %104 = vector.load %arg10[%c0_43, %c0_44] : memref<1x64xf32, #tpu.memory_space<vmem>>, vector<1x64xf32>
    %c0_45 = arith.constant 0 : index
    %c0_46 = arith.constant 0 : index
    %105 = vector.load %arg11[%c0_45, %c0_46] : memref<1x64xf32, #tpu.memory_space<vmem>>, vector<1x64xf32>
    %cst_47 = arith.constant dense<0.000000e+00> : vector<2xf32>
    %106 = vector.multi_reduction <add>, %103, %cst_47 [1] : vector<2x64xf32> to vector<2xf32>
    %107 = vector.shape_cast %106 : vector<2xf32> to vector<2x1xf32>
    %cst_48 = arith.constant 6.400000e+01 : f32
    %108 = vector.broadcast %cst_48 : f32 to vector<2x1xf32>
    %109 = arith.divf %107, %108 : vector<2x1xf32>
    %110 = vector.broadcast %109 : vector<2x1xf32> to vector<2x64xf32>
    %111 = arith.subf %103, %110 : vector<2x64xf32>
    %112 = arith.mulf %111, %111 : vector<2x64xf32>
    %cst_49 = arith.constant dense<0.000000e+00> : vector<2xf32>
    %113 = vector.multi_reduction <add>, %112, %cst_49 [1] : vector<2x64xf32> to vector<2xf32>
    %114 = vector.shape_cast %113 : vector<2xf32> to vector<2x1xf32>
    %cst_50 = arith.constant 6.400000e+01 : f32
    %115 = vector.broadcast %cst_50 : f32 to vector<2x1xf32>
    %116 = arith.divf %114, %115 : vector<2x1xf32>
    %117 = vector.broadcast %109 : vector<2x1xf32> to vector<2x64xf32>
    %118 = arith.subf %103, %117 : vector<2x64xf32>
    %cst_51 = arith.constant 9.99999974E-6 : f32
    %119 = vector.broadcast %cst_51 : f32 to vector<2x1xf32>
    %120 = arith.addf %116, %119 : vector<2x1xf32>
    %121 = math.rsqrt %120 : vector<2x1xf32>
    %122 = vector.broadcast %121 : vector<2x1xf32> to vector<2x64xf32>
    %123 = arith.mulf %118, %122 : vector<2x64xf32>
    %124 = vector.broadcast %104 : vector<1x64xf32> to vector<2x64xf32>
    %125 = arith.mulf %123, %124 : vector<2x64xf32>
    %126 = vector.broadcast %105 : vector<1x64xf32> to vector<2x64xf32>
    %127 = arith.addf %125, %126 : vector<2x64xf32>
    %c0_52 = arith.constant 0 : index
    %c0_53 = arith.constant 0 : index
    %128 = vector.load %arg12[%c0_52, %c0_53] : memref<64x256xf32, #tpu.memory_space<vmem>>, vector<64x256xf32>
    %cst_54 = arith.constant dense<0.000000e+00> : vector<2x256xf32>
    %129 = tpu.matmul %127, %128, %cst_54 {dimension_numbers = #tpu.dot_dimension_numbers<[1], [0], [0], [1], [0, 0, 1, 1], [], []>} : vector<2x64xf32>, vector<64x256xf32>, vector<2x256xf32> -> vector<2x256xf32>
    %c0_55 = arith.constant 0 : index
    %c0_56 = arith.constant 0 : index
    %130 = vector.load %arg13[%c0_55, %c0_56] : memref<1x256xf32, #tpu.memory_space<vmem>>, vector<1x256xf32>
    %131 = vector.broadcast %130 : vector<1x256xf32> to vector<2x256xf32>
    %132 = arith.addf %129, %131 : vector<2x256xf32>
    %cst_57 = arith.constant 5.000000e-01 : f32
    %133 = vector.broadcast %cst_57 : f32 to vector<2x256xf32>
    %134 = arith.mulf %133, %132 : vector<2x256xf32>
    %cst_58 = arith.constant 0.707106769 : f32
    %135 = vector.broadcast %cst_58 : f32 to vector<2x256xf32>
    %136 = arith.mulf %132, %135 : vector<2x256xf32>
    %137 = math.erf %136 : vector<2x256xf32>
    %cst_59 = arith.constant 1.000000e+00 : f32
    %138 = vector.broadcast %cst_59 : f32 to vector<2x256xf32>
    %139 = arith.addf %138, %137 : vector<2x256xf32>
    %140 = arith.mulf %134, %139 : vector<2x256xf32>
    %c0_60 = arith.constant 0 : index
    %c0_61 = arith.constant 0 : index
    %141 = vector.load %arg14[%c0_60, %c0_61] : memref<256x64xf32, #tpu.memory_space<vmem>>, vector<256x64xf32>
    %cst_62 = arith.constant dense<0.000000e+00> : vector<2x64xf32>
    %142 = tpu.matmul %140, %141, %cst_62 {dimension_numbers = #tpu.dot_dimension_numbers<[1], [0], [0], [1], [0, 0, 1, 1], [], []>} : vector<2x256xf32>, vector<256x64xf32>, vector<2x64xf32> -> vector<2x64xf32>
    %c0_63 = arith.constant 0 : index
    %c0_64 = arith.constant 0 : index
    %143 = vector.load %arg15[%c0_63, %c0_64] : memref<1x64xf32, #tpu.memory_space<vmem>>, vector<1x64xf32>
    %144 = vector.broadcast %143 : vector<1x64xf32> to vector<2x64xf32>
    %145 = arith.addf %142, %144 : vector<2x64xf32>
    %146 = arith.addf %103, %145 : vector<2x64xf32>
    %c0_65 = arith.constant 0 : index
    %c0_66 = arith.constant 0 : index
    %c0_67 = arith.constant 0 : index
    %147 = vector.load %arg18[%c0_65, %c0_66, %c0_67] : memref<1x2x64xf32, #tpu.memory_space<vmem>>, vector<1x2x64xf32>
    %148 = vector.shape_cast %147 : vector<1x2x64xf32> to vector<2x64xf32>
    %149 = vector.shape_cast %146 : vector<2x64xf32> to vector<1x2x64xf32>
    tpu.vector_store %arg18[%c0_65, %c0_66, %c0_67], %149 {strides = array<i32>} : memref<1x2x64xf32, #tpu.memory_space<vmem>>, vector<1x2x64xf32>,
    return
  }
  func.func @transform_0(%arg0: i32) -> (i32, i32, i32) {
    %c0_i32 = arith.constant 0 : i32
    %c0_i32_0 = arith.constant 0 : i32
    %c0_i32_1 = arith.constant 0 : i32
    return %arg0, %c0_i32, %c0_i32_0 : i32, i32, i32
  }
  func.func @transform_1(%arg0: i32) -> (i32, i32, i32) {
    %c0_i32 = arith.constant 0 : i32
    %c0_i32_0 = arith.constant 0 : i32
    %c0_i32_1 = arith.constant 0 : i32
    return %arg0, %c0_i32, %c0_i32_0 : i32, i32, i32
  }
  func.func @transform_2(%arg0: i32) -> (i32, i32) {
    %c0_i32 = arith.constant 0 : i32
    %c0_i32_0 = arith.constant 0 : i32
    %c0_i32_1 = arith.constant 0 : i32
    return %c0_i32, %c0_i32_0 : i32, i32
  }
  func.func @transform_3(%arg0: i32) -> (i32, i32) {
    %c0_i32 = arith.constant 0 : i32
    %c0_i32_0 = arith.constant 0 : i32
    %c0_i32_1 = arith.constant 0 : i32
    return %c0_i32, %c0_i32_0 : i32, i32
  }
  func.func @transform_4(%arg0: i32) -> (i32, i32) {
    %c0_i32 = arith.constant 0 : i32
    %c0_i32_0 = arith.constant 0 : i32
    %c0_i32_1 = arith.constant 0 : i32
    return %c0_i32, %c0_i32_0 : i32, i32
  }
  func.func @transform_5(%arg0: i32) -> (i32, i32) {
    %c0_i32 = arith.constant 0 : i32
    %c0_i32_0 = arith.constant 0 : i32
    %c0_i32_1 = arith.constant 0 : i32
    return %c0_i32, %c0_i32_0 : i32, i32
  }
  func.func @transform_6(%arg0: i32) -> (i32, i32) {
    %c0_i32 = arith.constant 0 : i32
    %c0_i32_0 = arith.constant 0 : i32
    %c0_i32_1 = arith.constant 0 : i32
    return %c0_i32, %c0_i32_0 : i32, i32
  }
  func.func @transform_7(%arg0: i32) -> (i32, i32) {
    %c0_i32 = arith.constant 0 : i32
    %c0_i32_0 = arith.constant 0 : i32
    %c0_i32_1 = arith.constant 0 : i32
    return %c0_i32, %c0_i32_0 : i32, i32
  }
  func.func @transform_8(%arg0: i32) -> (i32, i32) {
    %c0_i32 = arith.constant 0 : i32
    %c0_i32_0 = arith.constant 0 : i32
    %c0_i32_1 = arith.constant 0 : i32
    return %c0_i32, %c0_i32_0 : i32, i32
  }
  func.func @transform_9(%arg0: i32) -> (i32, i32) {
    %c0_i32 = arith.constant 0 : i32
    %c0_i32_0 = arith.constant 0 : i32
    %c0_i32_1 = arith.constant 0 : i32
    return %c0_i32, %c0_i32_0 : i32, i32
  }
  func.func @transform_10(%arg0: i32) -> (i32, i32) {
    %c0_i32 = arith.constant 0 : i32
    %c0_i32_0 = arith.constant 0 : i32
    %c0_i32_1 = arith.constant 0 : i32
    return %c0_i32, %c0_i32_0 : i32, i32
  }
  func.func @transform_11(%arg0: i32) -> (i32, i32) {
    %c0_i32 = arith.constant 0 : i32
    %c0_i32_0 = arith.constant 0 : i32
    %c0_i32_1 = arith.constant 0 : i32
    return %c0_i32, %c0_i32_0 : i32, i32
  }
  func.func @transform_12(%arg0: i32) -> (i32, i32) {
    %c0_i32 = arith.constant 0 : i32
    %c0_i32_0 = arith.constant 0 : i32
    %c0_i32_1 = arith.constant 0 : i32
    return %c0_i32, %c0_i32_0 : i32, i32
  }
  func.func @transform_13(%arg0: i32) -> (i32, i32) {
    %c0_i32 = arith.constant 0 : i32
    %c0_i32_0 = arith.constant 0 : i32
    %c0_i32_1 = arith.constant 0 : i32
    return %c0_i32, %c0_i32_0 : i32, i32
  }
  func.func @transform_14(%arg0: i32) -> (i32, i32) {
    %c0_i32 = arith.constant 0 : i32
    %c0_i32_0 = arith.constant 0 : i32
    %c0_i32_1 = arith.constant 0 : i32
    return %c0_i32, %c0_i32_0 : i32, i32
  }
  func.func @transform_15(%arg0: i32) -> (i32, i32) {
    %c0_i32 = arith.constant 0 : i32
    %c0_i32_0 = arith.constant 0 : i32
    %c0_i32_1 = arith.constant 0 : i32
    return %c0_i32, %c0_i32_0 : i32, i32
  }
  func.func @transform_16(%arg0: i32) -> (i32, i32) {
    %c0_i32 = arith.constant 0 : i32
    %c0_i32_0 = arith.constant 0 : i32
    %c0_i32_1 = arith.constant 0 : i32
    return %c0_i32, %c0_i32_0 : i32, i32
  }
  func.func @transform_17(%arg0: i32) -> (i32, i32, i32) {
    %c0_i32 = arith.constant 0 : i32
    %c0_i32_0 = arith.constant 0 : i32
    %c0_i32_1 = arith.constant 0 : i32
    return %arg0, %c0_i32, %c0_i32_0 : i32, i32, i32
  }
}

</mosaic_0001>

<llo_original>
// kernel: tpu_custom_call.1
$region0: #{tpu_custom_call.1}
  #allocation0 [shape = 'u32[]', space=smem, size = 0x4, offset = 0x4, fixed_abs, tag = 'smem constant byte address 0x4 - core index']
  #allocation1 [shape = 'u32[144,128]{1,0:T(1,128)}', space=vmem, size = 0x12000, scoped, tag = 'internal scratch']
  %s0 = inlined_call_operand.vmem [shape: f32[2,2,64], index: 0, kind: input, shape index: {}]
  %s1 = inlined_call_operand.vmem [shape: f32[4,16,64], index: 1, kind: input, shape index: {}]
  %s2 = inlined_call_operand.hbm [shape: f32[1,64], index: 2, kind: input, shape index: {}]
  %s3 = inlined_call_operand.hbm [shape: f32[1,64], index: 3, kind: input, shape index: {}]
  %s4 = inlined_call_operand.vmem [shape: f32[64,64], index: 4, kind: input, shape index: {}]
  %s5 = inlined_call_operand.vmem [shape: f32[64,64], index: 5, kind: input, shape index: {}]
  %s6 = inlined_call_operand.vmem [shape: f32[64,64], index: 6, kind: input, shape index: {}]
  %s7 = inlined_call_operand.vmem [shape: f32[64,64], index: 7, kind: input, shape index: {}]
  %s8 = inlined_call_operand.hbm [shape: f32[1,64], index: 8, kind: input, shape index: {}]
  %s9 = inlined_call_operand.vmem [shape: f32[1,64], index: 9, kind: input, shape index: {}]
  %s10 = inlined_call_operand.vmem [shape: f32[1,64], index: 10, kind: input, shape index: {}]
  %s11 = inlined_call_operand.vmem [shape: f32[64,256], index: 11, kind: input, shape index: {}]
  %s12 = inlined_call_operand.vmem [shape: f32[1,256], index: 12, kind: input, shape index: {}]
  %s13 = inlined_call_operand.vmem [shape: f32[256,64], index: 13, kind: input, shape index: {}]
  %s14 = inlined_call_operand.vmem [shape: f32[1,64], index: 14, kind: input, shape index: {}]
  %s15 = inlined_call_operand.vmem [shape: f32[64,4], index: 15, kind: input, shape index: {}]
  %s16 = inlined_call_operand.vmem [shape: f32[4,64], index: 16, kind: input, shape index: {}]
  %s17 = inlined_call_operand.hbm [shape: f32[2,2,64], index: 17, kind: output, shape index: {}]
  %s18 = sld [smem:[#allocation0]]
  $region113: #{tpu_custom_call.1} parent=0
    _
  %s20 = ssub.s32 1, %s18
  %s21 = scalar_select 0, %s20, %s18
  $region1: #{tpu_custom_call.1} parent=0
    #allocation2 [shape = 'u8[512]{0}', space=vmem, size = 0x400, scoped, tag = 'input window, operand 2, single buffered']
    #allocation3 [shape = 's32[2]{0}', space=sflag, size = 0x8, scoped, tag = 'scoped memory for tpu_custom_call.1']
    #allocation4 [shape = 's32[2]{0}', space=sflag, size = 0x8, scoped, tag = 'scoped memory for tpu_custom_call.1']
    #allocation5 [shape = 'u8[512]{0}', space=vmem, size = 0x400, scoped, tag = 'input window, operand 3, single buffered']
    #allocation6 [shape = 's32[1]{0}', space=sflag, size = 0x4, scoped, tag = 'scoped memory for tpu_custom_call.1']
    #allocation7 [shape = 'u8[512]{0}', space=vmem, size = 0x400, scoped, tag = 'input window, operand 8, single buffered']
    #allocation8 [shape = 'u8[2048]{0}', space=vmem, size = 0x800, scoped, tag = 'output window, operand 0']
    %22 = vsyncpa [#allocation3], 0
    %23 = vsyncpa [#allocation6], 0
    %24 = vsyncpa [#allocation4], 0
    %s25 = scalar_lea.sflag [#allocation4], 1
    %26 = vsyncpa %s25, 0
    loop: start=0, step=1, limit=4
    $region2: #{tpu_custom_call.1} parent=1 // loop_pre_header
      _
    $region3: #{tpu_custom_call.1} parent=1 // loop_header
      %s28 = sphi 0, %s32
      %p29 = scmp.ge.s32.totalorder %s28, 4
      %s38 = sphi 0, %s40
      %s41 = sphi 0, %s38
      %s42 = sphi 0, %s41
      %s58 = sphi 0, %s42
      %s64 = sphi 0, %s66
      %s67 = sphi 0, %s64
      %s68 = sphi 0, %s67
      %s84 = sphi 0, %s68
      %s88 = sphi 0, %s88
      %s90 = sphi 0, %s88
      %s91 = sphi 0, %s90
      %s105 = sphi 0, %s91
      %s109 = sphi 0, %s109
      %s111 = sphi 0, %s109
      %s112 = sphi 0, %s111
      %s126 = sphi 0, %s112
      %s130 = sphi 0, %s130
      %s132 = sphi 0, %s130
      %s133 = sphi 0, %s132
      %s147 = sphi 0, %s133
      %s151 = sphi 0, %s151
      %s153 = sphi 0, %s151
      %s154 = sphi 0, %s153
      %s168 = sphi 0, %s154
      %s172 = sphi 0, %s172
      %s174 = sphi 0, %s172
      %s175 = sphi 0, %s174
      %s189 = sphi 0, %s175
      %s193 = sphi 0, %s193
      %s195 = sphi 0, %s193
      %s196 = sphi 0, %s195
      %s210 = sphi 0, %s196
      %s214 = sphi 0, %s214
      %s216 = sphi 0, %s214
      %s217 = sphi 0, %s216
      %s231 = sphi 0, %s217
      %s235 = sphi 0, %s235
      %s237 = sphi 0, %s235
      %s238 = sphi 0, %s237
      %s252 = sphi 0, %s238
      %s256 = sphi 0, %s256
      %s258 = sphi 0, %s256
      %s259 = sphi 0, %s258
      %s273 = sphi 0, %s259
      %s277 = sphi 0, %s277
      %s279 = sphi 0, %s277
      %s280 = sphi 0, %s279
      %s294 = sphi 0, %s280
      %s298 = sphi 0, %s298
      %s300 = sphi 0, %s298
      %s301 = sphi 0, %s300
      %s315 = sphi 0, %s301
      %s319 = sphi 0, %s319
      %s321 = sphi 0, %s319
      %s322 = sphi 0, %s321
      %s336 = sphi 0, %s322
      %s340 = sphi 0, %s340
      %s342 = sphi 0, %s340
      %s343 = sphi 0, %s342
      %s357 = sphi 0, %s343
      %s361 = sphi 0, %s361
      %s363 = sphi 0, %s361
      %s364 = sphi 0, %s363
      %s378 = sphi 0, %s364
      %s382 = sphi 0, %s382
      %s384 = sphi 0, %s382
      %s385 = sphi 0, %s384
      %s399 = sphi 0, %s385
      %s405 = sphi 0, %s407
      %s408 = sphi 0, %s405
      %s409 = sphi 0, %s408
      %s425 = sphi 0, %s409
    $region4: #{tpu_custom_call.1} parent=1 // loop_header_branch
      %31 = sbr.rel (%p29) target = $region8
    $region5: #{tpu_custom_call.1} parent=1 // loop_body
      %s33 = ssub.s32 %s28, 1
      %s34 = ssub.s32 %s28, 2
      %s35 = sadd.s32 %s28, 1
      %s36 = ssub.s32 %s28, %s35
      %p37 = scmp.eq.s32.totalorder %s36, 0
      %s39 = sadd.s32 %s38, 1
      %s40 = scalar_select %p37, %s38, %s39
      %p43 = pneg %p37
      %p44 = scmp.eq.s32.totalorder %s28, 1
      %p45 = por %p43, %p44
      %p46 = scmp.ne.s32.totalorder %s38, %s41
      %p47 = scmp.eq.s32.totalorder %s28, 0
      %p48 = por %p46, %p47
      %p49 = scmp.ne.s32.totalorder %s38, %s41
      %p50 = scmp.eq.s32.totalorder %s33, 1
      %p51 = por %p49, %p50
      %p52 = scmp.ne.s32.totalorder %s41, %s42
      %p53 = scmp.eq.s32.totalorder %s33, 0
      %p54 = por %p52, %p53
      %p55 = scmp.ne.s32.totalorder %s41, %s42
      %p56 = scmp.eq.s32.totalorder %s34, 1
      %p57 = por %p55, %p56
      %p59 = scmp.ne.s32.totalorder %s42, %s58
      %p60 = scmp.eq.s32.totalorder %s34, 0
      %p61 = por %p59, %p60
      %s62 = ssub.s32 %s28, %s35
      %p63 = scmp.eq.s32.totalorder %s62, 0
      %s65 = sadd.s32 %s64, 1
      %s66 = scalar_select %p63, %s64, %s65
      %p69 = pneg %p63
      %p70 = scmp.eq.s32.totalorder %s28, 1
      %p71 = por %p69, %p70
      %p72 = scmp.ne.s32.totalorder %s64, %s67
      %p73 = scmp.eq.s32.totalorder %s28, 0
      %p74 = por %p72, %p73
      %p75 = scmp.ne.s32.totalorder %s64, %s67
      %p76 = scmp.eq.s32.totalorder %s33, 1
      %p77 = por %p75, %p76
      %p78 = scmp.ne.s32.totalorder %s67, %s68
      %p79 = scmp.eq.s32.totalorder %s33, 0
      %p80 = por %p78, %p79
      %p81 = scmp.ne.s32.totalorder %s67, %s68
      %p82 = scmp.eq.s32.totalorder %s34, 1
      %p83 = por %p81, %p82
      %p85 = scmp.ne.s32.totalorder %s68, %s84
      %p86 = scmp.eq.s32.totalorder %s34, 0
      %p87 = por %p85, %p86
      %s89 = sadd.s32 %s88, 1
      %p92 = scmp.eq.s32.totalorder %s28, 1
      %p93 = scmp.ne.s32.totalorder %s88, %s90
      %p94 = scmp.eq.s32.totalorder %s28, 0
      %p95 = por %p93, %p94
      %p96 = scmp.ne.s32.totalorder %s88, %s90
      %p97 = scmp.eq.s32.totalorder %s33, 1
      %p98 = por %p96, %p97
      %p99 = scmp.ne.s32.totalorder %s90, %s91
      %p100 = scmp.eq.s32.totalorder %s33, 0
      %p101 = por %p99, %p100
      %p102 = scmp.ne.s32.totalorder %s90, %s91
      %p103 = scmp.eq.s32.totalorder %s34, 1
      %p104 = por %p102, %p103
      %p106 = scmp.ne.s32.totalorder %s91, %s105
      %p107 = scmp.eq.s32.totalorder %s34, 0
      %p108 = por %p106, %p107
      %s110 = sadd.s32 %s109, 1
      %p113 = scmp.eq.s32.totalorder %s28, 1
      %p114 = scmp.ne.s32.totalorder %s109, %s111
      %p115 = scmp.eq.s32.totalorder %s28, 0
      %p116 = por %p114, %p115
      %p117 = scmp.ne.s32.totalorder %s109, %s111
      %p118 = scmp.eq.s32.totalorder %s33, 1
      %p119 = por %p117, %p118
      %p120 = scmp.ne.s32.totalorder %s111, %s112
      %p121 = scmp.eq.s32.totalorder %s33, 0
      %p122 = por %p120, %p121
      %p123 = scmp.ne.s32.totalorder %s111, %s112
      %p124 = scmp.eq.s32.totalorder %s34, 1
      %p125 = por %p123, %p124
      %p127 = scmp.ne.s32.totalorder %s112, %s126
      %p128 = scmp.eq.s32.totalorder %s34, 0
      %p129 = por %p127, %p128
      %s131 = sadd.s32 %s130, 1
      %p134 = scmp.eq.s32.totalorder %s28, 1
      %p135 = scmp.ne.s32.totalorder %s130, %s132
      %p136 = scmp.eq.s32.totalorder %s28, 0
      %p137 = por %p135, %p136
      %p138 = scmp.ne.s32.totalorder %s130, %s132
      %p139 = scmp.eq.s32.totalorder %s33, 1
      %p140 = por %p138, %p139
      %p141 = scmp.ne.s32.totalorder %s132, %s133
      %p142 = scmp.eq.s32.totalorder %s33, 0
      %p143 = por %p141, %p142
      %p144 = scmp.ne.s32.totalorder %s132, %s133
      %p145 = scmp.eq.s32.totalorder %s34, 1
      %p146 = por %p144, %p145
      %p148 = scmp.ne.s32.totalorder %s133, %s147
      %p149 = scmp.eq.s32.totalorder %s34, 0
      %p150 = por %p148, %p149
      %s152 = sadd.s32 %s151, 1
      %p155 = scmp.eq.s32.totalorder %s28, 1
      %p156 = scmp.ne.s32.totalorder %s151, %s153
      %p157 = scmp.eq.s32.totalorder %s28, 0
      %p158 = por %p156, %p157
      %p159 = scmp.ne.s32.totalorder %s151, %s153
      %p160 = scmp.eq.s32.totalorder %s33, 1
      %p161 = por %p159, %p160
      %p162 = scmp.ne.s32.totalorder %s153, %s154
      %p163 = scmp.eq.s32.totalorder %s33, 0
      %p164 = por %p162, %p163
      %p165 = scmp.ne.s32.totalorder %s153, %s154
      %p166 = scmp.eq.s32.totalorder %s34, 1
      %p167 = por %p165, %p166
      %p169 = scmp.ne.s32.totalorder %s154, %s168
      %p170 = scmp.eq.s32.totalorder %s34, 0
      %p171 = por %p169, %p170
      %s173 = sadd.s32 %s172, 1
      %p176 = scmp.eq.s32.totalorder %s28, 1
      %p177 = scmp.ne.s32.totalorder %s172, %s174
      %p178 = scmp.eq.s32.totalorder %s28, 0
      %p179 = por %p177, %p178
      %p180 = scmp.ne.s32.totalorder %s172, %s174
      %p181 = scmp.eq.s32.totalorder %s33, 1
      %p182 = por %p180, %p181
      %p183 = scmp.ne.s32.totalorder %s174, %s175
      %p184 = scmp.eq.s32.totalorder %s33, 0
      %p185 = por %p183, %p184
      %p186 = scmp.ne.s32.totalorder %s174, %s175
      %p187 = scmp.eq.s32.totalorder %s34, 1
      %p188 = por %p186, %p187
      %p190 = scmp.ne.s32.totalorder %s175, %s189
      %p191 = scmp.eq.s32.totalorder %s34, 0
      %p192 = por %p190, %p191
      %s194 = sadd.s32 %s193, 1
      %p197 = scmp.eq.s32.totalorder %s28, 1
      %p198 = scmp.ne.s32.totalorder %s193, %s195
      %p199 = scmp.eq.s32.totalorder %s28, 0
      %p200 = por %p198, %p199
      %p201 = scmp.ne.s32.totalorder %s193, %s195
      %p202 = scmp.eq.s32.totalorder %s33, 1
      %p203 = por %p201, %p202
      %p204 = scmp.ne.s32.totalorder %s195, %s196
      %p205 = scmp.eq.s32.totalorder %s33, 0
      %p206 = por %p204, %p205
      %p207 = scmp.ne.s32.totalorder %s195, %s196
      %p208 = scmp.eq.s32.totalorder %s34, 1
      %p209 = por %p207, %p208
      %p211 = scmp.ne.s32.totalorder %s196, %s210
      %p212 = scmp.eq.s32.totalorder %s34, 0
      %p213 = por %p211, %p212
      %s215 = sadd.s32 %s214, 1
      %p218 = scmp.eq.s32.totalorder %s28, 1
      %p219 = scmp.ne.s32.totalorder %s214, %s216
      %p220 = scmp.eq.s32.totalorder %s28, 0
      %p221 = por %p219, %p220
      %p222 = scmp.ne.s32.totalorder %s214, %s216
      %p223 = scmp.eq.s32.totalorder %s33, 1
      %p224 = por %p222, %p223
      %p225 = scmp.ne.s32.totalorder %s216, %s217
      %p226 = scmp.eq.s32.totalorder %s33, 0
      %p227 = por %p225, %p226
      %p228 = scmp.ne.s32.totalorder %s216, %s217
      %p229 = scmp.eq.s32.totalorder %s34, 1
      %p230 = por %p228, %p229
      %p232 = scmp.ne.s32.totalorder %s217, %s231
      %p233 = scmp.eq.s32.totalorder %s34, 0
      %p234 = por %p232, %p233
      %s236 = sadd.s32 %s235, 1
      %p239 = scmp.eq.s32.totalorder %s28, 1
      %p240 = scmp.ne.s32.totalorder %s235, %s237
      %p241 = scmp.eq.s32.totalorder %s28, 0
      %p242 = por %p240, %p241
      %p243 = scmp.ne.s32.totalorder %s235, %s237
      %p244 = scmp.eq.s32.totalorder %s33, 1
      %p245 = por %p243, %p244
      %p246 = scmp.ne.s32.totalorder %s237, %s238
      %p247 = scmp.eq.s32.totalorder %s33, 0
      %p248 = por %p246, %p247
      %p249 = scmp.ne.s32.totalorder %s237, %s238
      %p250 = scmp.eq.s32.totalorder %s34, 1
      %p251 = por %p249, %p250
      %p253 = scmp.ne.s32.totalorder %s238, %s252
      %p254 = scmp.eq.s32.totalorder %s34, 0
      %p255 = por %p253, %p254
      %s257 = sadd.s32 %s256, 1
      %p260 = scmp.eq.s32.totalorder %s28, 1
      %p261 = scmp.ne.s32.totalorder %s256, %s258
      %p262 = scmp.eq.s32.totalorder %s28, 0
      %p263 = por %p261, %p262
      %p264 = scmp.ne.s32.totalorder %s256, %s258
      %p265 = scmp.eq.s32.totalorder %s33, 1
      %p266 = por %p264, %p265
      %p267 = scmp.ne.s32.totalorder %s258, %s259
      %p268 = scmp.eq.s32.totalorder %s33, 0
      %p269 = por %p267, %p268
      %p270 = scmp.ne.s32.totalorder %s258, %s259
      %p271 = scmp.eq.s32.totalorder %s34, 1
      %p272 = por %p270, %p271
      %p274 = scmp.ne.s32.totalorder %s259, %s273
      %p275 = scmp.eq.s32.totalorder %s34, 0
      %p276 = por %p274, %p275
      %s278 = sadd.s32 %s277, 1
      %p281 = scmp.eq.s32.totalorder %s28, 1
      %p282 = scmp.ne.s32.totalorder %s277, %s279
      %p283 = scmp.eq.s32.totalorder %s28, 0
      %p284 = por %p282, %p283
      %p285 = scmp.ne.s32.totalorder %s277, %s279
      %p286 = scmp.eq.s32.totalorder %s33, 1
      %p287 = por %p285, %p286
      %p288 = scmp.ne.s32.totalorder %s279, %s280
      %p289 = scmp.eq.s32.totalorder %s33, 0
      %p290 = por %p288, %p289
      %p291 = scmp.ne.s32.totalorder %s279, %s280
      %p292 = scmp.eq.s32.totalorder %s34, 1
      %p293 = por %p291, %p292
      %p295 = scmp.ne.s32.totalorder %s280, %s294
      %p296 = scmp.eq.s32.totalorder %s34, 0
      %p297 = por %p295, %p296
      %s299 = sadd.s32 %s298, 1
      %p302 = scmp.eq.s32.totalorder %s28, 1
      %p303 = scmp.ne.s32.totalorder %s298, %s300
      %p304 = scmp.eq.s32.totalorder %s28, 0
      %p305 = por %p303, %p304
      %p306 = scmp.ne.s32.totalorder %s298, %s300
      %p307 = scmp.eq.s32.totalorder %s33, 1
      %p308 = por %p306, %p307
      %p309 = scmp.ne.s32.totalorder %s300, %s301
      %p310 = scmp.eq.s32.totalorder %s33, 0
      %p311 = por %p309, %p310
      %p312 = scmp.ne.s32.totalorder %s300, %s301
      %p313 = scmp.eq.s32.totalorder %s34, 1
      %p314 = por %p312, %p313
      %p316 = scmp.ne.s32.totalorder %s301, %s315
      %p317 = scmp.eq.s32.totalorder %s34, 0
      %p318 = por %p316, %p317
      %s320 = sadd.s32 %s319, 1
      %p323 = scmp.eq.s32.totalorder %s28, 1
      %p324 = scmp.ne.s32.totalorder %s319, %s321
      %p325 = scmp.eq.s32.totalorder %s28, 0
      %p326 = por %p324, %p325
      %p327 = scmp.ne.s32.totalorder %s319, %s321
      %p328 = scmp.eq.s32.totalorder %s33, 1
      %p329 = por %p327, %p328
      %p330 = scmp.ne.s32.totalorder %s321, %s322
      %p331 = scmp.eq.s32.totalorder %s33, 0
      %p332 = por %p330, %p331
      %p333 = scmp.ne.s32.totalorder %s321, %s322
      %p334 = scmp.eq.s32.totalorder %s34, 1
      %p335 = por %p333, %p334
      %p337 = scmp.ne.s32.totalorder %s322, %s336
      %p338 = scmp.eq.s32.totalorder %s34, 0
      %p339 = por %p337, %p338
      %s341 = sadd.s32 %s340, 1
      %p344 = scmp.eq.s32.totalorder %s28, 1
      %p345 = scmp.ne.s32.totalorder %s340, %s342
      %p346 = scmp.eq.s32.totalorder %s28, 0
      %p347 = por %p345, %p346
      %p348 = scmp.ne.s32.totalorder %s340, %s342
      %p349 = scmp.eq.s32.totalorder %s33, 1
      %p350 = por %p348, %p349
      %p351 = scmp.ne.s32.totalorder %s342, %s343
      %p352 = scmp.eq.s32.totalorder %s33, 0
      %p353 = por %p351, %p352
      %p354 = scmp.ne.s32.totalorder %s342, %s343
      %p355 = scmp.eq.s32.totalorder %s34, 1
      %p356 = por %p354, %p355
      %p358 = scmp.ne.s32.totalorder %s343, %s357
      %p359 = scmp.eq.s32.totalorder %s34, 0
      %p360 = por %p358, %p359
      %s362 = sadd.s32 %s361, 1
      %p365 = scmp.eq.s32.totalorder %s28, 1
      %p366 = scmp.ne.s32.totalorder %s361, %s363
      %p367 = scmp.eq.s32.totalorder %s28, 0
      %p368 = por %p366, %p367
      %p369 = scmp.ne.s32.totalorder %s361, %s363
      %p370 = scmp.eq.s32.totalorder %s33, 1
      %p371 = por %p369, %p370
      %p372 = scmp.ne.s32.totalorder %s363, %s364
      %p373 = scmp.eq.s32.totalorder %s33, 0
      %p374 = por %p372, %p373
      %p375 = scmp.ne.s32.totalorder %s363, %s364
      %p376 = scmp.eq.s32.totalorder %s34, 1
      %p377 = por %p375, %p376
      %p379 = scmp.ne.s32.totalorder %s364, %s378
      %p380 = scmp.eq.s32.totalorder %s34, 0
      %p381 = por %p379, %p380
      %s383 = sadd.s32 %s382, 1
      %p386 = scmp.eq.s32.totalorder %s28, 1
      %p387 = scmp.ne.s32.totalorder %s382, %s384
      %p388 = scmp.eq.s32.totalorder %s28, 0
      %p389 = por %p387, %p388
      %p390 = scmp.ne.s32.totalorder %s382, %s384
      %p391 = scmp.eq.s32.totalorder %s33, 1
      %p392 = por %p390, %p391
      %p393 = scmp.ne.s32.totalorder %s384, %s385
      %p394 = scmp.eq.s32.totalorder %s33, 0
      %p395 = por %p393, %p394
      %p396 = scmp.ne.s32.totalorder %s384, %s385
      %p397 = scmp.eq.s32.totalorder %s34, 1
      %p398 = por %p396, %p397
      %p400 = scmp.ne.s32.totalorder %s385, %s399
      %p401 = scmp.eq.s32.totalorder %s34, 0
      %p402 = por %p400, %p401
      %s403 = ssub.s32 %s28, %s35
      %p404 = scmp.eq.s32.totalorder %s403, 0
      %s406 = sadd.s32 %s405, 1
      %s407 = scalar_select %p404, %s405, %s406
      %p410 = pneg %p404
      %p411 = scmp.eq.s32.totalorder %s28, 1
      %p412 = por %p410, %p411
      %p413 = scmp.ne.s32.totalorder %s405, %s408
      %p414 = scmp.eq.s32.totalorder %s28, 0
      %p415 = por %p413, %p414
      %p416 = scmp.ne.s32.totalorder %s405, %s408
      %p417 = scmp.eq.s32.totalorder %s33, 1
      %p418 = por %p416, %p417
      %p419 = scmp.ne.s32.totalorder %s408, %s409
      %p420 = scmp.eq.s32.totalorder %s33, 0
      %p421 = por %p419, %p420
      %p422 = scmp.ne.s32.totalorder %s408, %s409
      %p423 = scmp.eq.s32.totalorder %s34, 1
      %p424 = por %p422, %p423
      %p426 = scmp.ne.s32.totalorder %s409, %s425
      %p427 = scmp.eq.s32.totalorder %s34, 0
      %p428 = por %p426, %p427
      %p429 = scmp.le.s32.totalorder 1, %s28
      %p430 = scmp.lt.s32.totalorder %s28, 3
      %p431 = pnand %p429, %p430
      %p432 = pneg %p431
      // Predicated region
      $region9: #{tpu_custom_call.1} parent=5 // pred_check
        _
      $region10: #{tpu_custom_call.1} parent=5 // pred_check_branch
        %434 = sbr.rel (%p431) target = $region12
      $region11: #{tpu_custom_call.1} parent=5 // pred_region
        %s435 = ssub.s32 %s28, 1
        // Predicated region
        $region13: #{tpu_custom_call.1} parent=11 // pred_check
          %p436 = pneg %p101
        $region14: #{tpu_custom_call.1} parent=11 // pred_check_branch
          %438 = sbr.rel (%p436) target = $region16
        $region15: #{tpu_custom_call.1} parent=11 // pred_region
          %s440 = ssub.s32 16, 16
          %441 = vsyncadd [#allocation3], %s440
          %s443 = sshll.u32 [#allocation2], 4
          %s444 = int_to_ptr.vmem [resolvable:$true] %s443
          %446 = dma.hbm_to_vmem [thread:$0]  %s2, 16, %s444, [#allocation3]
        $region16: #{tpu_custom_call.1} parent=11 // pred_fallthru
          _
        // Predicated region
        $region17: #{tpu_custom_call.1} parent=11 // pred_check
          %p447 = pneg %p122
        $region18: #{tpu_custom_call.1} parent=11 // pred_check_branch
          %449 = sbr.rel (%p447) target = $region20
        $region19: #{tpu_custom_call.1} parent=11 // pred_region
          %s451 = ssub.s32 16, 16
          %452 = vsyncadd [#allocation6], %s451
          %s454 = sshll.u32 [#allocation5], 4
          %s455 = int_to_ptr.vmem [resolvable:$true] %s454
          %457 = dma.hbm_to_vmem [thread:$0]  %s3, 16, %s455, [#allocation6]
        $region20: #{tpu_custom_call.1} parent=11 // pred_fallthru
          _
        // Predicated region
        $region21: #{tpu_custom_call.1} parent=11 // pred_check
          %p458 = pneg %p143
        $region22: #{tpu_custom_call.1} parent=11 // pred_check_branch
          %460 = sbr.rel (%p458) target = $region24
        $region23: #{tpu_custom_call.1} parent=11 // pred_region
          _
        $region24: #{tpu_custom_call.1} parent=11 // pred_fallthru
          _
        // Predicated region
        $region25: #{tpu_custom_call.1} parent=11 // pred_check
          %p461 = pneg %p164
        $region26: #{tpu_custom_call.1} parent=11 // pred_check_branch
          %463 = sbr.rel (%p461) target = $region28
        $region27: #{tpu_custom_call.1} parent=11 // pred_region
          _
        $region28: #{tpu_custom_call.1} parent=11 // pred_fallthru
          _
        // Predicated region
        $region29: #{tpu_custom_call.1} parent=11 // pred_check
          %p464 = pneg %p185
        $region30: #{tpu_custom_call.1} parent=11 // pred_check_branch
          %466 = sbr.rel (%p464) target = $region32
        $region31: #{tpu_custom_call.1} parent=11 // pred_region
          _
        $region32: #{tpu_custom_call.1} parent=11 // pred_fallthru
          _
        // Predicated region
        $region33: #{tpu_custom_call.1} parent=11 // pred_check
          %p467 = pneg %p206
        $region34: #{tpu_custom_call.1} parent=11 // pred_check_branch
          %469 = sbr.rel (%p467) target = $region36
        $region35: #{tpu_custom_call.1} parent=11 // pred_region
          _
        $region36: #{tpu_custom_call.1} parent=11 // pred_fallthru
          _
        // Predicated region
        $region37: #{tpu_custom_call.1} parent=11 // pred_check
          %p470 = pneg %p227
        $region38: #{tpu_custom_call.1} parent=11 // pred_check_branch
          %472 = sbr.rel (%p470) target = $region40
        $region39: #{tpu_custom_call.1} parent=11 // pred_region
          %s474 = ssub.s32 16, 16
          %475 = vsyncadd [#allocation6], %s474
          %s477 = sshll.u32 [#allocation7], 4
          %s478 = int_to_ptr.vmem [resolvable:$true] %s477
          %480 = dma.hbm_to_vmem [thread:$0]  %s8, 16, %s478, [#allocation6]
        $region40: #{tpu_custom_call.1} parent=11 // pred_fallthru
          _
        // Predicated region
        $region41: #{tpu_custom_call.1} parent=11 // pred_check
          %p481 = pneg %p248
        $region42: #{tpu_custom_call.1} parent=11 // pred_check_branch
          %483 = sbr.rel (%p481) target = $region44
        $region43: #{tpu_custom_call.1} parent=11 // pred_region
          _
        $region44: #{tpu_custom_call.1} parent=11 // pred_fallthru
          _
        // Predicated region
        $region45: #{tpu_custom_call.1} parent=11 // pred_check
          %p484 = pneg %p269
        $region46: #{tpu_custom_call.1} parent=11 // pred_check_branch
          %486 = sbr.rel (%p484) target = $region48
        $region47: #{tpu_custom_call.1} parent=11 // pred_region
          _
        $region48: #{tpu_custom_call.1} parent=11 // pred_fallthru
          _
        // Predicated region
        $region49: #{tpu_custom_call.1} parent=11 // pred_check
          %p487 = pneg %p290
        $region50: #{tpu_custom_call.1} parent=11 // pred_check_branch
          %489 = sbr.rel (%p487) target = $region52
        $region51: #{tpu_custom_call.1} parent=11 // pred_region
          _
        $region52: #{tpu_custom_call.1} parent=11 // pred_fallthru
          _
        // Predicated region
        $region53: #{tpu_custom_call.1} parent=11 // pred_check
          %p490 = pneg %p311
        $region54: #{tpu_custom_call.1} parent=11 // pred_check_branch
          %492 = sbr.rel (%p490) target = $region56
        $region55: #{tpu_custom_call.1} parent=11 // pred_region
          _
        $region56: #{tpu_custom_call.1} parent=11 // pred_fallthru
          _
        // Predicated region
        $region57: #{tpu_custom_call.1} parent=11 // pred_check
          %p493 = pneg %p332
        $region58: #{tpu_custom_call.1} parent=11 // pred_check_branch
          %495 = sbr.rel (%p493) target = $region60
        $region59: #{tpu_custom_call.1} parent=11 // pred_region
          _
        $region60: #{tpu_custom_call.1} parent=11 // pred_fallthru
          _
        // Predicated region
        $region61: #{tpu_custom_call.1} parent=11 // pred_check
          %p496 = pneg %p353
        $region62: #{tpu_custom_call.1} parent=11 // pred_check_branch
          %498 = sbr.rel (%p496) target = $region64
        $region63: #{tpu_custom_call.1} parent=11 // pred_region
          _
        $region64: #{tpu_custom_call.1} parent=11 // pred_fallthru
          _
        // Predicated region
        $region65: #{tpu_custom_call.1} parent=11 // pred_check
          %p499 = pneg %p374
        $region66: #{tpu_custom_call.1} parent=11 // pred_check_branch
          %501 = sbr.rel (%p499) target = $region68
        $region67: #{tpu_custom_call.1} parent=11 // pred_region
          _
        $region68: #{tpu_custom_call.1} parent=11 // pred_fallthru
          _
        // Predicated region
        $region69: #{tpu_custom_call.1} parent=11 // pred_check
          %p502 = pneg %p395
        $region70: #{tpu_custom_call.1} parent=11 // pred_check_branch
          %504 = sbr.rel (%p502) target = $region72
        $region71: #{tpu_custom_call.1} parent=11 // pred_region
          _
        $region72: #{tpu_custom_call.1} parent=11 // pred_fallthru
          _
      $region12: #{tpu_custom_call.1} parent=5 // pred_fallthru
        _
      %p505 = scmp.lt.s32.totalorder %s28, 2
      // Predicated region
      $region73: #{tpu_custom_call.1} parent=5 // pred_check
        %p506 = pneg %p505
      $region74: #{tpu_custom_call.1} parent=5 // pred_check_branch
        %508 = sbr.rel (%p506) target = $region76
      $region75: #{tpu_custom_call.1} parent=5 // pred_region
        // Predicated region
        $region77: #{tpu_custom_call.1} parent=75 // pred_check
          %p509 = pneg %p48
        $region78: #{tpu_custom_call.1} parent=75 // pred_check_branch
          %511 = sbr.rel (%p509) target = $region80
        $region79: #{tpu_custom_call.1} parent=75 // pred_region
          %p512 = scmp.lt.s32.totalorder %s28, 1
          %s513 = scalar_select %p512, %s28, 1
          %s514 = smul.addr %s513, 2
          %s515 = scalar_lea.vmem %s0, %s514
        $region80: #{tpu_custom_call.1} parent=75 // pred_fallthru
          _
        // Predicated region
        $region81: #{tpu_custom_call.1} parent=75 // pred_check
          %p516 = pneg %p74
        $region82: #{tpu_custom_call.1} parent=75 // pred_check_branch
          %518 = sbr.rel (%p516) target = $region84
        $region83: #{tpu_custom_call.1} parent=75 // pred_region
          %s519 = smul.u32 2, %s28
          %p520 = scmp.lt.s32.totalorder %s519, 3
          %s521 = scalar_select %p520, %s519, 3
          %s522 = smul.addr %s521, 2
          %s523 = smul.addr %s522, 8
          %s524 = scalar_lea.vmem %s1, %s523
          %s525 = smul.u32 2, %s28
        $region84: #{tpu_custom_call.1} parent=75 // pred_fallthru
          _
      $region76: #{tpu_custom_call.1} parent=5 // pred_fallthru
        _
      %p526 = scmp.le.s32.totalorder 1, %s28
      %p527 = scmp.lt.s32.totalorder %s28, 3
      %p528 = pnand %p526, %p527
      %p529 = pneg %p528
      // Predicated region
      $region85: #{tpu_custom_call.1} parent=5 // pred_check
        _
      $region86: #{tpu_custom_call.1} parent=5 // pred_check_branch
        %531 = sbr.rel (%p528) target = $region88
      $region87: #{tpu_custom_call.1} parent=5 // pred_region
        %s532 = ssub.s32 %s28, 1
        // Predicated region
        $region89: #{tpu_custom_call.1} parent=87 // pred_check
          %p533 = pneg %p101
        $region90: #{tpu_custom_call.1} parent=87 // pred_check_branch
          %535 = sbr.rel (%p533) target = $region92
        $region91: #{tpu_custom_call.1} parent=87 // pred_region
          %536 = dma.done [#allocation3], 16
        $region92: #{tpu_custom_call.1} parent=87 // pred_fallthru
          _
        // Predicated region
        $region93: #{tpu_custom_call.1} parent=87 // pred_check
          %p537 = pneg %p122
        $region94: #{tpu_custom_call.1} parent=87 // pred_check_branch
          %539 = sbr.rel (%p537) target = $region96
        $region95: #{tpu_custom_call.1} parent=87 // pred_region
          %540 = dma.done [#allocation6], 16
        $region96: #{tpu_custom_call.1} parent=87 // pred_fallthru
          _
        // Predicated region
        $region97: #{tpu_custom_call.1} parent=87 // pred_check
          %p541 = pneg %p227
        $region98: #{tpu_custom_call.1} parent=87 // pred_check_branch
          %543 = sbr.rel (%p541) target = $region100
        $region99: #{tpu_custom_call.1} parent=87 // pred_region
          %544 = dma.done [#allocation6], 16
        $region100: #{tpu_custom_call.1} parent=87 // pred_fallthru
          _
        %p545 = scmp.lt.s32.totalorder %s33, 1
        %s546 = scalar_select %p545, %s33, 1
        %s547 = smul.addr %s546, 2
        %s548 = scalar_lea.vmem %s0, %s547
        %p549 = pneg %p54
        %p550 = pneg %p51
        %s551 = smul.u32 2, %s33
        %p552 = scmp.lt.s32.totalorder %s551, 3
        %s553 = scalar_select %p552, %s551, 3
        %s554 = smul.addr %s553, 2
        %s555 = smul.addr %s554, 8
        %s556 = scalar_lea.vmem %s1, %s555
        %p557 = pneg %p80
        %p558 = pneg %p77
        %p559 = pneg %p101
        %p560 = pneg %p98
        %p561 = pneg %p122
        %p562 = pneg %p119
        %p563 = pneg %p143
        %p564 = pneg %p140
        %p565 = pneg %p164
        %p566 = pneg %p161
        %p567 = pneg %p185
        %p568 = pneg %p182
        %p569 = pneg %p206
        %p570 = pneg %p203
        %p571 = pneg %p227
        %p572 = pneg %p224
        %p573 = pneg %p248
        %p574 = pneg %p245
        %p575 = pneg %p269
        %p576 = pneg %p266
        %p577 = pneg %p290
        %p578 = pneg %p287
        %p579 = pneg %p311
        %p580 = pneg %p308
        %p581 = pneg %p332
        %p582 = pneg %p329
        %p583 = pneg %p353
        %p584 = pneg %p350
        %p585 = pneg %p374
        %p586 = pneg %p371
        %p587 = pneg %p395
        %p588 = pneg %p392
        %p589 = pneg %p421
        %p590 = pneg %p418
        %s591 = sand.u32 %s408, 1
        %s592 = scalar_lea.sflag [#allocation4], %s591
        %s593 = sand.u32 %s408, 1
        %s594 = smul.addr %s593, 2
        %s595 = scalar_lea.vmem [#allocation8], %s594
        %p596 = scmp.lt.s32.totalorder %s33, 1
        %s597 = scalar_select %p596, %s33, 1
        %s598 = smul.addr %s597, 2
        %s599 = scalar_lea.vmem %s0, %s598
        %s600 = smul.u32 2, %s33
        %p601 = scmp.lt.s32.totalorder %s600, 3
        %s602 = scalar_select %p601, %s600, 3
        %s603 = smul.addr %s602, 2
        %s604 = smul.addr %s603, 8
        %s605 = scalar_lea.vmem %s1, %s604
        %s606 = smul.u32 2, %s33
        %v607 = vld [vmem:[%s599] sm:$0x3]
        %v608 = vld [vmem:[%s605] sm:$0xff]
        %v609 = vld [vmem:[%s605 + $0x8] sm:$0xff]
        %v610 = vld [vmem:[%s605 + $0x10] sm:$0xff]
        %v611 = vld [vmem:[%s605 + $0x18] sm:$0xff]
        %v612 = vld [vmem:[#allocation2] sm:$0x1]
        %v613 = vld [vmem:[#allocation5] sm:$0x1]
        %vm614 = vcmask 517120
        %v615 = vsel %vm614, %v607, 0.0
        %616 = vadd.xlane.f32.xlu0 %v615
        %v617 = vpop.xlane.xlu0 %616
        %v618 = vrcp.pop 64.0
        %v619 = vmul.f32 %v617, %v618
        %v620 = vsub.f32 %v607, %v619
        %v621 = vmul.f32 %v620, %v620
        %v622 = vsel %vm614, %v621, 0.0
        %623 = vadd.xlane.f32.xlu0 %v622
        %v624 = vpop.xlane.xlu0 %623
        %v625 = vmul.f32 %v624, %v618
        %v626 = vadd.f32 %v625, 1e-05
        %v627 = vrsqrt.pop %v626
        %v628 = vmul.f32 %v620, %v627
        %v630 = vlaneseq
        %v631 = vshrl.u32 %v630, 7
        %v632 = vsub.s32 0, %v631
        %v633 = vrot.slane %v612, %v632
        %v635 = vmul.f32 %v628, %v633
        %v637 = vlaneseq
        %v638 = vshrl.u32 %v637, 7
        %v639 = vsub.s32 0, %v638
        %v640 = vrot.slane %v613, %v639
        %v642 = vadd.f32 %v635, %v640
        %vm643 = vcmask 523264
        %v644 = vsel %vm643, %v608, 0.0
        %645 = vadd.xlane.f32.xlu0 %v644
        %v646 = vpop.xlane.xlu0 %645
        %v647 = vsel %vm643, %v609, 0.0
        %648 = vadd.xlane.f32.xlu0 %v647
        %v649 = vpop.xlane.xlu0 %648
        %v650 = vsel %vm643, %v610, 0.0
        %651 = vadd.xlane.f32.xlu0 %v650
        %v652 = vpop.xlane.xlu0 %651
        %v653 = vsel %vm643, %v611, 0.0
        %654 = vadd.xlane.f32.xlu0 %v653
        %v655 = vpop.xlane.xlu0 %654
        %v656 = vmul.f32 %v646, %v618
        %v657 = vmul.f32 %v649, %v618
        %v658 = vmul.f32 %v652, %v618
        %v659 = vmul.f32 %v655, %v618
        %v660 = vsub.f32 %v608, %v656
        %v661 = vsub.f32 %v609, %v657
        %v662 = vsub.f32 %v610, %v658
        %v663 = vsub.f32 %v611, %v659
        %v664 = vmul.f32 %v660, %v660
        %v665 = vmul.f32 %v661, %v661
        %v666 = vmul.f32 %v662, %v662
        %v667 = vmul.f32 %v663, %v663
        %v668 = vsel %vm643, %v664, 0.0
        %669 = vadd.xlane.f32.xlu0 %v668
        %v670 = vpop.xlane.xlu0 %669
        %v671 = vsel %vm643, %v665, 0.0
        %672 = vadd.xlane.f32.xlu0 %v671
        %v673 = vpop.xlane.xlu0 %672
        %v674 = vsel %vm643, %v666, 0.0
        %675 = vadd.xlane.f32.xlu0 %v674
        %v676 = vpop.xlane.xlu0 %675
        %v677 = vsel %vm643, %v667, 0.0
        %678 = vadd.xlane.f32.xlu0 %v677
        %v679 = vpop.xlane.xlu0 %678
        %v680 = vmul.f32 %v670, %v618
        %v681 = vmul.f32 %v673, %v618
        %v682 = vmul.f32 %v676, %v618
        %v683 = vmul.f32 %v679, %v618
        %v684 = vadd.f32 %v680, 1e-05
        %v685 = vadd.f32 %v681, 1e-05
        %v686 = vadd.f32 %v682, 1e-05
        %v687 = vadd.f32 %v683, 1e-05
        %v688 = vrsqrt.pop %v684
        %v689 = vrsqrt.pop %v685
        %v690 = vrsqrt.pop %v686
        %v691 = vrsqrt.pop %v687
        %v692 = vmul.f32 %v660, %v688
        %v693 = vmul.f32 %v661, %v689
        %v694 = vmul.f32 %v662, %v690
        %v695 = vmul.f32 %v663, %v691
        %v696 = vmul.f32 %v692, %v633
        %v697 = vmul.f32 %v693, %v633
        %v698 = vmul.f32 %v694, %v633
        %v699 = vmul.f32 %v695, %v633
        %v700 = vadd.f32 %v696, %v640
        %v701 = vadd.f32 %v697, %v640
        %v702 = vadd.f32 %v698, %v640
        %v703 = vadd.f32 %v699, %v640
        %v704 = vld [vmem:[%s4] sm:$0xff]
        %v705 = vld [vmem:[%s4 + $0x8] sm:$0xff]
        %v706 = vld [vmem:[%s4 + $0x10] sm:$0xff]
        %v707 = vld [vmem:[%s4 + $0x18] sm:$0xff]
        %v708 = vld [vmem:[%s4 + $0x20] sm:$0xff]
        %v709 = vld [vmem:[%s4 + $0x28] sm:$0xff]
        %v710 = vld [vmem:[%s4 + $0x30] sm:$0xff]
        %v711 = vld [vmem:[%s4 + $0x38] sm:$0xff]
        %v713 = vsel %vm643, %v642, 0
        %715 = vmatprep.subr.mxu0 0.0
        %716 = vmatpush1.msra.mxu0 0.0
        %717 = vmatprep.subr.mxu0 0.0
        %718 = vmatpush1.msra.mxu0 0.0
        %719 = vmatprep.subr.mxu0 0.0
        %720 = vmatpush1.msra.mxu0 0.0
        %721 = vmatprep.subr.mxu0 0.0
        %722 = vmatpush1.msra.mxu0 0.0
        %723 = vmatprep.subr.mxu0 0.0
        %724 = vmatpush1.msra.mxu0 0.0
        %725 = vmatprep.subr.mxu0 0.0
        %726 = vmatpush1.msra.mxu0 0.0
        %727 = vmatprep.subr.mxu0 0.0
        %728 = vmatpush1.msra.mxu0 0.0
        %729 = vmatprep.subr.mxu0 0.0
        %730 = vmatpush1.msra.mxu0 0.0
        %731 = vmatprep.subr.mxu0 0.0
        %732 = vmatpush1.msra.mxu0 %v711
        %733 = vmatprep.subr.mxu0 0.0
        %734 = vmatpush1.msra.mxu0 %v710
        %735 = vmatprep.subr.mxu0 0.0
        %736 = vmatpush1.msra.mxu0 %v709
        %737 = vmatprep.subr.mxu0 0.0
        %738 = vmatpush1.msra.mxu0 %v708
        %739 = vmatprep.subr.mxu0 0.0
        %740 = vmatpush1.msra.mxu0 %v707
        %741 = vmatprep.subr.mxu0 0.0
        %742 = vmatpush1.msra.mxu0 %v706
        %743 = vmatprep.subr.mxu0 0.0
        %744 = vmatpush1.msra.mxu0 %v705
        %745 = vmatprep.subr.mxu0 0.0
        %746 = vmatpush1.msra.mxu0 %v704
        %747 = vmatprep.subr.mxu0 0.0
        %748 = vmatpush2.msra.mxu0 0.0
        %749 = vmatprep.subr.mxu0 0.0
        %750 = vmatpush2.msra.mxu0 0.0
        %751 = vmatprep.subr.mxu0 0.0
        %752 = vmatpush2.msra.mxu0 0.0
        %753 = vmatprep.subr.mxu0 0.0
        %754 = vmatpush2.msra.mxu0 0.0
        %755 = vmatprep.subr.mxu0 0.0
        %756 = vmatpush2.msra.mxu0 0.0
        %757 = vmatprep.subr.mxu0 0.0
        %758 = vmatpush2.msra.mxu0 0.0
        %759 = vmatprep.subr.mxu0 0.0
        %760 = vmatpush2.msra.mxu0 0.0
        %761 = vmatprep.subr.mxu0 0.0
        %762 = vmatpush2.msra.mxu0 0.0
        %763 = vmatprep.subr.mxu0 0.0
        %764 = vmatpush2.msra.mxu0 0.0
        %765 = vmatprep.subr.mxu0 0.0
        %766 = vmatpush2.msra.mxu0 0.0
        %767 = vmatprep.subr.mxu0 0.0
        %768 = vmatpush2.msra.mxu0 0.0
        %769 = vmatprep.subr.mxu0 0.0
        %770 = vmatpush2.msra.mxu0 0.0
        %771 = vmatprep.subr.mxu0 0.0
        %772 = vmatpush2.msra.mxu0 0.0
        %773 = vmatprep.subr.mxu0 0.0
        %774 = vmatpush2.msra.mxu0 0.0
        %775 = vmatprep.subr.mxu0 0.0
        %776 = vmatpush2.msra.mxu0 0.0
        %777 = vmatprep.subr.mxu0 0.0
        %778 = vmatpush2.msra.mxu0 0.0
        %779 = vmatprep.mubr.f32.mxu0 0.0
        %780 = vmatmul.mubr.f32.gmra.mxu0 %v713
        %v781 = vpop.f32.mrf.mxu0
        %v782 = vadd.f32 0.0, %v781
        %v783 = vpop.f32.mrf.mxu0
        %784 = vdwg.mxu0
        %v785 = vld [vmem:[%s5] sm:$0xff]
        %v786 = vld [vmem:[%s5 + $0x8] sm:$0xff]
        %v787 = vld [vmem:[%s5 + $0x10] sm:$0xff]
        %v788 = vld [vmem:[%s5 + $0x18] sm:$0xff]
        %v789 = vld [vmem:[%s5 + $0x20] sm:$0xff]
        %v790 = vld [vmem:[%s5 + $0x28] sm:$0xff]
        %v791 = vld [vmem:[%s5 + $0x30] sm:$0xff]
        %v792 = vld [vmem:[%s5 + $0x38] sm:$0xff]
        %v794 = vsel %vm643, %v700, 0
        %v797 = vsel %vm643, %v701, 0
        %v800 = vsel %vm643, %v702, 0
        %v803 = vsel %vm643, %v703, 0
        %805 = vmatprep.subr.mxu0 0.0
        %806 = vmatpush1.msra.mxu0 0.0
        %807 = vmatprep.subr.mxu0 0.0
        %808 = vmatpush1.msra.mxu0 0.0
        %809 = vmatprep.subr.mxu0 0.0
        %810 = vmatpush1.msra.mxu0 0.0
        %811 = vmatprep.subr.mxu0 0.0
        %812 = vmatpush1.msra.mxu0 0.0
        %813 = vmatprep.subr.mxu0 0.0
        %814 = vmatpush1.msra.mxu0 0.0
        %815 = vmatprep.subr.mxu0 0.0
        %816 = vmatpush1.msra.mxu0 0.0
        %817 = vmatprep.subr.mxu0 0.0
        %818 = vmatpush1.msra.mxu0 0.0
        %819 = vmatprep.subr.mxu0 0.0
        %820 = vmatpush1.msra.mxu0 0.0
        %821 = vmatprep.subr.mxu0 0.0
        %822 = vmatpush1.msra.mxu0 %v792
        %823 = vmatprep.subr.mxu0 0.0
        %824 = vmatpush1.msra.mxu0 %v791
        %825 = vmatprep.subr.mxu0 0.0
        %826 = vmatpush1.msra.mxu0 %v790
        %827 = vmatprep.subr.mxu0 0.0
        %828 = vmatpush1.msra.mxu0 %v789
        %829 = vmatprep.subr.mxu0 0.0
        %830 = vmatpush1.msra.mxu0 %v788
        %831 = vmatprep.subr.mxu0 0.0
        %832 = vmatpush1.msra.mxu0 %v787
        %833 = vmatprep.subr.mxu0 0.0
        %834 = vmatpush1.msra.mxu0 %v786
        %835 = vmatprep.subr.mxu0 0.0
        %836 = vmatpush1.msra.mxu0 %v785
        %837 = vmatprep.subr.mxu0 0.0
        %838 = vmatpush2.msra.mxu0 0.0
        %839 = vmatprep.subr.mxu0 0.0
        %840 = vmatpush2.msra.mxu0 0.0
        %841 = vmatprep.subr.mxu0 0.0
        %842 = vmatpush2.msra.mxu0 0.0
        %843 = vmatprep.subr.mxu0 0.0
        %844 = vmatpush2.msra.mxu0 0.0
        %845 = vmatprep.subr.mxu0 0.0
        %846 = vmatpush2.msra.mxu0 0.0
        %847 = vmatprep.subr.mxu0 0.0
        %848 = vmatpush2.msra.mxu0 0.0
        %849 = vmatprep.subr.mxu0 0.0
        %850 = vmatpush2.msra.mxu0 0.0
        %851 = vmatprep.subr.mxu0 0.0
        %852 = vmatpush2.msra.mxu0 0.0
        %853 = vmatprep.subr.mxu0 0.0
        %854 = vmatpush2.msra.mxu0 0.0
        %855 = vmatprep.subr.mxu0 0.0
        %856 = vmatpush2.msra.mxu0 0.0
        %857 = vmatprep.subr.mxu0 0.0
        %858 = vmatpush2.msra.mxu0 0.0
        %859 = vmatprep.subr.mxu0 0.0
        %860 = vmatpush2.msra.mxu0 0.0
        %861 = vmatprep.subr.mxu0 0.0
        %862 = vmatpush2.msra.mxu0 0.0
        %863 = vmatprep.subr.mxu0 0.0
        %864 = vmatpush2.msra.mxu0 0.0
        %865 = vmatprep.subr.mxu0 0.0
        %866 = vmatpush2.msra.mxu0 0.0
        %867 = vmatprep.subr.mxu0 0.0
        %868 = vmatpush2.msra.mxu0 0.0
        %869 = vmatprep.mubr.f32.mxu0 0.0
        %870 = vmatmul.mubr.f32.gmra.mxu0 %v794
        %v871 = vpop.f32.mrf.mxu0
        %v872 = vadd.f32 0.0, %v871
        %v873 = vpop.f32.mrf.mxu0
        %874 = vmatprep.mubr.f32.mxu0 0.0
        %875 = vmatmul.mubr.f32.gmra.mxu0 %v797
        %v876 = vpop.f32.mrf.mxu0
        %v877 = vadd.f32 0.0, %v876
        %v878 = vpop.f32.mrf.mxu0
        %879 = vmatprep.mubr.f32.mxu0 0.0
        %880 = vmatmul.mubr.f32.gmra.mxu0 %v800
        %v881 = vpop.f32.mrf.mxu0
        %v882 = vadd.f32 0.0, %v881
        %v883 = vpop.f32.mrf.mxu0
        %884 = vmatprep.mubr.f32.mxu0 0.0
        %885 = vmatmul.mubr.f32.gmra.mxu0 %v803
        %v886 = vpop.f32.mrf.mxu0
        %v887 = vadd.f32 0.0, %v886
        %v888 = vpop.f32.mrf.mxu0
        %889 = vmatprep.mubr.f32.mxu0 0.0
        %890 = vmatmul.mubr.f32.gmra.mxu0 %v713
        %v891 = vpop.f32.mrf.mxu0
        %v892 = vadd.f32 0.0, %v891
        %v893 = vpop.f32.mrf.mxu0
        %894 = vdwg.mxu0
        %v895 = vld [vmem:[%s6] sm:$0xff]
        %v896 = vld [vmem:[%s6 + $0x8] sm:$0xff]
        %v897 = vld [vmem:[%s6 + $0x10] sm:$0xff]
        %v898 = vld [vmem:[%s6 + $0x18] sm:$0xff]
        %v899 = vld [vmem:[%s6 + $0x20] sm:$0xff]
        %v900 = vld [vmem:[%s6 + $0x28] sm:$0xff]
        %v901 = vld [vmem:[%s6 + $0x30] sm:$0xff]
        %v902 = vld [vmem:[%s6 + $0x38] sm:$0xff]
        %903 = vmatprep.subr.mxu0 0.0
        %904 = vmatpush1.msra.mxu0 0.0
        %905 = vmatprep.subr.mxu0 0.0
        %906 = vmatpush1.msra.mxu0 0.0
        %907 = vmatprep.subr.mxu0 0.0
        %908 = vmatpush1.msra.mxu0 0.0
        %909 = vmatprep.subr.mxu0 0.0
        %910 = vmatpush1.msra.mxu0 0.0
        %911 = vmatprep.subr.mxu0 0.0
        %912 = vmatpush1.msra.mxu0 0.0
        %913 = vmatprep.subr.mxu0 0.0
        %914 = vmatpush1.msra.mxu0 0.0
        %915 = vmatprep.subr.mxu0 0.0
        %916 = vmatpush1.msra.mxu0 0.0
        %917 = vmatprep.subr.mxu0 0.0
        %918 = vmatpush1.msra.mxu0 0.0
        %919 = vmatprep.subr.mxu0 0.0
        %920 = vmatpush1.msra.mxu0 %v902
        %921 = vmatprep.subr.mxu0 0.0
        %922 = vmatpush1.msra.mxu0 %v901
        %923 = vmatprep.subr.mxu0 0.0
        %924 = vmatpush1.msra.mxu0 %v900
        %925 = vmatprep.subr.mxu0 0.0
        %926 = vmatpush1.msra.mxu0 %v899
        %927 = vmatprep.subr.mxu0 0.0
        %928 = vmatpush1.msra.mxu0 %v898
        %929 = vmatprep.subr.mxu0 0.0
        %930 = vmatpush1.msra.mxu0 %v897
        %931 = vmatprep.subr.mxu0 0.0
        %932 = vmatpush1.msra.mxu0 %v896
        %933 = vmatprep.subr.mxu0 0.0
        %934 = vmatpush1.msra.mxu0 %v895
        %935 = vmatprep.subr.mxu0 0.0
        %936 = vmatpush2.msra.mxu0 0.0
        %937 = vmatprep.subr.mxu0 0.0
        %938 = vmatpush2.msra.mxu0 0.0
        %939 = vmatprep.subr.mxu0 0.0
        %940 = vmatpush2.msra.mxu0 0.0
        %941 = vmatprep.subr.mxu0 0.0
        %942 = vmatpush2.msra.mxu0 0.0
        %943 = vmatprep.subr.mxu0 0.0
        %944 = vmatpush2.msra.mxu0 0.0
        %945 = vmatprep.subr.mxu0 0.0
        %946 = vmatpush2.msra.mxu0 0.0
        %947 = vmatprep.subr.mxu0 0.0
        %948 = vmatpush2.msra.mxu0 0.0
        %949 = vmatprep.subr.mxu0 0.0
        %950 = vmatpush2.msra.mxu0 0.0
        %951 = vmatprep.subr.mxu0 0.0
        %952 = vmatpush2.msra.mxu0 0.0
        %953 = vmatprep.subr.mxu0 0.0
        %954 = vmatpush2.msra.mxu0 0.0
        %955 = vmatprep.subr.mxu0 0.0
        %956 = vmatpush2.msra.mxu0 0.0
        %957 = vmatprep.subr.mxu0 0.0
        %958 = vmatpush2.msra.mxu0 0.0
        %959 = vmatprep.subr.mxu0 0.0
        %960 = vmatpush2.msra.mxu0 0.0
        %961 = vmatprep.subr.mxu0 0.0
        %962 = vmatpush2.msra.mxu0 0.0
        %963 = vmatprep.subr.mxu0 0.0
        %964 = vmatpush2.msra.mxu0 0.0
        %965 = vmatprep.subr.mxu0 0.0
        %966 = vmatpush2.msra.mxu0 0.0
        %967 = vmatprep.mubr.f32.mxu0 0.0
        %968 = vmatmul.mubr.f32.gmra.mxu0 %v794
        %v969 = vpop.f32.mrf.mxu0
        %v970 = vadd.f32 0.0, %v969
        %v971 = vpop.f32.mrf.mxu0
        %972 = vmatprep.mubr.f32.mxu0 0.0
        %973 = vmatmul.mubr.f32.gmra.mxu0 %v797
        %v974 = vpop.f32.mrf.mxu0
        %v975 = vadd.f32 0.0, %v974
        %v976 = vpop.f32.mrf.mxu0
        %977 = vmatprep.mubr.f32.mxu0 0.0
        %978 = vmatmul.mubr.f32.gmra.mxu0 %v800
        %v979 = vpop.f32.mrf.mxu0
        %v980 = vadd.f32 0.0, %v979
        %v981 = vpop.f32.mrf.mxu0
        %982 = vmatprep.mubr.f32.mxu0 0.0
        %983 = vmatmul.mubr.f32.gmra.mxu0 %v803
        %v984 = vpop.f32.mrf.mxu0
        %v985 = vadd.f32 0.0, %v984
        %v986 = vpop.f32.mrf.mxu0
        %987 = vmatprep.mubr.f32.mxu0 0.0
        %988 = vmatmul.mubr.f32.gmra.mxu0 %v713
        %v989 = vpop.f32.mrf.mxu0
        %v990 = vadd.f32 0.0, %v989
        %v991 = vpop.f32.mrf.mxu0
        %992 = vdwg.mxu0
        %v993 = vld [vmem:[%s15] sm:$0xff]
        %v994 = vld [vmem:[%s15 + $0x8] sm:$0xff]
        %v995 = vld [vmem:[%s15 + $0x10] sm:$0xff]
        %v996 = vld [vmem:[%s15 + $0x18] sm:$0xff]
        %v997 = vld [vmem:[%s15 + $0x20] sm:$0xff]
        %v998 = vld [vmem:[%s15 + $0x28] sm:$0xff]
        %v999 = vld [vmem:[%s15 + $0x30] sm:$0xff]
        %v1000 = vld [vmem:[%s15 + $0x38] sm:$0xff]
        %v1001 = vld [vmem:[%s16] sm:$0xf]
        %v1002 = vmul.f32 %v782, %v892
        %v1004 = vsel %vm643, %v1002, 0
        %1006 = vmatprep.subr.mxu0 0.0
        %1007 = vmatpush1.msra.mxu0 0.0
        %1008 = vmatprep.subr.mxu0 0.0
        %1009 = vmatpush1.msra.mxu0 0.0
        %1010 = vmatprep.subr.mxu0 0.0
        %1011 = vmatpush1.msra.mxu0 0.0
        %1012 = vmatprep.subr.mxu0 0.0
        %1013 = vmatpush1.msra.mxu0 0.0
        %1014 = vmatprep.subr.mxu0 0.0
        %1015 = vmatpush1.msra.mxu0 0.0
        %1016 = vmatprep.subr.mxu0 0.0
        %1017 = vmatpush1.msra.mxu0 0.0
        %1018 = vmatprep.subr.mxu0 0.0
        %1019 = vmatpush1.msra.mxu0 0.0
        %1020 = vmatprep.subr.mxu0 0.0
        %1021 = vmatpush1.msra.mxu0 0.0
        %1022 = vmatprep.subr.mxu0 0.0
        %1023 = vmatpush1.msra.mxu0 %v1000
        %1024 = vmatprep.subr.mxu0 0.0
        %1025 = vmatpush1.msra.mxu0 %v999
        %1026 = vmatprep.subr.mxu0 0.0
        %1027 = vmatpush1.msra.mxu0 %v998
        %1028 = vmatprep.subr.mxu0 0.0
        %1029 = vmatpush1.msra.mxu0 %v997
        %1030 = vmatprep.subr.mxu0 0.0
        %1031 = vmatpush1.msra.mxu0 %v996
        %1032 = vmatprep.subr.mxu0 0.0
        %1033 = vmatpush1.msra.mxu0 %v995
        %1034 = vmatprep.subr.mxu0 0.0
        %1035 = vmatpush1.msra.mxu0 %v994
        %1036 = vmatprep.subr.mxu0 0.0
        %1037 = vmatpush1.msra.mxu0 %v993
        %1038 = vmatprep.subr.mxu0 0.0
        %1039 = vmatpush2.msra.mxu0 0.0
        %1040 = vmatprep.subr.mxu0 0.0
        %1041 = vmatpush2.msra.mxu0 0.0
        %1042 = vmatprep.subr.mxu0 0.0
        %1043 = vmatpush2.msra.mxu0 0.0
        %1044 = vmatprep.subr.mxu0 0.0
        %1045 = vmatpush2.msra.mxu0 0.0
        %1046 = vmatprep.subr.mxu0 0.0
        %1047 = vmatpush2.msra.mxu0 0.0
        %1048 = vmatprep.subr.mxu0 0.0
        %1049 = vmatpush2.msra.mxu0 0.0
        %1050 = vmatprep.subr.mxu0 0.0
        %1051 = vmatpush2.msra.mxu0 0.0
        %1052 = vmatprep.subr.mxu0 0.0
        %1053 = vmatpush2.msra.mxu0 0.0
        %1054 = vmatprep.subr.mxu0 0.0
        %1055 = vmatpush2.msra.mxu0 0.0
        %1056 = vmatprep.subr.mxu0 0.0
        %1057 = vmatpush2.msra.mxu0 0.0
        %1058 = vmatprep.subr.mxu0 0.0
        %1059 = vmatpush2.msra.mxu0 0.0
        %1060 = vmatprep.subr.mxu0 0.0
        %1061 = vmatpush2.msra.mxu0 0.0
        %1062 = vmatprep.subr.mxu0 0.0
        %1063 = vmatpush2.msra.mxu0 0.0
        %1064 = vmatprep.subr.mxu0 0.0
        %1065 = vmatpush2.msra.mxu0 0.0
        %1066 = vmatprep.subr.mxu0 0.0
        %1067 = vmatpush2.msra.mxu0 0.0
        %1068 = vmatprep.subr.mxu0 0.0
        %1069 = vmatpush2.msra.mxu0 0.0
        %1070 = vmatprep.mubr.f32.mxu0 0.0
        %1071 = vmatmul.mubr.f32.gmra.mxu0 %v1004
        %v1072 = vpop.f32.mrf.mxu0
        %v1073 = vadd.f32 0.0, %v1072
        %v1074 = vpop.f32.mrf.mxu0
        %1075 = vdwg.mxu0
        %v1078 = vunpack.c.l.s4 1966171168
        %v1079 = vunpack.c.0.s8 %v1078
        %v1080 = vlaneseq
        %v1081 = vshrl.u32 %v1080, 7
        %v1082 = vsub.s32 %v1079, %v1081
        %v1083 = vrot.slane %v782, %v1082
        %v1084 = vcombine.high %v1083, %v1083
        %v1086 = vunpack.c.l.s4 1966171168
        %v1087 = vunpack.c.0.s8 %v1086
        %v1088 = vlaneseq
        %v1089 = vshrl.u32 %v1088, 7
        %v1090 = vsub.s32 %v1087, %v1089
        %v1091 = vrot.slane %v1083, %v1090
        %v1093 = vunpack.c.l.s4 1966171168
        %v1094 = vunpack.c.0.s8 %v1093
        %v1095 = vlaneseq
        %v1096 = vshrl.u32 %v1095, 7
        %v1097 = vsub.s32 %v1094, %v1096
        %v1098 = vrot.slane %v1084, %v1097
        %v1099 = vlaneseq
        %v1100 = vshrl.u32 %v1099, 7
        %v1101 = vsub.s32 0, %v1100
        %v1102 = vrot.slane %v1091, %v1101
        %v1103 = vlaneseq
        %v1104 = vshrl.u32 %v1103, 7
        %v1105 = vsub.s32 0, %v1104
        %v1106 = vrot.slane %v1098, %v1105
        %v1109 = vmul.f32 %v1102, %v872
        %v1110 = vmul.f32 %v1102, %v877
        %v1111 = vmul.f32 %v1106, %v882
        %v1112 = vmul.f32 %v1106, %v887
        %v1114 = vsel %vm643, %v1109, 0
        %v1117 = vsel %vm643, %v1110, 0
        %v1120 = vsel %vm643, %v1111, 0
        %v1123 = vsel %vm643, %v1112, 0
        %1125 = vmatprep.subr.mxu0 0.0
        %1126 = vmatpush1.msra.mxu0 0.0
        %1127 = vmatprep.subr.mxu0 0.0
        %1128 = vmatpush1.msra.mxu0 0.0
        %1129 = vmatprep.subr.mxu0 0.0
        %1130 = vmatpush1.msra.mxu0 0.0
        %1131 = vmatprep.subr.mxu0 0.0
        %1132 = vmatpush1.msra.mxu0 0.0
        %1133 = vmatprep.subr.mxu0 0.0
        %1134 = vmatpush1.msra.mxu0 0.0
        %1135 = vmatprep.subr.mxu0 0.0
        %1136 = vmatpush1.msra.mxu0 0.0
        %1137 = vmatprep.subr.mxu0 0.0
        %1138 = vmatpush1.msra.mxu0 0.0
        %1139 = vmatprep.subr.mxu0 0.0
        %1140 = vmatpush1.msra.mxu0 0.0
        %1141 = vmatprep.subr.mxu0 0.0
        %1142 = vmatpush1.msra.mxu0 %v1000
        %1143 = vmatprep.subr.mxu0 0.0
        %1144 = vmatpush1.msra.mxu0 %v999
        %1145 = vmatprep.subr.mxu0 0.0
        %1146 = vmatpush1.msra.mxu0 %v998
        %1147 = vmatprep.subr.mxu0 0.0
        %1148 = vmatpush1.msra.mxu0 %v997
        %1149 = vmatprep.subr.mxu0 0.0
        %1150 = vmatpush1.msra.mxu0 %v996
        %1151 = vmatprep.subr.mxu0 0.0
        %1152 = vmatpush1.msra.mxu0 %v995
        %1153 = vmatprep.subr.mxu0 0.0
        %1154 = vmatpush1.msra.mxu0 %v994
        %1155 = vmatprep.subr.mxu0 0.0
        %1156 = vmatpush1.msra.mxu0 %v993
        %1157 = vmatprep.subr.mxu0 0.0
        %1158 = vmatpush2.msra.mxu0 0.0
        %1159 = vmatprep.subr.mxu0 0.0
        %1160 = vmatpush2.msra.mxu0 0.0
        %1161 = vmatprep.subr.mxu0 0.0
        %1162 = vmatpush2.msra.mxu0 0.0
        %1163 = vmatprep.subr.mxu0 0.0
        %1164 = vmatpush2.msra.mxu0 0.0
        %1165 = vmatprep.subr.mxu0 0.0
        %1166 = vmatpush2.msra.mxu0 0.0
        %1167 = vmatprep.subr.mxu0 0.0
        %1168 = vmatpush2.msra.mxu0 0.0
        %1169 = vmatprep.subr.mxu0 0.0
        %1170 = vmatpush2.msra.mxu0 0.0
        %1171 = vmatprep.subr.mxu0 0.0
        %1172 = vmatpush2.msra.mxu0 0.0
        %1173 = vmatprep.subr.mxu0 0.0
        %1174 = vmatpush2.msra.mxu0 0.0
        %1175 = vmatprep.subr.mxu0 0.0
        %1176 = vmatpush2.msra.mxu0 0.0
        %1177 = vmatprep.subr.mxu0 0.0
        %1178 = vmatpush2.msra.mxu0 0.0
        %1179 = vmatprep.subr.mxu0 0.0
        %1180 = vmatpush2.msra.mxu0 0.0
        %1181 = vmatprep.subr.mxu0 0.0
        %1182 = vmatpush2.msra.mxu0 0.0
        %1183 = vmatprep.subr.mxu0 0.0
        %1184 = vmatpush2.msra.mxu0 0.0
        %1185 = vmatprep.subr.mxu0 0.0
        %1186 = vmatpush2.msra.mxu0 0.0
        %1187 = vmatprep.subr.mxu0 0.0
        %1188 = vmatpush2.msra.mxu0 0.0
        %1189 = vmatprep.mubr.f32.mxu0 0.0
        %1190 = vmatmul.mubr.f32.gmra.mxu0 %v1114
        %v1191 = vpop.f32.mrf.mxu0
        %v1192 = vadd.f32 0.0, %v1191
        %v1193 = vpop.f32.mrf.mxu0
        %1194 = vmatprep.mubr.f32.mxu0 0.0
        %1195 = vmatmul.mubr.f32.gmra.mxu0 %v1117
        %v1196 = vpop.f32.mrf.mxu0
        %v1197 = vadd.f32 0.0, %v1196
        %v1198 = vpop.f32.mrf.mxu0
        %1199 = vmatprep.mubr.f32.mxu0 0.0
        %1200 = vmatmul.mubr.f32.gmra.mxu0 %v1120
        %v1201 = vpop.f32.mrf.mxu0
        %v1202 = vadd.f32 0.0, %v1201
        %v1203 = vpop.f32.mrf.mxu0
        %1204 = vmatprep.mubr.f32.mxu0 0.0
        %1205 = vmatmul.mubr.f32.gmra.mxu0 %v1123
        %v1206 = vpop.f32.mrf.mxu0
        %v1207 = vadd.f32 0.0, %v1206
        %v1208 = vpop.f32.mrf.mxu0
        %1209 = vdwg.mxu0
        %vm1210 = vcmask 31744
        %v1211 = vsel %vm1210, %v1192, -inf
        %v1212 = vsel %vm1210, %v1197, -inf
        %v1213 = vmax.f32 %v1211, %v1212
        %v1214 = vrot.slane %v1213, 4
        %v1215 = vmax.f32 %v1213, %v1214
        %v1216 = vrot.slane %v1215, 2
        %v1217 = vmax.f32 %v1215, %v1216
        %v1218 = vrot.slane %v1217, 1
        %v1219 = vmax.f32 %v1217, %v1218
        %v1220 = vsel %vm1210, %v1202, -inf
        %v1221 = vsel %vm1210, %v1207, -inf
        %v1222 = vmax.f32 %v1220, %v1221
        %v1223 = vrot.slane %v1222, 4
        %v1224 = vmax.f32 %v1222, %v1223
        %v1225 = vrot.slane %v1224, 2
        %v1226 = vmax.f32 %v1224, %v1225
        %v1227 = vrot.slane %v1226, 1
        %v1228 = vmax.f32 %v1226, %v1227
        %vm1231 = vcmask 1041409
        %v1232 = vsel %vm1231, %v1228, %v1219
        %v1234 = vmax.f32 %v1073, %v1232
        %v1235 = vsub.f32 %v1073, %v1234
        %v1236 = vmul.f32 %v1235, 1.442695
        %v1237 = vpow.pop %v1236
        %v1240 = vunpack.c.l.s4 1966171168
        %v1241 = vunpack.c.0.s8 %v1240
        %v1242 = vlaneseq
        %v1243 = vshrl.u32 %v1242, 7
        %v1244 = vsub.s32 %v1241, %v1243
        %v1245 = vrot.slane %v1234, %v1244
        %v1246 = vcombine.high %v1245, %v1245
        %v1248 = vunpack.c.l.s4 1966171168
        %v1249 = vunpack.c.0.s8 %v1248
        %v1250 = vlaneseq
        %v1251 = vshrl.u32 %v1250, 7
        %v1252 = vsub.s32 %v1249, %v1251
        %v1253 = vrot.slane %v1245, %v1252
        %v1255 = vunpack.c.l.s4 1966171168
        %v1256 = vunpack.c.0.s8 %v1255
        %v1257 = vlaneseq
        %v1258 = vshrl.u32 %v1257, 7
        %v1259 = vsub.s32 %v1256, %v1258
        %v1260 = vrot.slane %v1246, %v1259
        %v1261 = vlaneseq
        %v1262 = vshrl.u32 %v1261, 7
        %v1263 = vsub.s32 0, %v1262
        %v1264 = vrot.slane %v1253, %v1263
        %v1265 = vlaneseq
        %v1266 = vshrl.u32 %v1265, 7
        %v1267 = vsub.s32 0, %v1266
        %v1268 = vrot.slane %v1260, %v1267
        %v1271 = vsub.f32 %v1192, %v1264
        %v1272 = vsub.f32 %v1197, %v1264
        %v1273 = vsub.f32 %v1202, %v1268
        %v1274 = vsub.f32 %v1207, %v1268
        %v1275 = vmul.f32 %v1271, 1.442695
        %v1276 = vpow.pop %v1275
        %v1277 = vmul.f32 %v1272, 1.442695
        %v1278 = vpow.pop %v1277
        %v1279 = vmul.f32 %v1273, 1.442695
        %v1280 = vpow.pop %v1279
        %v1281 = vmul.f32 %v1274, 1.442695
        %v1282 = vpow.pop %v1281
        %v1283 = vsel %vm1210, %v1276, 0.0
        %v1284 = vsel %vm1210, %v1278, 0.0
        %v1285 = vadd.f32 %v1283, %v1284
        %v1286 = vrot.slane %v1285, 4
        %v1287 = vadd.f32 %v1285, %v1286
        %v1288 = vrot.slane %v1287, 2
        %v1289 = vadd.f32 %v1287, %v1288
        %v1290 = vrot.slane %v1289, 1
        %v1291 = vadd.f32 %v1289, %v1290
        %v1292 = vsel %vm1210, %v1280, 0.0
        %v1293 = vsel %vm1210, %v1282, 0.0
        %v1294 = vadd.f32 %v1292, %v1293
        %v1295 = vrot.slane %v1294, 4
        %v1296 = vadd.f32 %v1294, %v1295
        %v1297 = vrot.slane %v1296, 2
        %v1298 = vadd.f32 %v1296, %v1297
        %v1299 = vrot.slane %v1298, 1
        %v1300 = vadd.f32 %v1298, %v1299
        %v1303 = vsel %vm1231, %v1300, %v1291
        %v1305 = vadd.f32 %v1237, %v1303
        %v1306 = vrcp.pop %v1305
        %v1307 = vmul.f32 %v1237, %v1306
        %v1310 = vunpack.c.l.s4 1966171168
        %v1311 = vunpack.c.0.s8 %v1310
        %v1312 = vlaneseq
        %v1313 = vshrl.u32 %v1312, 7
        %v1314 = vsub.s32 %v1311, %v1313
        %v1315 = vrot.slane %v1306, %v1314
        %v1316 = vcombine.high %v1315, %v1315
        %v1318 = vunpack.c.l.s4 1966171168
        %v1319 = vunpack.c.0.s8 %v1318
        %v1320 = vlaneseq
        %v1321 = vshrl.u32 %v1320, 7
        %v1322 = vsub.s32 %v1319, %v1321
        %v1323 = vrot.slane %v1315, %v1322
        %v1325 = vunpack.c.l.s4 1966171168
        %v1326 = vunpack.c.0.s8 %v1325
        %v1327 = vlaneseq
        %v1328 = vshrl.u32 %v1327, 7
        %v1329 = vsub.s32 %v1326, %v1328
        %v1330 = vrot.slane %v1316, %v1329
        %v1331 = vlaneseq
        %v1332 = vshrl.u32 %v1331, 7
        %v1333 = vsub.s32 0, %v1332
        %v1334 = vrot.slane %v1323, %v1333
        %v1335 = vlaneseq
        %v1336 = vshrl.u32 %v1335, 7
        %v1337 = vsub.s32 0, %v1336
        %v1338 = vrot.slane %v1330, %v1337
        %v1341 = vmul.f32 %v1276, %v1334
        %v1342 = vmul.f32 %v1278, %v1334
        %v1343 = vmul.f32 %v1280, %v1338
        %v1344 = vmul.f32 %v1282, %v1338
        %v1346 = vsel %vm1210, %v1307, 0
        %vm1348 = vcmask 1043456
        %v1350 = vsel %vm1348, %v1001, 0
        %1352 = vmatprep.subr.mxu0 0.0
        %1353 = vmatpush1.msra.mxu0 0.0
        %1354 = vmatprep.subr.mxu0 0.0
        %1355 = vmatpush1.msra.mxu0 0.0
        %1356 = vmatprep.subr.mxu0 0.0
        %1357 = vmatpush1.msra.mxu0 0.0
        %1358 = vmatprep.subr.mxu0 0.0
        %1359 = vmatpush1.msra.mxu0 0.0
        %1360 = vmatprep.subr.mxu0 0.0
        %1361 = vmatpush1.msra.mxu0 0.0
        %1362 = vmatprep.subr.mxu0 0.0
        %1363 = vmatpush1.msra.mxu0 0.0
        %1364 = vmatprep.subr.mxu0 0.0
        %1365 = vmatpush1.msra.mxu0 0.0
        %1366 = vmatprep.subr.mxu0 0.0
        %1367 = vmatpush1.msra.mxu0 0.0
        %1368 = vmatprep.subr.mxu0 0.0
        %1369 = vmatpush1.msra.mxu0 0.0
        %1370 = vmatprep.subr.mxu0 0.0
        %1371 = vmatpush1.msra.mxu0 0.0
        %1372 = vmatprep.subr.mxu0 0.0
        %1373 = vmatpush1.msra.mxu0 0.0
        %1374 = vmatprep.subr.mxu0 0.0
        %1375 = vmatpush1.msra.mxu0 0.0
        %1376 = vmatprep.subr.mxu0 0.0
        %1377 = vmatpush1.msra.mxu0 0.0
        %1378 = vmatprep.subr.mxu0 0.0
        %1379 = vmatpush1.msra.mxu0 0.0
        %1380 = vmatprep.subr.mxu0 0.0
        %1381 = vmatpush1.msra.mxu0 0.0
        %1382 = vmatprep.subr.mxu0 0.0
        %1383 = vmatpush1.msra.mxu0 %v1350
        %1384 = vmatprep.subr.mxu0 0.0
        %1385 = vmatpush2.msra.mxu0 0.0
        %1386 = vmatprep.subr.mxu0 0.0
        %1387 = vmatpush2.msra.mxu0 0.0
        %1388 = vmatprep.subr.mxu0 0.0
        %1389 = vmatpush2.msra.mxu0 0.0
        %1390 = vmatprep.subr.mxu0 0.0
        %1391 = vmatpush2.msra.mxu0 0.0
        %1392 = vmatprep.subr.mxu0 0.0
        %1393 = vmatpush2.msra.mxu0 0.0
        %1394 = vmatprep.subr.mxu0 0.0
        %1395 = vmatpush2.msra.mxu0 0.0
        %1396 = vmatprep.subr.mxu0 0.0
        %1397 = vmatpush2.msra.mxu0 0.0
        %1398 = vmatprep.subr.mxu0 0.0
        %1399 = vmatpush2.msra.mxu0 0.0
        %1400 = vmatprep.subr.mxu0 0.0
        %1401 = vmatpush2.msra.mxu0 0.0
        %1402 = vmatprep.subr.mxu0 0.0
        %1403 = vmatpush2.msra.mxu0 0.0
        %1404 = vmatprep.subr.mxu0 0.0
        %1405 = vmatpush2.msra.mxu0 0.0
        %1406 = vmatprep.subr.mxu0 0.0
        %1407 = vmatpush2.msra.mxu0 0.0
        %1408 = vmatprep.subr.mxu0 0.0
        %1409 = vmatpush2.msra.mxu0 0.0
        %1410 = vmatprep.subr.mxu0 0.0
        %1411 = vmatpush2.msra.mxu0 0.0
        %1412 = vmatprep.subr.mxu0 0.0
        %1413 = vmatpush2.msra.mxu0 0.0
        %1414 = vmatprep.subr.mxu0 0.0
        %1415 = vmatpush2.msra.mxu0 0.0
        %1416 = vmatprep.mubr.f32.mxu0 0.0
        %1417 = vmatmul.mubr.f32.gmra.mxu0 %v1346
        %v1418 = vpop.f32.mrf.mxu0
        %v1419 = vadd.f32 0.0, %v1418
        %v1420 = vpop.f32.mrf.mxu0
        %1421 = vdwg.mxu0
        %v1423 = vsel %vm1210, %v1341, 0
        %v1426 = vsel %vm1210, %v1342, 0
        %v1429 = vsel %vm1210, %v1343, 0
        %v1432 = vsel %vm1210, %v1344, 0
        %1434 = vmatprep.subr.mxu0 0.0
        %1435 = vmatpush1.msra.mxu0 0.0
        %1436 = vmatprep.subr.mxu0 0.0
        %1437 = vmatpush1.msra.mxu0 0.0
        %1438 = vmatprep.subr.mxu0 0.0
        %1439 = vmatpush1.msra.mxu0 0.0
        %1440 = vmatprep.subr.mxu0 0.0
        %1441 = vmatpush1.msra.mxu0 0.0
        %1442 = vmatprep.subr.mxu0 0.0
        %1443 = vmatpush1.msra.mxu0 0.0
        %1444 = vmatprep.subr.mxu0 0.0
        %1445 = vmatpush1.msra.mxu0 0.0
        %1446 = vmatprep.subr.mxu0 0.0
        %1447 = vmatpush1.msra.mxu0 0.0
        %1448 = vmatprep.subr.mxu0 0.0
        %1449 = vmatpush1.msra.mxu0 0.0
        %1450 = vmatprep.subr.mxu0 0.0
        %1451 = vmatpush1.msra.mxu0 0.0
        %1452 = vmatprep.subr.mxu0 0.0
        %1453 = vmatpush1.msra.mxu0 0.0
        %1454 = vmatprep.subr.mxu0 0.0
        %1455 = vmatpush1.msra.mxu0 0.0
        %1456 = vmatprep.subr.mxu0 0.0
        %1457 = vmatpush1.msra.mxu0 0.0
        %1458 = vmatprep.subr.mxu0 0.0
        %1459 = vmatpush1.msra.mxu0 0.0
        %1460 = vmatprep.subr.mxu0 0.0
        %1461 = vmatpush1.msra.mxu0 0.0
        %1462 = vmatprep.subr.mxu0 0.0
        %1463 = vmatpush1.msra.mxu0 0.0
        %1464 = vmatprep.subr.mxu0 0.0
        %1465 = vmatpush1.msra.mxu0 %v1350
        %1466 = vmatprep.subr.mxu0 0.0
        %1467 = vmatpush2.msra.mxu0 0.0
        %1468 = vmatprep.subr.mxu0 0.0
        %1469 = vmatpush2.msra.mxu0 0.0
        %1470 = vmatprep.subr.mxu0 0.0
        %1471 = vmatpush2.msra.mxu0 0.0
        %1472 = vmatprep.subr.mxu0 0.0
        %1473 = vmatpush2.msra.mxu0 0.0
        %1474 = vmatprep.subr.mxu0 0.0
        %1475 = vmatpush2.msra.mxu0 0.0
        %1476 = vmatprep.subr.mxu0 0.0
        %1477 = vmatpush2.msra.mxu0 0.0
        %1478 = vmatprep.subr.mxu0 0.0
        %1479 = vmatpush2.msra.mxu0 0.0
        %1480 = vmatprep.subr.mxu0 0.0
        %1481 = vmatpush2.msra.mxu0 0.0
        %1482 = vmatprep.subr.mxu0 0.0
        %1483 = vmatpush2.msra.mxu0 0.0
        %1484 = vmatprep.subr.mxu0 0.0
        %1485 = vmatpush2.msra.mxu0 0.0
        %1486 = vmatprep.subr.mxu0 0.0
        %1487 = vmatpush2.msra.mxu0 0.0
        %1488 = vmatprep.subr.mxu0 0.0
        %1489 = vmatpush2.msra.mxu0 0.0
        %1490 = vmatprep.subr.mxu0 0.0
        %1491 = vmatpush2.msra.mxu0 0.0
        %1492 = vmatprep.subr.mxu0 0.0
        %1493 = vmatpush2.msra.mxu0 0.0
        %1494 = vmatprep.subr.mxu0 0.0
        %1495 = vmatpush2.msra.mxu0 0.0
        %1496 = vmatprep.subr.mxu0 0.0
        %1497 = vmatpush2.msra.mxu0 0.0
        %1498 = vmatprep.mubr.f32.mxu0 0.0
        %1499 = vmatmul.mubr.f32.gmra.mxu0 %v1423
        %v1500 = vpop.f32.mrf.mxu0
        %v1501 = vadd.f32 0.0, %v1500
        %v1502 = vpop.f32.mrf.mxu0
        %1503 = vmatprep.mubr.f32.mxu0 0.0
        %1504 = vmatmul.mubr.f32.gmra.mxu0 %v1426
        %v1505 = vpop.f32.mrf.mxu0
        %v1506 = vadd.f32 0.0, %v1505
        %v1507 = vpop.f32.mrf.mxu0
        %1508 = vmatprep.mubr.f32.mxu0 0.0
        %1509 = vmatmul.mubr.f32.gmra.mxu0 %v1429
        %v1510 = vpop.f32.mrf.mxu0
        %v1511 = vadd.f32 0.0, %v1510
        %v1512 = vpop.f32.mrf.mxu0
        %1513 = vmatprep.mubr.f32.mxu0 0.0
        %1514 = vmatmul.mubr.f32.gmra.mxu0 %v1432
        %v1515 = vpop.f32.mrf.mxu0
        %v1516 = vadd.f32 0.0, %v1515
        %v1517 = vpop.f32.mrf.mxu0
        %1518 = vdwg.mxu0
        %v1519 = vmul.f32 %v1419, %v990
        %v1520 = vmul.f32 %v1501, %v970
        %v1521 = vmul.f32 %v1506, %v975
        %v1522 = vmul.f32 %v1511, %v980
        %v1523 = vmul.f32 %v1516, %v985
        %v1524 = vsel %vm643, %v1520, 0.0
        %v1525 = vsel %vm643, %v1521, 0.0
        %v1526 = vadd.f32 %v1524, %v1525
        %v1527 = vrot.slane %v1526, 4
        %v1528 = vadd.f32 %v1526, %v1527
        %v1529 = vrot.slane %v1528, 2
        %v1530 = vadd.f32 %v1528, %v1529
        %v1531 = vrot.slane %v1530, 1
        %v1532 = vadd.f32 %v1530, %v1531
        %v1533 = vsel %vm643, %v1522, 0.0
        %v1534 = vsel %vm643, %v1523, 0.0
        %v1535 = vadd.f32 %v1533, %v1534
        %v1536 = vrot.slane %v1535, 4
        %v1537 = vadd.f32 %v1535, %v1536
        %v1538 = vrot.slane %v1537, 2
        %v1539 = vadd.f32 %v1537, %v1538
        %v1540 = vrot.slane %v1539, 1
        %v1541 = vadd.f32 %v1539, %v1540
        %v1544 = vsel %vm1231, %v1541, %v1532
        %v1546 = vadd.f32 %v1519, %v1544
        %v1547 = vld [vmem:[%s7] sm:$0xff]
        %v1548 = vld [vmem:[%s7 + $0x8] sm:$0xff]
        %v1549 = vld [vmem:[%s7 + $0x10] sm:$0xff]
        %v1550 = vld [vmem:[%s7 + $0x18] sm:$0xff]
        %v1551 = vld [vmem:[%s7 + $0x20] sm:$0xff]
        %v1552 = vld [vmem:[%s7 + $0x28] sm:$0xff]
        %v1553 = vld [vmem:[%s7 + $0x30] sm:$0xff]
        %v1554 = vld [vmem:[%s7 + $0x38] sm:$0xff]
        %v1555 = vld [vmem:[#allocation7] sm:$0x1]
        %v1557 = vlaneseq
        %v1558 = vshrl.u32 %v1557, 7
        %v1559 = vsub.s32 0, %v1558
        %v1560 = vrot.slane %v1555, %v1559
        %v1563 = vsel %vm643, %v1546, 0
        %1565 = vmatprep.subr.mxu0 0.0
        %1566 = vmatpush1.msra.mxu0 0.0
        %1567 = vmatprep.subr.mxu0 0.0
        %1568 = vmatpush1.msra.mxu0 0.0
        %1569 = vmatprep.subr.mxu0 0.0
        %1570 = vmatpush1.msra.mxu0 0.0
        %1571 = vmatprep.subr.mxu0 0.0
        %1572 = vmatpush1.msra.mxu0 0.0
        %1573 = vmatprep.subr.mxu0 0.0
        %1574 = vmatpush1.msra.mxu0 0.0
        %1575 = vmatprep.subr.mxu0 0.0
        %1576 = vmatpush1.msra.mxu0 0.0
        %1577 = vmatprep.subr.mxu0 0.0
        %1578 = vmatpush1.msra.mxu0 0.0
        %1579 = vmatprep.subr.mxu0 0.0
        %1580 = vmatpush1.msra.mxu0 0.0
        %1581 = vmatprep.subr.mxu0 0.0
        %1582 = vmatpush1.msra.mxu0 %v1554
        %1583 = vmatprep.subr.mxu0 0.0
        %1584 = vmatpush1.msra.mxu0 %v1553
        %1585 = vmatprep.subr.mxu0 0.0
        %1586 = vmatpush1.msra.mxu0 %v1552
        %1587 = vmatprep.subr.mxu0 0.0
        %1588 = vmatpush1.msra.mxu0 %v1551
        %1589 = vmatprep.subr.mxu0 0.0
        %1590 = vmatpush1.msra.mxu0 %v1550
        %1591 = vmatprep.subr.mxu0 0.0
        %1592 = vmatpush1.msra.mxu0 %v1549
        %1593 = vmatprep.subr.mxu0 0.0
        %1594 = vmatpush1.msra.mxu0 %v1548
        %1595 = vmatprep.subr.mxu0 0.0
        %1596 = vmatpush1.msra.mxu0 %v1547
        %1597 = vmatprep.subr.mxu0 0.0
        %1598 = vmatpush2.msra.mxu0 0.0
        %1599 = vmatprep.subr.mxu0 0.0
        %1600 = vmatpush2.msra.mxu0 0.0
        %1601 = vmatprep.subr.mxu0 0.0
        %1602 = vmatpush2.msra.mxu0 0.0
        %1603 = vmatprep.subr.mxu0 0.0
        %1604 = vmatpush2.msra.mxu0 0.0
        %1605 = vmatprep.subr.mxu0 0.0
        %1606 = vmatpush2.msra.mxu0 0.0
        %1607 = vmatprep.subr.mxu0 0.0
        %1608 = vmatpush2.msra.mxu0 0.0
        %1609 = vmatprep.subr.mxu0 0.0
        %1610 = vmatpush2.msra.mxu0 0.0
        %1611 = vmatprep.subr.mxu0 0.0
        %1612 = vmatpush2.msra.mxu0 0.0
        %1613 = vmatprep.subr.mxu0 0.0
        %1614 = vmatpush2.msra.mxu0 0.0
        %1615 = vmatprep.subr.mxu0 0.0
        %1616 = vmatpush2.msra.mxu0 0.0
        %1617 = vmatprep.subr.mxu0 0.0
        %1618 = vmatpush2.msra.mxu0 0.0
        %1619 = vmatprep.subr.mxu0 0.0
        %1620 = vmatpush2.msra.mxu0 0.0
        %1621 = vmatprep.subr.mxu0 0.0
        %1622 = vmatpush2.msra.mxu0 0.0
        %1623 = vmatprep.subr.mxu0 0.0
        %1624 = vmatpush2.msra.mxu0 0.0
        %1625 = vmatprep.subr.mxu0 0.0
        %1626 = vmatpush2.msra.mxu0 0.0
        %1627 = vmatprep.subr.mxu0 0.0
        %1628 = vmatpush2.msra.mxu0 0.0
        %1629 = vmatprep.mubr.f32.mxu0 0.0
        %1630 = vmatmul.mubr.f32.gmra.mxu0 %v1563
        %v1631 = vpop.f32.mrf.mxu0
        %v1632 = vadd.f32 %v1560, %v1631
        %v1633 = vpop.f32.mrf.mxu0
        %1634 = vdwg.mxu0
        %v1635 = vadd.f32 %v607, %v1632
        %v1636 = vld [vmem:[%s9] sm:$0x1]
        %v1637 = vld [vmem:[%s10] sm:$0x1]
        %v1638 = vsel %vm614, %v1635, 0.0
        %1639 = vadd.xlane.f32.xlu0 %v1638
        %v1640 = vpop.xlane.xlu0 %1639
        %v1641 = vmul.f32 %v1640, %v618
        %v1642 = vsub.f32 %v1635, %v1641
        %v1643 = vmul.f32 %v1642, %v1642
        %v1644 = vsel %vm614, %v1643, 0.0
        %1645 = vadd.xlane.f32.xlu0 %v1644
        %v1646 = vpop.xlane.xlu0 %1645
        %v1647 = vmul.f32 %v1646, %v618
        %v1648 = vadd.f32 %v1647, 1e-05
        %v1649 = vrsqrt.pop %v1648
        %v1650 = vmul.f32 %v1642, %v1649
        %v1652 = vlaneseq
        %v1653 = vshrl.u32 %v1652, 7
        %v1654 = vsub.s32 0, %v1653
        %v1655 = vrot.slane %v1636, %v1654
        %v1657 = vmul.f32 %v1650, %v1655
        %v1659 = vlaneseq
        %v1660 = vshrl.u32 %v1659, 7
        %v1661 = vsub.s32 0, %v1660
        %v1662 = vrot.slane %v1637, %v1661
        %v1664 = vadd.f32 %v1657, %v1662
        %v1665 = vld [vmem:[%s11] sm:$0xff]
        %v1666 = vld [vmem:[%s11 + $0x8] sm:$0xff]
        %v1667 = vld [vmem:[%s11 + $0x10] sm:$0xff]
        %v1668 = vld [vmem:[%s11 + $0x18] sm:$0xff]
        %v1669 = vld [vmem:[%s11 + $0x20] sm:$0xff]
        %v1670 = vld [vmem:[%s11 + $0x28] sm:$0xff]
        %v1671 = vld [vmem:[%s11 + $0x30] sm:$0xff]
        %v1672 = vld [vmem:[%s11 + $0x38] sm:$0xff]
        %v1673 = vld [vmem:[%s11 + $0x40] sm:$0xff]
        %v1674 = vld [vmem:[%s11 + $0x48] sm:$0xff]
        %v1675 = vld [vmem:[%s11 + $0x50] sm:$0xff]
        %v1676 = vld [vmem:[%s11 + $0x58] sm:$0xff]
        %v1677 = vld [vmem:[%s11 + $0x60] sm:$0xff]
        %v1678 = vld [vmem:[%s11 + $0x68] sm:$0xff]
        %v1679 = vld [vmem:[%s11 + $0x70] sm:$0xff]
        %v1680 = vld [vmem:[%s11 + $0x78] sm:$0xff]
        %v1681 = vld [vmem:[%s12] sm:$0x3]
        %v1683 = vlaneseq
        %v1684 = vshrl.u32 %v1683, 7
        %v1685 = vsub.s32 0, %v1684
        %v1686 = vrot.slane %v1681, %v1685
        %v1687 = vlaneseq
        %v1688 = vshrl.u32 %v1687, 7
        %v1689 = vsub.s32 1, %v1688
        %v1690 = vrot.slane %v1681, %v1689
        %v1694 = vsel %vm643, %v1664, 0
        %1696 = vmatprep.subr.mxu0 0.0
        %1697 = vmatpush1.msra.mxu0 0.0
        %1698 = vmatprep.subr.mxu0 0.0
        %1699 = vmatpush1.msra.mxu0 0.0
        %1700 = vmatprep.subr.mxu0 0.0
        %1701 = vmatpush1.msra.mxu0 0.0
        %1702 = vmatprep.subr.mxu0 0.0
        %1703 = vmatpush1.msra.mxu0 0.0
        %1704 = vmatprep.subr.mxu0 0.0
        %1705 = vmatpush1.msra.mxu0 0.0
        %1706 = vmatprep.subr.mxu0 0.0
        %1707 = vmatpush1.msra.mxu0 0.0
        %1708 = vmatprep.subr.mxu0 0.0
        %1709 = vmatpush1.msra.mxu0 0.0
        %1710 = vmatprep.subr.mxu0 0.0
        %1711 = vmatpush1.msra.mxu0 0.0
        %1712 = vmatprep.subr.mxu0 %v1680
        %1713 = vmatpush1.msra.mxu0 %v1679
        %1714 = vmatprep.subr.mxu0 %v1678
        %1715 = vmatpush1.msra.mxu0 %v1677
        %1716 = vmatprep.subr.mxu0 %v1676
        %1717 = vmatpush1.msra.mxu0 %v1675
        %1718 = vmatprep.subr.mxu0 %v1674
        %1719 = vmatpush1.msra.mxu0 %v1673
        %1720 = vmatprep.subr.mxu0 %v1672
        %1721 = vmatpush1.msra.mxu0 %v1671
        %1722 = vmatprep.subr.mxu0 %v1670
        %1723 = vmatpush1.msra.mxu0 %v1669
        %1724 = vmatprep.subr.mxu0 %v1668
        %1725 = vmatpush1.msra.mxu0 %v1667
        %1726 = vmatprep.subr.mxu0 %v1666
        %1727 = vmatpush1.msra.mxu0 %v1665
        %1728 = vmatprep.subr.mxu0 0.0
        %1729 = vmatpush2.msra.mxu0 0.0
        %1730 = vmatprep.subr.mxu0 0.0
        %1731 = vmatpush2.msra.mxu0 0.0
        %1732 = vmatprep.subr.mxu0 0.0
        %1733 = vmatpush2.msra.mxu0 0.0
        %1734 = vmatprep.subr.mxu0 0.0
        %1735 = vmatpush2.msra.mxu0 0.0
        %1736 = vmatprep.subr.mxu0 0.0
        %1737 = vmatpush2.msra.mxu0 0.0
        %1738 = vmatprep.subr.mxu0 0.0
        %1739 = vmatpush2.msra.mxu0 0.0
        %1740 = vmatprep.subr.mxu0 0.0
        %1741 = vmatpush2.msra.mxu0 0.0
        %1742 = vmatprep.subr.mxu0 0.0
        %1743 = vmatpush2.msra.mxu0 0.0
        %1744 = vmatprep.subr.mxu0 0.0
        %1745 = vmatpush2.msra.mxu0 0.0
        %1746 = vmatprep.subr.mxu0 0.0
        %1747 = vmatpush2.msra.mxu0 0.0
        %1748 = vmatprep.subr.mxu0 0.0
        %1749 = vmatpush2.msra.mxu0 0.0
        %1750 = vmatprep.subr.mxu0 0.0
        %1751 = vmatpush2.msra.mxu0 0.0
        %1752 = vmatprep.subr.mxu0 0.0
        %1753 = vmatpush2.msra.mxu0 0.0
        %1754 = vmatprep.subr.mxu0 0.0
        %1755 = vmatpush2.msra.mxu0 0.0
        %1756 = vmatprep.subr.mxu0 0.0
        %1757 = vmatpush2.msra.mxu0 0.0
        %1758 = vmatprep.subr.mxu0 0.0
        %1759 = vmatpush2.msra.mxu0 0.0
        %1760 = vmatprep.mubr.f32.mxu0 0.0
        %1761 = vmatmul.mubr.f32.gmra.mxu0 %v1694
        %v1762 = vpop.f32.mrf.mxu0
        %v1763 = vadd.f32 %v1686, %v1762
        %v1764 = vpop.f32.mrf.mxu0
        %v1765 = vadd.f32 %v1690, %v1764
        %1766 = vdwg.mxu0
        %v1767 = vmul.f32 %v1763, 0.5
        %v1768 = vmul.f32 %v1765, 0.5
        %v1769 = vmul.f32 %v1763, 0.70710677
        %v1770 = vmul.f32 %v1765, 0.70710677
        %v1771 = verf.f32.pop %v1769
        %v1772 = verf.f32.pop %v1770
        %v1773 = vadd.f32 %v1771, 1.0
        %v1774 = vadd.f32 %v1772, 1.0
        %v1775 = vmul.f32 %v1767, %v1773
        %v1776 = vmul.f32 %v1768, %v1774
        %v1777 = vld [vmem:[%s13] sm:$0xff]
        %v1778 = vld [vmem:[%s13 + $0x8] sm:$0xff]
        %v1779 = vld [vmem:[%s13 + $0x10] sm:$0xff]
        %v1780 = vld [vmem:[%s13 + $0x18] sm:$0xff]
        %v1781 = vld [vmem:[%s13 + $0x20] sm:$0xff]
        %v1782 = vld [vmem:[%s13 + $0x28] sm:$0xff]
        %v1783 = vld [vmem:[%s13 + $0x30] sm:$0xff]
        %v1784 = vld [vmem:[%s13 + $0x38] sm:$0xff]
        %v1785 = vld [vmem:[%s13 + $0x40] sm:$0xff]
        %v1786 = vld [vmem:[%s13 + $0x48] sm:$0xff]
        %v1787 = vld [vmem:[%s13 + $0x50] sm:$0xff]
        %v1788 = vld [vmem:[%s13 + $0x58] sm:$0xff]
        %v1789 = vld [vmem:[%s13 + $0x60] sm:$0xff]
        %v1790 = vld [vmem:[%s13 + $0x68] sm:$0xff]
        %v1791 = vld [vmem:[%s13 + $0x70] sm:$0xff]
        %v1792 = vld [vmem:[%s13 + $0x78] sm:$0xff]
        %v1793 = vld [vmem:[%s13 + $0x80] sm:$0xff]
        %v1794 = vld [vmem:[%s13 + $0x88] sm:$0xff]
        %v1795 = vld [vmem:[%s13 + $0x90] sm:$0xff]
        %v1796 = vld [vmem:[%s13 + $0x98] sm:$0xff]
        %v1797 = vld [vmem:[%s13 + $0xa0] sm:$0xff]
        %v1798 = vld [vmem:[%s13 + $0xa8] sm:$0xff]
        %v1799 = vld [vmem:[%s13 + $0xb0] sm:$0xff]
        %v1800 = vld [vmem:[%s13 + $0xb8] sm:$0xff]
        %v1801 = vld [vmem:[%s13 + $0xc0] sm:$0xff]
        %v1802 = vld [vmem:[%s13 + $0xc8] sm:$0xff]
        %v1803 = vld [vmem:[%s13 + $0xd0] sm:$0xff]
        %v1804 = vld [vmem:[%s13 + $0xd8] sm:$0xff]
        %v1805 = vld [vmem:[%s13 + $0xe0] sm:$0xff]
        %v1806 = vld [vmem:[%s13 + $0xe8] sm:$0xff]
        %v1807 = vld [vmem:[%s13 + $0xf0] sm:$0xff]
        %v1808 = vld [vmem:[%s13 + $0xf8] sm:$0xff]
        %v1809 = vld [vmem:[%s14] sm:$0x1]
        %v1811 = vlaneseq
        %v1812 = vshrl.u32 %v1811, 7
        %v1813 = vsub.s32 0, %v1812
        %v1814 = vrot.slane %v1809, %v1813
        %1816 = vmatprep.subr.mxu0 0.0
        %1817 = vmatpush1.msra.mxu0 %v1792
        %1818 = vmatprep.subr.mxu0 0.0
        %1819 = vmatpush1.msra.mxu0 %v1791
        %1820 = vmatprep.subr.mxu0 0.0
        %1821 = vmatpush1.msra.mxu0 %v1790
        %1822 = vmatprep.subr.mxu0 0.0
        %1823 = vmatpush1.msra.mxu0 %v1789
        %1824 = vmatprep.subr.mxu0 0.0
        %1825 = vmatpush1.msra.mxu0 %v1788
        %1826 = vmatprep.subr.mxu0 0.0
        %1827 = vmatpush1.msra.mxu0 %v1787
        %1828 = vmatprep.subr.mxu0 0.0
        %1829 = vmatpush1.msra.mxu0 %v1786
        %1830 = vmatprep.subr.mxu0 0.0
        %1831 = vmatpush1.msra.mxu0 %v1785
        %1832 = vmatprep.subr.mxu0 0.0
        %1833 = vmatpush1.msra.mxu0 %v1784
        %1834 = vmatprep.subr.mxu0 0.0
        %1835 = vmatpush1.msra.mxu0 %v1783
        %1836 = vmatprep.subr.mxu0 0.0
        %1837 = vmatpush1.msra.mxu0 %v1782
        %1838 = vmatprep.subr.mxu0 0.0
        %1839 = vmatpush1.msra.mxu0 %v1781
        %1840 = vmatprep.subr.mxu0 0.0
        %1841 = vmatpush1.msra.mxu0 %v1780
        %1842 = vmatprep.subr.mxu0 0.0
        %1843 = vmatpush1.msra.mxu0 %v1779
        %1844 = vmatprep.subr.mxu0 0.0
        %1845 = vmatpush1.msra.mxu0 %v1778
        %1846 = vmatprep.subr.mxu0 0.0
        %1847 = vmatpush1.msra.mxu0 %v1777
        %1848 = vmatprep.subr.mxu0 0.0
        %1849 = vmatpush2.msra.mxu0 %v1808
        %1850 = vmatprep.subr.mxu0 0.0
        %1851 = vmatpush2.msra.mxu0 %v1807
        %1852 = vmatprep.subr.mxu0 0.0
        %1853 = vmatpush2.msra.mxu0 %v1806
        %1854 = vmatprep.subr.mxu0 0.0
        %1855 = vmatpush2.msra.mxu0 %v1805
        %1856 = vmatprep.subr.mxu0 0.0
        %1857 = vmatpush2.msra.mxu0 %v1804
        %1858 = vmatprep.subr.mxu0 0.0
        %1859 = vmatpush2.msra.mxu0 %v1803
        %1860 = vmatprep.subr.mxu0 0.0
        %1861 = vmatpush2.msra.mxu0 %v1802
        %1862 = vmatprep.subr.mxu0 0.0
        %1863 = vmatpush2.msra.mxu0 %v1801
        %1864 = vmatprep.subr.mxu0 0.0
        %1865 = vmatpush2.msra.mxu0 %v1800
        %1866 = vmatprep.subr.mxu0 0.0
        %1867 = vmatpush2.msra.mxu0 %v1799
        %1868 = vmatprep.subr.mxu0 0.0
        %1869 = vmatpush2.msra.mxu0 %v1798
        %1870 = vmatprep.subr.mxu0 0.0
        %1871 = vmatpush2.msra.mxu0 %v1797
        %1872 = vmatprep.subr.mxu0 0.0
        %1873 = vmatpush2.msra.mxu0 %v1796
        %1874 = vmatprep.subr.mxu0 0.0
        %1875 = vmatpush2.msra.mxu0 %v1795
        %1876 = vmatprep.subr.mxu0 0.0
        %1877 = vmatpush2.msra.mxu0 %v1794
        %1878 = vmatprep.subr.mxu0 0.0
        %1879 = vmatpush2.msra.mxu0 %v1793
        %1880 = vmatprep.mubr.f32.mxu0 %v1776
        %1881 = vmatmul.mubr.f32.gmra.mxu0 %v1775
        %v1882 = vpop.f32.mrf.mxu0
        %v1883 = vadd.f32 %v1814, %v1882
        %v1884 = vpop.f32.mrf.mxu0
        %1885 = vdwg.mxu0
        %v1886 = vadd.f32 %v1635, %v1883
        %1887 = vst.msk [vmem:[%s595] sm:$0x3] %vm614, %v1886
        %s1888 = sand.u32 %s408, 1
        %s1889 = scalar_lea.sflag [#allocation4], %s1888
        %s1890 = sand.u32 %s408, 1
        %s1891 = smul.addr %s1890, 2
        %s1892 = scalar_lea.vmem [#allocation8], %s1891
        // Predicated region
        $region101: #{tpu_custom_call.1} parent=87 // pred_check
          %p1893 = pneg %p418
        $region102: #{tpu_custom_call.1} parent=87 // pred_check_branch
          %1895 = sbr.rel (%p1893) target = $region104
        $region103: #{tpu_custom_call.1} parent=87 // pred_region
          %s1897 = ssub.s32 32, 32
          %1898 = vsyncadd %s1889, %s1897
          %s1899 = smul.addr %s33, 32
          %s1900 = scalar_lea.hbm %s17, %s1899
          %s1902 = sshll.u32 %s1892, 4
          %s1903 = int_to_ptr.vmem [resolvable:$true] %s1902
          %1905 = dma.vmem_to_hbm [thread:$0]  %s1903, 32, %s1900, %s1889
        $region104: #{tpu_custom_call.1} parent=87 // pred_fallthru
          _
      $region88: #{tpu_custom_call.1} parent=5 // pred_fallthru
        _
      %p1906 = scmp.le.s32.totalorder 2, %s28
      // Predicated region
      $region105: #{tpu_custom_call.1} parent=5 // pred_check
        %p1907 = pneg %p1906
      $region106: #{tpu_custom_call.1} parent=5 // pred_check_branch
        %1909 = sbr.rel (%p1907) target = $region108
      $region107: #{tpu_custom_call.1} parent=5 // pred_region
        %s1910 = ssub.s32 %s28, 2
        // Predicated region
        $region109: #{tpu_custom_call.1} parent=107 // pred_check
          %p1911 = pneg %p424
        $region110: #{tpu_custom_call.1} parent=107 // pred_check_branch
          %1913 = sbr.rel (%p1911) target = $region112
        $region111: #{tpu_custom_call.1} parent=107 // pred_region
          %s1914 = sand.u32 %s409, 1
          %s1915 = scalar_lea.sflag [#allocation4], %s1914
          %s1916 = sand.u32 %s409, 1
          %s1917 = smul.addr %s1916, 2
          %s1918 = scalar_lea.vmem [#allocation8], %s1917
          %1919 = dma.done %s1915, 32
        $region112: #{tpu_custom_call.1} parent=107 // pred_fallthru
          _
      $region108: #{tpu_custom_call.1} parent=5 // pred_fallthru
        _
    $region6: #{tpu_custom_call.1} parent=1 // loop_footer
      %s32 = sadd.s32 1, %s28
    $region7: #{tpu_custom_call.1} parent=1 // loop_footer_branch
      %27 = sbr.rel target = $region3
    $region8: #{tpu_custom_call.1} parent=1 // loop_exit
      _
    %1920 = vsyncpa [#allocation3], 1
    %s1921 = scalar_lea.sflag [#allocation3], 1
    %1922 = vsyncpa %s1921, 1
    %1923 = vsyncpa [#allocation6], 1
    %1924 = vsyncpa [#allocation4], 1
    %s1925 = scalar_lea.sflag [#allocation4], 1
    %1926 = vsyncpa %s1925, 1

// kernel: tpu_custom_call.1
$region0: #{tpu_custom_call.1}
  #allocation0 [shape = 'u32[]', space=smem, size = 0x4, offset = 0x4, fixed_abs, tag = 'smem constant byte address 0x4 - core index']
  #allocation1 [shape = 'u32[144,128]{1,0:T(1,128)}', space=vmem, size = 0x12000, scoped, tag = 'internal scratch']
  %s0 = inlined_call_operand.vmem [shape: f32[2,2,64], index: 0, kind: input, shape index: {}]
  %s1 = inlined_call_operand.vmem [shape: f32[4,16,64], index: 1, kind: input, shape index: {}]
  %s2 = inlined_call_operand.hbm [shape: f32[1,64], index: 2, kind: input, shape index: {}]
  %s3 = inlined_call_operand.hbm [shape: f32[1,64], index: 3, kind: input, shape index: {}]
  %s4 = inlined_call_operand.vmem [shape: f32[64,64], index: 4, kind: input, shape index: {}]
  %s5 = inlined_call_operand.vmem [shape: f32[64,64], index: 5, kind: input, shape index: {}]
  %s6 = inlined_call_operand.vmem [shape: f32[64,64], index: 6, kind: input, shape index: {}]
  %s7 = inlined_call_operand.vmem [shape: f32[64,64], index: 7, kind: input, shape index: {}]
  %s8 = inlined_call_operand.hbm [shape: f32[1,64], index: 8, kind: input, shape index: {}]
  %s9 = inlined_call_operand.vmem [shape: f32[1,64], index: 9, kind: input, shape index: {}]
  %s10 = inlined_call_operand.vmem [shape: f32[1,64], index: 10, kind: input, shape index: {}]
  %s11 = inlined_call_operand.vmem [shape: f32[64,256], index: 11, kind: input, shape index: {}]
  %s12 = inlined_call_operand.vmem [shape: f32[1,256], index: 12, kind: input, shape index: {}]
  %s13 = inlined_call_operand.vmem [shape: f32[256,64], index: 13, kind: input, shape index: {}]
  %s14 = inlined_call_operand.vmem [shape: f32[1,64], index: 14, kind: input, shape index: {}]
  %s15 = inlined_call_operand.vmem [shape: f32[64,4], index: 15, kind: input, shape index: {}]
  %s16 = inlined_call_operand.vmem [shape: f32[4,64], index: 16, kind: input, shape index: {}]
  %s17 = inlined_call_operand.hbm [shape: f32[2,2,64], index: 17, kind: output, shape index: {}]
  %s18 = sld [smem:[#allocation0]]
  $region113: #{tpu_custom_call.1} parent=0
    _
  %s20 = ssub.s32 1, %s18
  %s21 = scalar_select 0, %s20, %s18
  $region1: #{tpu_custom_call.1} parent=0
    #allocation2 [shape = 'u8[512]{0}', space=vmem, size = 0x400, scoped, tag = 'input window, operand 2, single buffered']
    #allocation3 [shape = 's32[2]{0}', space=sflag, size = 0x8, scoped, tag = 'scoped memory for tpu_custom_call.1']
    #allocation4 [shape = 's32[2]{0}', space=sflag, size = 0x8, scoped, tag = 'scoped memory for tpu_custom_call.1']
    #allocation5 [shape = 'u8[512]{0}', space=vmem, size = 0x400, scoped, tag = 'input window, operand 3, single buffered']
    #allocation6 [shape = 's32[1]{0}', space=sflag, size = 0x4, scoped, tag = 'scoped memory for tpu_custom_call.1']
    #allocation7 [shape = 'u8[512]{0}', space=vmem, size = 0x400, scoped, tag = 'input window, operand 8, single buffered']
    #allocation8 [shape = 'u8[2048]{0}', space=vmem, size = 0x800, scoped, tag = 'output window, operand 0']
    %22 = vsyncpa [#allocation3], 0
    %23 = vsyncpa [#allocation6], 0
    %24 = vsyncpa [#allocation4], 0
    %s25 = scalar_lea.sflag [#allocation4], 1
    %26 = vsyncpa %s25, 0
    loop: start=0, step=1, limit=4
    $region2: #{tpu_custom_call.1} parent=1 // loop_pre_header
      _
    $region3: #{tpu_custom_call.1} parent=1 // loop_header
      %s28 = sphi 0, %s32
      %p29 = scmp.ge.s32.totalorder %s28, 4
      %s38 = sphi 0, %s40
      %s41 = sphi 0, %s38
      %s42 = sphi 0, %s41
      %s58 = sphi 0, %s42
      %s64 = sphi 0, %s66
      %s67 = sphi 0, %s64
      %s68 = sphi 0, %s67
      %s84 = sphi 0, %s68
      %s88 = sphi 0, %s88
      %s90 = sphi 0, %s88
      %s91 = sphi 0, %s90
      %s105 = sphi 0, %s91
      %s109 = sphi 0, %s109
      %s111 = sphi 0, %s109
      %s112 = sphi 0, %s111
      %s126 = sphi 0, %s112
      %s130 = sphi 0, %s130
      %s132 = sphi 0, %s130
      %s133 = sphi 0, %s132
      %s147 = sphi 0, %s133
      %s151 = sphi 0, %s151
      %s153 = sphi 0, %s151
      %s154 = sphi 0, %s153
      %s168 = sphi 0, %s154
      %s172 = sphi 0, %s172
      %s174 = sphi 0, %s172
      %s175 = sphi 0, %s174
      %s189 = sphi 0, %s175
      %s193 = sphi 0, %s193
      %s195 = sphi 0, %s193
      %s196 = sphi 0, %s195
      %s210 = sphi 0, %s196
      %s214 = sphi 0, %s214
      %s216 = sphi 0, %s214
      %s217 = sphi 0, %s216
      %s231 = sphi 0, %s217
      %s235 = sphi 0, %s235
      %s237 = sphi 0, %s235
      %s238 = sphi 0, %s237
      %s252 = sphi 0, %s238
      %s256 = sphi 0, %s256
      %s258 = sphi 0, %s256
      %s259 = sphi 0, %s258
      %s273 = sphi 0, %s259
      %s277 = sphi 0, %s277
      %s279 = sphi 0, %s277
      %s280 = sphi 0, %s279
      %s294 = sphi 0, %s280
      %s298 = sphi 0, %s298
      %s300 = sphi 0, %s298
      %s301 = sphi 0, %s300
      %s315 = sphi 0, %s301
      %s319 = sphi 0, %s319
      %s321 = sphi 0, %s319
      %s322 = sphi 0, %s321
      %s336 = sphi 0, %s322
      %s340 = sphi 0, %s340
      %s342 = sphi 0, %s340
      %s343 = sphi 0, %s342
      %s357 = sphi 0, %s343
      %s361 = sphi 0, %s361
      %s363 = sphi 0, %s361
      %s364 = sphi 0, %s363
      %s378 = sphi 0, %s364
      %s382 = sphi 0, %s382
      %s384 = sphi 0, %s382
      %s385 = sphi 0, %s384
      %s399 = sphi 0, %s385
      %s405 = sphi 0, %s407
      %s408 = sphi 0, %s405
      %s409 = sphi 0, %s408
      %s425 = sphi 0, %s409
    $region4: #{tpu_custom_call.1} parent=1 // loop_header_branch
      %31 = sbr.rel (%p29) target = $region8
    $region5: #{tpu_custom_call.1} parent=1 // loop_body
      %s33 = ssub.s32 %s28, 1
      %s34 = ssub.s32 %s28, 2
      %s35 = sadd.s32 %s28, 1
      %s36 = ssub.s32 %s28, %s35
      %p37 = scmp.eq.s32.totalorder %s36, 0
      %s39 = sadd.s32 %s38, 1
      %s40 = scalar_select %p37, %s38, %s39
      %p43 = pneg %p37
      %p44 = scmp.eq.s32.totalorder %s28, 1
      %p45 = por %p43, %p44
      %p46 = scmp.ne.s32.totalorder %s38, %s41
      %p47 = scmp.eq.s32.totalorder %s28, 0
      %p48 = por %p46, %p47
      %p49 = scmp.ne.s32.totalorder %s38, %s41
      %p50 = scmp.eq.s32.totalorder %s33, 1
      %p51 = por %p49, %p50
      %p52 = scmp.ne.s32.totalorder %s41, %s42
      %p53 = scmp.eq.s32.totalorder %s33, 0
      %p54 = por %p52, %p53
      %p55 = scmp.ne.s32.totalorder %s41, %s42
      %p56 = scmp.eq.s32.totalorder %s34, 1
      %p57 = por %p55, %p56
      %p59 = scmp.ne.s32.totalorder %s42, %s58
      %p60 = scmp.eq.s32.totalorder %s34, 0
      %p61 = por %p59, %p60
      %s62 = ssub.s32 %s28, %s35
      %p63 = scmp.eq.s32.totalorder %s62, 0
      %s65 = sadd.s32 %s64, 1
      %s66 = scalar_select %p63, %s64, %s65
      %p69 = pneg %p63
      %p70 = scmp.eq.s32.totalorder %s28, 1
      %p71 = por %p69, %p70
      %p72 = scmp.ne.s32.totalorder %s64, %s67
      %p73 = scmp.eq.s32.totalorder %s28, 0
      %p74 = por %p72, %p73
      %p75 = scmp.ne.s32.totalorder %s64, %s67
      %p76 = scmp.eq.s32.totalorder %s33, 1
      %p77 = por %p75, %p76
      %p78 = scmp.ne.s32.totalorder %s67, %s68
      %p79 = scmp.eq.s32.totalorder %s33, 0
      %p80 = por %p78, %p79
      %p81 = scmp.ne.s32.totalorder %s67, %s68
      %p82 = scmp.eq.s32.totalorder %s34, 1
      %p83 = por %p81, %p82
      %p85 = scmp.ne.s32.totalorder %s68, %s84
      %p86 = scmp.eq.s32.totalorder %s34, 0
      %p87 = por %p85, %p86
      %s89 = sadd.s32 %s88, 1
      %p92 = scmp.eq.s32.totalorder %s28, 1
      %p93 = scmp.ne.s32.totalorder %s88, %s90
      %p94 = scmp.eq.s32.totalorder %s28, 0
      %p95 = por %p93, %p94
      %p96 = scmp.ne.s32.totalorder %s88, %s90
      %p97 = scmp.eq.s32.totalorder %s33, 1
      %p98 = por %p96, %p97
      %p99 = scmp.ne.s32.totalorder %s90, %s91
      %p100 = scmp.eq.s32.totalorder %s33, 0
      %p101 = por %p99, %p100
      %p102 = scmp.ne.s32.totalorder %s90, %s91
      %p103 = scmp.eq.s32.totalorder %s34, 1
      %p104 = por %p102, %p103
      %p106 = scmp.ne.s32.totalorder %s91, %s105
      %p107 = scmp.eq.s32.totalorder %s34, 0
      %p108 = por %p106, %p107
      %s110 = sadd.s32 %s109, 1
      %p113 = scmp.eq.s32.totalorder %s28, 1
      %p114 = scmp.ne.s32.totalorder %s109, %s111
      %p115 = scmp.eq.s32.totalorder %s28, 0
      %p116 = por %p114, %p115
      %p117 = scmp.ne.s32.totalorder %s109, %s111
      %p118 = scmp.eq.s32.totalorder %s33, 1
      %p119 = por %p117, %p118
      %p120 = scmp.ne.s32.totalorder %s111, %s112
      %p121 = scmp.eq.s32.totalorder %s33, 0
      %p122 = por %p120, %p121
      %p123 = scmp.ne.s32.totalorder %s111, %s112
      %p124 = scmp.eq.s32.totalorder %s34, 1
      %p125 = por %p123, %p124
      %p127 = scmp.ne.s32.totalorder %s112, %s126
      %p128 = scmp.eq.s32.totalorder %s34, 0
      %p129 = por %p127, %p128
      %s131 = sadd.s32 %s130, 1
      %p134 = scmp.eq.s32.totalorder %s28, 1
      %p135 = scmp.ne.s32.totalorder %s130, %s132
      %p136 = scmp.eq.s32.totalorder %s28, 0
      %p137 = por %p135, %p136
      %p138 = scmp.ne.s32.totalorder %s130, %s132
      %p139 = scmp.eq.s32.totalorder %s33, 1
      %p140 = por %p138, %p139
      %p141 = scmp.ne.s32.totalorder %s132, %s133
      %p142 = scmp.eq.s32.totalorder %s33, 0
      %p143 = por %p141, %p142
      %p144 = scmp.ne.s32.totalorder %s132, %s133
      %p145 = scmp.eq.s32.totalorder %s34, 1
      %p146 = por %p144, %p145
      %p148 = scmp.ne.s32.totalorder %s133, %s147
      %p149 = scmp.eq.s32.totalorder %s34, 0
      %p150 = por %p148, %p149
      %s152 = sadd.s32 %s151, 1
      %p155 = scmp.eq.s32.totalorder %s28, 1
      %p156 = scmp.ne.s32.totalorder %s151, %s153
      %p157 = scmp.eq.s32.totalorder %s28, 0
      %p158 = por %p156, %p157
      %p159 = scmp.ne.s32.totalorder %s151, %s153
      %p160 = scmp.eq.s32.totalorder %s33, 1
      %p161 = por %p159, %p160
      %p162 = scmp.ne.s32.totalorder %s153, %s154
      %p163 = scmp.eq.s32.totalorder %s33, 0
      %p164 = por %p162, %p163
      %p165 = scmp.ne.s32.totalorder %s153, %s154
      %p166 = scmp.eq.s32.totalorder %s34, 1
      %p167 = por %p165, %p166
      %p169 = scmp.ne.s32.totalorder %s154, %s168
      %p170 = scmp.eq.s32.totalorder %s34, 0
      %p171 = por %p169, %p170
      %s173 = sadd.s32 %s172, 1
      %p176 = scmp.eq.s32.totalorder %s28, 1
      %p177 = scmp.ne.s32.totalorder %s172, %s174
      %p178 = scmp.eq.s32.totalorder %s28, 0
      %p179 = por %p177, %p178
      %p180 = scmp.ne.s32.totalorder %s172, %s174
      %p181 = scmp.eq.s32.totalorder %s33, 1
      %p182 = por %p180, %p181
      %p183 = scmp.ne.s32.totalorder %s174, %s175
      %p184 = scmp.eq.s32.totalorder %s33, 0
      %p185 = por %p183, %p184
      %p186 = scmp.ne.s32.totalorder %s174, %s175
      %p187 = scmp.eq.s32.totalorder %s34, 1
      %p188 = por %p186, %p187
      %p190 = scmp.ne.s32.totalorder %s175, %s189
      %p191 = scmp.eq.s32.totalorder %s34, 0
      %p192 = por %p190, %p191
      %s194 = sadd.s32 %s193, 1
      %p197 = scmp.eq.s32.totalorder %s28, 1
      %p198 = scmp.ne.s32.totalorder %s193, %s195
      %p199 = scmp.eq.s32.totalorder %s28, 0
      %p200 = por %p198, %p199
      %p201 = scmp.ne.s32.totalorder %s193, %s195
      %p202 = scmp.eq.s32.totalorder %s33, 1
      %p203 = por %p201, %p202
      %p204 = scmp.ne.s32.totalorder %s195, %s196
      %p205 = scmp.eq.s32.totalorder %s33, 0
      %p206 = por %p204, %p205
      %p207 = scmp.ne.s32.totalorder %s195, %s196
      %p208 = scmp.eq.s32.totalorder %s34, 1
      %p209 = por %p207, %p208
      %p211 = scmp.ne.s32.totalorder %s196, %s210
      %p212 = scmp.eq.s32.totalorder %s34, 0
      %p213 = por %p211, %p212
      %s215 = sadd.s32 %s214, 1
      %p218 = scmp.eq.s32.totalorder %s28, 1
      %p219 = scmp.ne.s32.totalorder %s214, %s216
      %p220 = scmp.eq.s32.totalorder %s28, 0
      %p221 = por %p219, %p220
      %p222 = scmp.ne.s32.totalorder %s214, %s216
      %p223 = scmp.eq.s32.totalorder %s33, 1
      %p224 = por %p222, %p223
      %p225 = scmp.ne.s32.totalorder %s216, %s217
      %p226 = scmp.eq.s32.totalorder %s33, 0
      %p227 = por %p225, %p226
      %p228 = scmp.ne.s32.totalorder %s216, %s217
      %p229 = scmp.eq.s32.totalorder %s34, 1
      %p230 = por %p228, %p229
      %p232 = scmp.ne.s32.totalorder %s217, %s231
      %p233 = scmp.eq.s32.totalorder %s34, 0
      %p234 = por %p232, %p233
      %s236 = sadd.s32 %s235, 1
      %p239 = scmp.eq.s32.totalorder %s28, 1
      %p240 = scmp.ne.s32.totalorder %s235, %s237
      %p241 = scmp.eq.s32.totalorder %s28, 0
      %p242 = por %p240, %p241
      %p243 = scmp.ne.s32.totalorder %s235, %s237
      %p244 = scmp.eq.s32.totalorder %s33, 1
      %p245 = por %p243, %p244
      %p246 = scmp.ne.s32.totalorder %s237, %s238
      %p247 = scmp.eq.s32.totalorder %s33, 0
      %p248 = por %p246, %p247
      %p249 = scmp.ne.s32.totalorder %s237, %s238
      %p250 = scmp.eq.s32.totalorder %s34, 1
      %p251 = por %p249, %p250
      %p253 = scmp.ne.s32.totalorder %s238, %s252
      %p254 = scmp.eq.s32.totalorder %s34, 0
      %p255 = por %p253, %p254
      %s257 = sadd.s32 %s256, 1
      %p260 = scmp.eq.s32.totalorder %s28, 1
      %p261 = scmp.ne.s32.totalorder %s256, %s258
      %p262 = scmp.eq.s32.totalorder %s28, 0
      %p263 = por %p261, %p262
      %p264 = scmp.ne.s32.totalorder %s256, %s258
      %p265 = scmp.eq.s32.totalorder %s33, 1
      %p266 = por %p264, %p265
      %p267 = scmp.ne.s32.totalorder %s258, %s259
      %p268 = scmp.eq.s32.totalorder %s33, 0
      %p269 = por %p267, %p268
      %p270 = scmp.ne.s32.totalorder %s258, %s259
      %p271 = scmp.eq.s32.totalorder %s34, 1
      %p272 = por %p270, %p271
      %p274 = scmp.ne.s32.totalorder %s259, %s273
      %p275 = scmp.eq.s32.totalorder %s34, 0
      %p276 = por %p274, %p275
      %s278 = sadd.s32 %s277, 1
      %p281 = scmp.eq.s32.totalorder %s28, 1
      %p282 = scmp.ne.s32.totalorder %s277, %s279
      %p283 = scmp.eq.s32.totalorder %s28, 0
      %p284 = por %p282, %p283
      %p285 = scmp.ne.s32.totalorder %s277, %s279
      %p286 = scmp.eq.s32.totalorder %s33, 1
      %p287 = por %p285, %p286
      %p288 = scmp.ne.s32.totalorder %s279, %s280
      %p289 = scmp.eq.s32.totalorder %s33, 0
      %p290 = por %p288, %p289
      %p291 = scmp.ne.s32.totalorder %s279, %s280
      %p292 = scmp.eq.s32.totalorder %s34, 1
      %p293 = por %p291, %p292
      %p295 = scmp.ne.s32.totalorder %s280, %s294
      %p296 = scmp.eq.s32.totalorder %s34, 0
      %p297 = por %p295, %p296
      %s299 = sadd.s32 %s298, 1
      %p302 = scmp.eq.s32.totalorder %s28, 1
      %p303 = scmp.ne.s32.totalorder %s298, %s300
      %p304 = scmp.eq.s32.totalorder %s28, 0
      %p305 = por %p303, %p304
      %p306 = scmp.ne.s32.totalorder %s298, %s300
      %p307 = scmp.eq.s32.totalorder %s33, 1
      %p308 = por %p306, %p307
      %p309 = scmp.ne.s32.totalorder %s300, %s301
      %p310 = scmp.eq.s32.totalorder %s33, 0
      %p311 = por %p309, %p310
      %p312 = scmp.ne.s32.totalorder %s300, %s301
      %p313 = scmp.eq.s32.totalorder %s34, 1
      %p314 = por %p312, %p313
      %p316 = scmp.ne.s32.totalorder %s301, %s315
      %p317 = scmp.eq.s32.totalorder %s34, 0
      %p318 = por %p316, %p317
      %s320 = sadd.s32 %s319, 1
      %p323 = scmp.eq.s32.totalorder %s28, 1
      %p324 = scmp.ne.s32.totalorder %s319, %s321
      %p325 = scmp.eq.s32.totalorder %s28, 0
      %p326 = por %p324, %p325
      %p327 = scmp.ne.s32.totalorder %s319, %s321
      %p328 = scmp.eq.s32.totalorder %s33, 1
      %p329 = por %p327, %p328
      %p330 = scmp.ne.s32.totalorder %s321, %s322
      %p331 = scmp.eq.s32.totalorder %s33, 0
      %p332 = por %p330, %p331
      %p333 = scmp.ne.s32.totalorder %s321, %s322
      %p334 = scmp.eq.s32.totalorder %s34, 1
      %p335 = por %p333, %p334
      %p337 = scmp.ne.s32.totalorder %s322, %s336
      %p338 = scmp.eq.s32.totalorder %s34, 0
      %p339 = por %p337, %p338
      %s341 = sadd.s32 %s340, 1
      %p344 = scmp.eq.s32.totalorder %s28, 1
      %p345 = scmp.ne.s32.totalorder %s340, %s342
      %p346 = scmp.eq.s32.totalorder %s28, 0
      %p347 = por %p345, %p346
      %p348 = scmp.ne.s32.totalorder %s340, %s342
      %p349 = scmp.eq.s32.totalorder %s33, 1
      %p350 = por %p348, %p349
      %p351 = scmp.ne.s32.totalorder %s342, %s343
      %p352 = scmp.eq.s32.totalorder %s33, 0
      %p353 = por %p351, %p352
      %p354 = scmp.ne.s32.totalorder %s342, %s343
      %p355 = scmp.eq.s32.totalorder %s34, 1
      %p356 = por %p354, %p355
      %p358 = scmp.ne.s32.totalorder %s343, %s357
      %p359 = scmp.eq.s32.totalorder %s34, 0
      %p360 = por %p358, %p359
      %s362 = sadd.s32 %s361, 1
      %p365 = scmp.eq.s32.totalorder %s28, 1
      %p366 = scmp.ne.s32.totalorder %s361, %s363
      %p367 = scmp.eq.s32.totalorder %s28, 0
      %p368 = por %p366, %p367
      %p369 = scmp.ne.s32.totalorder %s361, %s363
      %p370 = scmp.eq.s32.totalorder %s33, 1
      %p371 = por %p369, %p370
      %p372 = scmp.ne.s32.totalorder %s363, %s364
      %p373 = scmp.eq.s32.totalorder %s33, 0
      %p374 = por %p372, %p373
      %p375 = scmp.ne.s32.totalorder %s363, %s364
      %p376 = scmp.eq.s32.totalorder %s34, 1
      %p377 = por %p375, %p376
      %p379 = scmp.ne.s32.totalorder %s364, %s378
      %p380 = scmp.eq.s32.totalorder %s34, 0
      %p381 = por %p379, %p380
      %s383 = sadd.s32 %s382, 1
      %p386 = scmp.eq.s32.totalorder %s28, 1
      %p387 = scmp.ne.s32.totalorder %s382, %s384
      %p388 = scmp.eq.s32.totalorder %s28, 0
      %p389 = por %p387, %p388
      %p390 = scmp.ne.s32.totalorder %s382, %s384
      %p391 = scmp.eq.s32.totalorder %s33, 1
      %p392 = por %p390, %p391
      %p393 = scmp.ne.s32.totalorder %s384, %s385
      %p394 = scmp.eq.s32.totalorder %s33, 0
      %p395 = por %p393, %p394
      %p396 = scmp.ne.s32.totalorder %s384, %s385
      %p397 = scmp.eq.s32.totalorder %s34, 1
      %p398 = por %p396, %p397
      %p400 = scmp.ne.s32.totalorder %s385, %s399
      %p401 = scmp.eq.s32.totalorder %s34, 0
      %p402 = por %p400, %p401
      %s403 = ssub.s32 %s28, %s35
      %p404 = scmp.eq.s32.totalorder %s403, 0
      %s406 = sadd.s32 %s405, 1
      %s407 = scalar_select %p404, %s405, %s406
      %p410 = pneg %p404
      %p411 = scmp.eq.s32.totalorder %s28, 1
      %p412 = por %p410, %p411
      %p413 = scmp.ne.s32.totalorder %s405, %s408
      %p414 = scmp.eq.s32.totalorder %s28, 0
      %p415 = por %p413, %p414
      %p416 = scmp.ne.s32.totalorder %s405, %s408
      %p417 = scmp.eq.s32.totalorder %s33, 1
      %p418 = por %p416, %p417
      %p419 = scmp.ne.s32.totalorder %s408, %s409
      %p420 = scmp.eq.s32.totalorder %s33, 0
      %p421 = por %p419, %p420
      %p422 = scmp.ne.s32.totalorder %s408, %s409
      %p423 = scmp.eq.s32.totalorder %s34, 1
      %p424 = por %p422, %p423
      %p426 = scmp.ne.s32.totalorder %s409, %s425
      %p427 = scmp.eq.s32.totalorder %s34, 0
      %p428 = por %p426, %p427
      %p429 = scmp.le.s32.totalorder 1, %s28
      %p430 = scmp.lt.s32.totalorder %s28, 3
      %p431 = pnand %p429, %p430
      %p432 = pneg %p431
      // Predicated region
      $region9: #{tpu_custom_call.1} parent=5 // pred_check
        _
      $region10: #{tpu_custom_call.1} parent=5 // pred_check_branch
        %434 = sbr.rel (%p431) target = $region12
      $region11: #{tpu_custom_call.1} parent=5 // pred_region
        %s435 = ssub.s32 %s28, 1
        // Predicated region
        $region13: #{tpu_custom_call.1} parent=11 // pred_check
          %p436 = pneg %p101
        $region14: #{tpu_custom_call.1} parent=11 // pred_check_branch
          %438 = sbr.rel (%p436) target = $region16
        $region15: #{tpu_custom_call.1} parent=11 // pred_region
          %s440 = ssub.s32 16, 16
          %441 = vsyncadd [#allocation3], %s440
          %s443 = sshll.u32 [#allocation2], 4
          %s444 = int_to_ptr.vmem [resolvable:$true] %s443
          %446 = dma.hbm_to_vmem [thread:$0]  %s2, 16, %s444, [#allocation3]
        $region16: #{tpu_custom_call.1} parent=11 // pred_fallthru
          _
        // Predicated region
        $region17: #{tpu_custom_call.1} parent=11 // pred_check
          %p447 = pneg %p122
        $region18: #{tpu_custom_call.1} parent=11 // pred_check_branch
          %449 = sbr.rel (%p447) target = $region20
        $region19: #{tpu_custom_call.1} parent=11 // pred_region
          %s451 = ssub.s32 16, 16
          %452 = vsyncadd [#allocation6], %s451
          %s454 = sshll.u32 [#allocation5], 4
          %s455 = int_to_ptr.vmem [resolvable:$true] %s454
          %457 = dma.hbm_to_vmem [thread:$0]  %s3, 16, %s455, [#allocation6]
        $region20: #{tpu_custom_call.1} parent=11 // pred_fallthru
          _
        // Predicated region
        $region21: #{tpu_custom_call.1} parent=11 // pred_check
          %p458 = pneg %p143
        $region22: #{tpu_custom_call.1} parent=11 // pred_check_branch
          %460 = sbr.rel (%p458) target = $region24
        $region23: #{tpu_custom_call.1} parent=11 // pred_region
          _
        $region24: #{tpu_custom_call.1} parent=11 // pred_fallthru
          _
        // Predicated region
        $region25: #{tpu_custom_call.1} parent=11 // pred_check
          %p461 = pneg %p164
        $region26: #{tpu_custom_call.1} parent=11 // pred_check_branch
          %463 = sbr.rel (%p461) target = $region28
        $region27: #{tpu_custom_call.1} parent=11 // pred_region
          _
        $region28: #{tpu_custom_call.1} parent=11 // pred_fallthru
          _
        // Predicated region
        $region29: #{tpu_custom_call.1} parent=11 // pred_check
          %p464 = pneg %p185
        $region30: #{tpu_custom_call.1} parent=11 // pred_check_branch
          %466 = sbr.rel (%p464) target = $region32
        $region31: #{tpu_custom_call.1} parent=11 // pred_region
          _
        $region32: #{tpu_custom_call.1} parent=11 // pred_fallthru
          _
        // Predicated region
        $region33: #{tpu_custom_call.1} parent=11 // pred_check
          %p467 = pneg %p206
        $region34: #{tpu_custom_call.1} parent=11 // pred_check_branch
          %469 = sbr.rel (%p467) target = $region36
        $region35: #{tpu_custom_call.1} parent=11 // pred_region
          _
        $region36: #{tpu_custom_call.1} parent=11 // pred_fallthru
          _
        // Predicated region
        $region37: #{tpu_custom_call.1} parent=11 // pred_check
          %p470 = pneg %p227
        $region38: #{tpu_custom_call.1} parent=11 // pred_check_branch
          %472 = sbr.rel (%p470) target = $region40
        $region39: #{tpu_custom_call.1} parent=11 // pred_region
          %s474 = ssub.s32 16, 16
          %475 = vsyncadd [#allocation6], %s474
          %s477 = sshll.u32 [#allocation7], 4
          %s478 = int_to_ptr.vmem [resolvable:$true] %s477
          %480 = dma.hbm_to_vmem [thread:$0]  %s8, 16, %s478, [#allocation6]
        $region40: #{tpu_custom_call.1} parent=11 // pred_fallthru
          _
        // Predicated region
        $region41: #{tpu_custom_call.1} parent=11 // pred_check
          %p481 = pneg %p248
        $region42: #{tpu_custom_call.1} parent=11 // pred_check_branch
          %483 = sbr.rel (%p481) target = $region44
        $region43: #{tpu_custom_call.1} parent=11 // pred_region
          _
        $region44: #{tpu_custom_call.1} parent=11 // pred_fallthru
          _
        // Predicated region
        $region45: #{tpu_custom_call.1} parent=11 // pred_check
          %p484 = pneg %p269
        $region46: #{tpu_custom_call.1} parent=11 // pred_check_branch
          %486 = sbr.rel (%p484) target = $region48
        $region47: #{tpu_custom_call.1} parent=11 // pred_region
          _
        $region48: #{tpu_custom_call.1} parent=11 // pred_fallthru
          _
        // Predicated region
        $region49: #{tpu_custom_call.1} parent=11 // pred_check
          %p487 = pneg %p290
        $region50: #{tpu_custom_call.1} parent=11 // pred_check_branch
          %489 = sbr.rel (%p487) target = $region52
        $region51: #{tpu_custom_call.1} parent=11 // pred_region
          _
        $region52: #{tpu_custom_call.1} parent=11 // pred_fallthru
          _
        // Predicated region
        $region53: #{tpu_custom_call.1} parent=11 // pred_check
          %p490 = pneg %p311
        $region54: #{tpu_custom_call.1} parent=11 // pred_check_branch
          %492 = sbr.rel (%p490) target = $region56
        $region55: #{tpu_custom_call.1} parent=11 // pred_region
          _
        $region56: #{tpu_custom_call.1} parent=11 // pred_fallthru
          _
        // Predicated region
        $region57: #{tpu_custom_call.1} parent=11 // pred_check
          %p493 = pneg %p332
        $region58: #{tpu_custom_call.1} parent=11 // pred_check_branch
          %495 = sbr.rel (%p493) target = $region60
        $region59: #{tpu_custom_call.1} parent=11 // pred_region
          _
        $region60: #{tpu_custom_call.1} parent=11 // pred_fallthru
          _
        // Predicated region
        $region61: #{tpu_custom_call.1} parent=11 // pred_check
          %p496 = pneg %p353
        $region62: #{tpu_custom_call.1} parent=11 // pred_check_branch
          %498 = sbr.rel (%p496) target = $region64
        $region63: #{tpu_custom_call.1} parent=11 // pred_region
          _
        $region64: #{tpu_custom_call.1} parent=11 // pred_fallthru
          _
        // Predicated region
        $region65: #{tpu_custom_call.1} parent=11 // pred_check
          %p499 = pneg %p374
        $region66: #{tpu_custom_call.1} parent=11 // pred_check_branch
          %501 = sbr.rel (%p499) target = $region68
        $region67: #{tpu_custom_call.1} parent=11 // pred_region
          _
        $region68: #{tpu_custom_call.1} parent=11 // pred_fallthru
          _
        // Predicated region
        $region69: #{tpu_custom_call.1} parent=11 // pred_check
          %p502 = pneg %p395
        $region70: #{tpu_custom_call.1} parent=11 // pred_check_branch
          %504 = sbr.rel (%p502) target = $region72
        $region71: #{tpu_custom_call.1} parent=11 // pred_region
          _
        $region72: #{tpu_custom_call.1} parent=11 // pred_fallthru
          _
      $region12: #{tpu_custom_call.1} parent=5 // pred_fallthru
        _
      %p505 = scmp.lt.s32.totalorder %s28, 2
      // Predicated region
      $region73: #{tpu_custom_call.1} parent=5 // pred_check
        %p506 = pneg %p505
      $region74: #{tpu_custom_call.1} parent=5 // pred_check_branch
        %508 = sbr.rel (%p506) target = $region76
      $region75: #{tpu_custom_call.1} parent=5 // pred_region
        // Predicated region
        $region77: #{tpu_custom_call.1} parent=75 // pred_check
          %p509 = pneg %p48
        $region78: #{tpu_custom_call.1} parent=75 // pred_check_branch
          %511 = sbr.rel (%p509) target = $region80
        $region79: #{tpu_custom_call.1} parent=75 // pred_region
          %p512 = scmp.lt.s32.totalorder %s28, 1
          %s513 = scalar_select %p512, %s28, 1
          %s514 = smul.addr %s513, 2
          %s515 = scalar_lea.vmem %s0, %s514
        $region80: #{tpu_custom_call.1} parent=75 // pred_fallthru
          _
        // Predicated region
        $region81: #{tpu_custom_call.1} parent=75 // pred_check
          %p516 = pneg %p74
        $region82: #{tpu_custom_call.1} parent=75 // pred_check_branch
          %518 = sbr.rel (%p516) target = $region84
        $region83: #{tpu_custom_call.1} parent=75 // pred_region
          %s519 = smul.u32 2, %s28
          %p520 = scmp.lt.s32.totalorder %s519, 3
          %s521 = scalar_select %p520, %s519, 3
          %s522 = smul.addr %s521, 2
          %s523 = smul.addr %s522, 8
          %s524 = scalar_lea.vmem %s1, %s523
          %s525 = smul.u32 2, %s28
        $region84: #{tpu_custom_call.1} parent=75 // pred_fallthru
          _
      $region76: #{tpu_custom_call.1} parent=5 // pred_fallthru
        _
      %p526 = scmp.le.s32.totalorder 1, %s28
      %p527 = scmp.lt.s32.totalorder %s28, 3
      %p528 = pnand %p526, %p527
      %p529 = pneg %p528
      // Predicated region
      $region85: #{tpu_custom_call.1} parent=5 // pred_check
        _
      $region86: #{tpu_custom_call.1} parent=5 // pred_check_branch
        %531 = sbr.rel (%p528) target = $region88
      $region87: #{tpu_custom_call.1} parent=5 // pred_region
        %s532 = ssub.s32 %s28, 1
        // Predicated region
        $region89: #{tpu_custom_call.1} parent=87 // pred_check
          %p533 = pneg %p101
        $region90: #{tpu_custom_call.1} parent=87 // pred_check_branch
          %535 = sbr.rel (%p533) target = $region92
        $region91: #{tpu_custom_call.1} parent=87 // pred_region
          %536 = dma.done [#allocation3], 16
        $region92: #{tpu_custom_call.1} parent=87 // pred_fallthru
          _
        // Predicated region
        $region93: #{tpu_custom_call.1} parent=87 // pred_check
          %p537 = pneg %p122
        $region94: #{tpu_custom_call.1} parent=87 // pred_check_branch
          %539 = sbr.rel (%p537) target = $region96
        $region95: #{tpu_custom_call.1} parent=87 // pred_region
          %540 = dma.done [#allocation6], 16
        $region96: #{tpu_custom_call.1} parent=87 // pred_fallthru
          _
        // Predicated region
        $region97: #{tpu_custom_call.1} parent=87 // pred_check
          %p541 = pneg %p227
        $region98: #{tpu_custom_call.1} parent=87 // pred_check_branch
          %543 = sbr.rel (%p541) target = $region100
        $region99: #{tpu_custom_call.1} parent=87 // pred_region
          %544 = dma.done [#allocation6], 16
        $region100: #{tpu_custom_call.1} parent=87 // pred_fallthru
          _
        %p545 = scmp.lt.s32.totalorder %s33, 1
        %s546 = scalar_select %p545, %s33, 1
        %s547 = smul.addr %s546, 2
        %s548 = scalar_lea.vmem %s0, %s547
        %p549 = pneg %p54
        %p550 = pneg %p51
        %s551 = smul.u32 2, %s33
        %p552 = scmp.lt.s32.totalorder %s551, 3
        %s553 = scalar_select %p552, %s551, 3
        %s554 = smul.addr %s553, 2
        %s555 = smul.addr %s554, 8
        %s556 = scalar_lea.vmem %s1, %s555
        %p557 = pneg %p80
        %p558 = pneg %p77
        %p559 = pneg %p101
        %p560 = pneg %p98
        %p561 = pneg %p122
        %p562 = pneg %p119
        %p563 = pneg %p143
        %p564 = pneg %p140
        %p565 = pneg %p164
        %p566 = pneg %p161
        %p567 = pneg %p185
        %p568 = pneg %p182
        %p569 = pneg %p206
        %p570 = pneg %p203
        %p571 = pneg %p227
        %p572 = pneg %p224
        %p573 = pneg %p248
        %p574 = pneg %p245
        %p575 = pneg %p269
        %p576 = pneg %p266
        %p577 = pneg %p290
        %p578 = pneg %p287
        %p579 = pneg %p311
        %p580 = pneg %p308
        %p581 = pneg %p332
        %p582 = pneg %p329
        %p583 = pneg %p353
        %p584 = pneg %p350
        %p585 = pneg %p374
        %p586 = pneg %p371
        %p587 = pneg %p395
        %p588 = pneg %p392
        %p589 = pneg %p421
        %p590 = pneg %p418
        %s591 = sand.u32 %s408, 1
        %s592 = scalar_lea.sflag [#allocation4], %s591
        %s593 = sand.u32 %s408, 1
        %s594 = smul.addr %s593, 2
        %s595 = scalar_lea.vmem [#allocation8], %s594
        %p596 = scmp.lt.s32.totalorder %s33, 1
        %s597 = scalar_select %p596, %s33, 1
        %s598 = smul.addr %s597, 2
        %s599 = scalar_lea.vmem %s0, %s598
        %s600 = smul.u32 2, %s33
        %p601 = scmp.lt.s32.totalorder %s600, 3
        %s602 = scalar_select %p601, %s600, 3
        %s603 = smul.addr %s602, 2
        %s604 = smul.addr %s603, 8
        %s605 = scalar_lea.vmem %s1, %s604
        %s606 = smul.u32 2, %s33
        %v607 = vld [vmem:[%s599] sm:$0x3]
        %v608 = vld [vmem:[%s605] sm:$0xff]
        %v609 = vld [vmem:[%s605 + $0x8] sm:$0xff]
        %v610 = vld [vmem:[%s605 + $0x10] sm:$0xff]
        %v611 = vld [vmem:[%s605 + $0x18] sm:$0xff]
        %v612 = vld [vmem:[#allocation2] sm:$0x1]
        %v613 = vld [vmem:[#allocation5] sm:$0x1]
        %vm614 = vcmask 517120
        %v615 = vsel %vm614, %v607, 0.0
        %616 = vadd.xlane.f32.xlu0 %v615
        %v617 = vpop.xlane.xlu0 %616
        %v618 = vrcp.pop 64.0
        %v619 = vmul.f32 %v617, %v618
        %v620 = vsub.f32 %v607, %v619
        %v621 = vmul.f32 %v620, %v620
        %v622 = vsel %vm614, %v621, 0.0
        %623 = vadd.xlane.f32.xlu0 %v622
        %v624 = vpop.xlane.xlu0 %623
        %v625 = vmul.f32 %v624, %v618
        %v626 = vadd.f32 %v625, 1e-05
        %v627 = vrsqrt.pop %v626
        %v628 = vmul.f32 %v620, %v627
        %v630 = vlaneseq
        %v631 = vshrl.u32 %v630, 7
        %v632 = vsub.s32 0, %v631
        %v633 = vrot.slane %v612, %v632
        %v635 = vmul.f32 %v628, %v633
        %v637 = vlaneseq
        %v638 = vshrl.u32 %v637, 7
        %v639 = vsub.s32 0, %v638
        %v640 = vrot.slane %v613, %v639
        %v642 = vadd.f32 %v635, %v640
        %vm643 = vcmask 523264
        %v644 = vsel %vm643, %v608, 0.0
        %645 = vadd.xlane.f32.xlu0 %v644
        %v646 = vpop.xlane.xlu0 %645
        %v647 = vsel %vm643, %v609, 0.0
        %648 = vadd.xlane.f32.xlu0 %v647
        %v649 = vpop.xlane.xlu0 %648
        %v650 = vsel %vm643, %v610, 0.0
        %651 = vadd.xlane.f32.xlu0 %v650
        %v652 = vpop.xlane.xlu0 %651
        %v653 = vsel %vm643, %v611, 0.0
        %654 = vadd.xlane.f32.xlu0 %v653
        %v655 = vpop.xlane.xlu0 %654
        %v656 = vmul.f32 %v646, %v618
        %v657 = vmul.f32 %v649, %v618
        %v658 = vmul.f32 %v652, %v618
        %v659 = vmul.f32 %v655, %v618
        %v660 = vsub.f32 %v608, %v656
        %v661 = vsub.f32 %v609, %v657
        %v662 = vsub.f32 %v610, %v658
        %v663 = vsub.f32 %v611, %v659
        %v664 = vmul.f32 %v660, %v660
        %v665 = vmul.f32 %v661, %v661
        %v666 = vmul.f32 %v662, %v662
        %v667 = vmul.f32 %v663, %v663
        %v668 = vsel %vm643, %v664, 0.0
        %669 = vadd.xlane.f32.xlu0 %v668
        %v670 = vpop.xlane.xlu0 %669
        %v671 = vsel %vm643, %v665, 0.0
        %672 = vadd.xlane.f32.xlu0 %v671
        %v673 = vpop.xlane.xlu0 %672
        %v674 = vsel %vm643, %v666, 0.0
        %675 = vadd.xlane.f32.xlu0 %v674
        %v676 = vpop.xlane.xlu0 %675
        %v677 = vsel %vm643, %v667, 0.0
        %678 = vadd.xlane.f32.xlu0 %v677
        %v679 = vpop.xlane.xlu0 %678
        %v680 = vmul.f32 %v670, %v618
        %v681 = vmul.f32 %v673, %v618
        %v682 = vmul.f32 %v676, %v618
        %v683 = vmul.f32 %v679, %v618
        %v684 = vadd.f32 %v680, 1e-05
        %v685 = vadd.f32 %v681, 1e-05
        %v686 = vadd.f32 %v682, 1e-05
        %v687 = vadd.f32 %v683, 1e-05
        %v688 = vrsqrt.pop %v684
        %v689 = vrsqrt.pop %v685
        %v690 = vrsqrt.pop %v686
        %v691 = vrsqrt.pop %v687
        %v692 = vmul.f32 %v660, %v688
        %v693 = vmul.f32 %v661, %v689
        %v694 = vmul.f32 %v662, %v690
        %v695 = vmul.f32 %v663, %v691
        %v696 = vmul.f32 %v692, %v633
        %v697 = vmul.f32 %v693, %v633
        %v698 = vmul.f32 %v694, %v633
        %v699 = vmul.f32 %v695, %v633
        %v700 = vadd.f32 %v696, %v640
        %v701 = vadd.f32 %v697, %v640
        %v702 = vadd.f32 %v698, %v640
        %v703 = vadd.f32 %v699, %v640
        %v704 = vld [vmem:[%s4] sm:$0xff]
        %v705 = vld [vmem:[%s4 + $0x8] sm:$0xff]
        %v706 = vld [vmem:[%s4 + $0x10] sm:$0xff]
        %v707 = vld [vmem:[%s4 + $0x18] sm:$0xff]
        %v708 = vld [vmem:[%s4 + $0x20] sm:$0xff]
        %v709 = vld [vmem:[%s4 + $0x28] sm:$0xff]
        %v710 = vld [vmem:[%s4 + $0x30] sm:$0xff]
        %v711 = vld [vmem:[%s4 + $0x38] sm:$0xff]
        %v713 = vsel %vm643, %v642, 0
        %715 = vmatprep.subr.mxu0 0.0
        %716 = vmatpush1.msra.mxu0 0.0
        %717 = vmatprep.subr.mxu0 0.0
        %718 = vmatpush1.msra.mxu0 0.0
        %719 = vmatprep.subr.mxu0 0.0
        %720 = vmatpush1.msra.mxu0 0.0
        %721 = vmatprep.subr.mxu0 0.0
        %722 = vmatpush1.msra.mxu0 0.0
        %723 = vmatprep.subr.mxu0 0.0
        %724 = vmatpush1.msra.mxu0 0.0
        %725 = vmatprep.subr.mxu0 0.0
        %726 = vmatpush1.msra.mxu0 0.0
        %727 = vmatprep.subr.mxu0 0.0
        %728 = vmatpush1.msra.mxu0 0.0
        %729 = vmatprep.subr.mxu0 0.0
        %730 = vmatpush1.msra.mxu0 0.0
        %731 = vmatprep.subr.mxu0 0.0
        %732 = vmatpush1.msra.mxu0 %v711
        %733 = vmatprep.subr.mxu0 0.0
        %734 = vmatpush1.msra.mxu0 %v710
        %735 = vmatprep.subr.mxu0 0.0
        %736 = vmatpush1.msra.mxu0 %v709
        %737 = vmatprep.subr.mxu0 0.0
        %738 = vmatpush1.msra.mxu0 %v708
        %739 = vmatprep.subr.mxu0 0.0
        %740 = vmatpush1.msra.mxu0 %v707
        %741 = vmatprep.subr.mxu0 0.0
        %742 = vmatpush1.msra.mxu0 %v706
        %743 = vmatprep.subr.mxu0 0.0
        %744 = vmatpush1.msra.mxu0 %v705
        %745 = vmatprep.subr.mxu0 0.0
        %746 = vmatpush1.msra.mxu0 %v704
        %747 = vmatprep.subr.mxu0 0.0
        %748 = vmatpush2.msra.mxu0 0.0
        %749 = vmatprep.subr.mxu0 0.0
        %750 = vmatpush2.msra.mxu0 0.0
        %751 = vmatprep.subr.mxu0 0.0
        %752 = vmatpush2.msra.mxu0 0.0
        %753 = vmatprep.subr.mxu0 0.0
        %754 = vmatpush2.msra.mxu0 0.0
        %755 = vmatprep.subr.mxu0 0.0
        %756 = vmatpush2.msra.mxu0 0.0
        %757 = vmatprep.subr.mxu0 0.0
        %758 = vmatpush2.msra.mxu0 0.0
        %759 = vmatprep.subr.mxu0 0.0
        %760 = vmatpush2.msra.mxu0 0.0
        %761 = vmatprep.subr.mxu0 0.0
        %762 = vmatpush2.msra.mxu0 0.0
        %763 = vmatprep.subr.mxu0 0.0
        %764 = vmatpush2.msra.mxu0 0.0
        %765 = vmatprep.subr.mxu0 0.0
        %766 = vmatpush2.msra.mxu0 0.0
        %767 = vmatprep.subr.mxu0 0.0
        %768 = vmatpush2.msra.mxu0 0.0
        %769 = vmatprep.subr.mxu0 0.0
        %770 = vmatpush2.msra.mxu0 0.0
        %771 = vmatprep.subr.mxu0 0.0
        %772 = vmatpush2.msra.mxu0 0.0
        %773 = vmatprep.subr.mxu0 0.0
        %774 = vmatpush2.msra.mxu0 0.0
        %775 = vmatprep.subr.mxu0 0.0
        %776 = vmatpush2.msra.mxu0 0.0
        %777 = vmatprep.subr.mxu0 0.0
        %778 = vmatpush2.msra.mxu0 0.0
        %779 = vmatprep.mubr.f32.mxu0 0.0
        %780 = vmatmul.mubr.f32.gmra.mxu0 %v713
        %v781 = vpop.f32.mrf.mxu0
        %v782 = vadd.f32 0.0, %v781
        %v783 = vpop.f32.mrf.mxu0
        %784 = vdwg.mxu0
        %v785 = vld [vmem:[%s5] sm:$0xff]
        %v786 = vld [vmem:[%s5 + $0x8] sm:$0xff]
        %v787 = vld [vmem:[%s5 + $0x10] sm:$0xff]
        %v788 = vld [vmem:[%s5 + $0x18] sm:$0xff]
        %v789 = vld [vmem:[%s5 + $0x20] sm:$0xff]
        %v790 = vld [vmem:[%s5 + $0x28] sm:$0xff]
        %v791 = vld [vmem:[%s5 + $0x30] sm:$0xff]
        %v792 = vld [vmem:[%s5 + $0x38] sm:$0xff]
        %v794 = vsel %vm643, %v700, 0
        %v797 = vsel %vm643, %v701, 0
        %v800 = vsel %vm643, %v702, 0
        %v803 = vsel %vm643, %v703, 0
        %805 = vmatprep.subr.mxu0 0.0
        %806 = vmatpush1.msra.mxu0 0.0
        %807 = vmatprep.subr.mxu0 0.0
        %808 = vmatpush1.msra.mxu0 0.0
        %809 = vmatprep.subr.mxu0 0.0
        %810 = vmatpush1.msra.mxu0 0.0
        %811 = vmatprep.subr.mxu0 0.0
        %812 = vmatpush1.msra.mxu0 0.0
        %813 = vmatprep.subr.mxu0 0.0
        %814 = vmatpush1.msra.mxu0 0.0
        %815 = vmatprep.subr.mxu0 0.0
        %816 = vmatpush1.msra.mxu0 0.0
        %817 = vmatprep.subr.mxu0 0.0
        %818 = vmatpush1.msra.mxu0 0.0
        %819 = vmatprep.subr.mxu0 0.0
        %820 = vmatpush1.msra.mxu0 0.0
        %821 = vmatprep.subr.mxu0 0.0
        %822 = vmatpush1.msra.mxu0 %v792
        %823 = vmatprep.subr.mxu0 0.0
        %824 = vmatpush1.msra.mxu0 %v791
        %825 = vmatprep.subr.mxu0 0.0
        %826 = vmatpush1.msra.mxu0 %v790
        %827 = vmatprep.subr.mxu0 0.0
        %828 = vmatpush1.msra.mxu0 %v789
        %829 = vmatprep.subr.mxu0 0.0
        %830 = vmatpush1.msra.mxu0 %v788
        %831 = vmatprep.subr.mxu0 0.0
        %832 = vmatpush1.msra.mxu0 %v787
        %833 = vmatprep.subr.mxu0 0.0
        %834 = vmatpush1.msra.mxu0 %v786
        %835 = vmatprep.subr.mxu0 0.0
        %836 = vmatpush1.msra.mxu0 %v785
        %837 = vmatprep.subr.mxu0 0.0
        %838 = vmatpush2.msra.mxu0 0.0
        %839 = vmatprep.subr.mxu0 0.0
        %840 = vmatpush2.msra.mxu0 0.0
        %841 = vmatprep.subr.mxu0 0.0
        %842 = vmatpush2.msra.mxu0 0.0
        %843 = vmatprep.subr.mxu0 0.0
        %844 = vmatpush2.msra.mxu0 0.0
        %845 = vmatprep.subr.mxu0 0.0
        %846 = vmatpush2.msra.mxu0 0.0
        %847 = vmatprep.subr.mxu0 0.0
        %848 = vmatpush2.msra.mxu0 0.0
        %849 = vmatprep.subr.mxu0 0.0
        %850 = vmatpush2.msra.mxu0 0.0
        %851 = vmatprep.subr.mxu0 0.0
        %852 = vmatpush2.msra.mxu0 0.0
        %853 = vmatprep.subr.mxu0 0.0
        %854 = vmatpush2.msra.mxu0 0.0
        %855 = vmatprep.subr.mxu0 0.0
        %856 = vmatpush2.msra.mxu0 0.0
        %857 = vmatprep.subr.mxu0 0.0
        %858 = vmatpush2.msra.mxu0 0.0
        %859 = vmatprep.subr.mxu0 0.0
        %860 = vmatpush2.msra.mxu0 0.0
        %861 = vmatprep.subr.mxu0 0.0
        %862 = vmatpush2.msra.mxu0 0.0
        %863 = vmatprep.subr.mxu0 0.0
        %864 = vmatpush2.msra.mxu0 0.0
        %865 = vmatprep.subr.mxu0 0.0
        %866 = vmatpush2.msra.mxu0 0.0
        %867 = vmatprep.subr.mxu0 0.0
        %868 = vmatpush2.msra.mxu0 0.0
        %869 = vmatprep.mubr.f32.mxu0 0.0
        %870 = vmatmul.mubr.f32.gmra.mxu0 %v794
        %v871 = vpop.f32.mrf.mxu0
        %v872 = vadd.f32 0.0, %v871
        %v873 = vpop.f32.mrf.mxu0
        %874 = vmatprep.mubr.f32.mxu0 0.0
        %875 = vmatmul.mubr.f32.gmra.mxu0 %v797
        %v876 = vpop.f32.mrf.mxu0
        %v877 = vadd.f32 0.0, %v876
        %v878 = vpop.f32.mrf.mxu0
        %879 = vmatprep.mubr.f32.mxu0 0.0
        %880 = vmatmul.mubr.f32.gmra.mxu0 %v800
        %v881 = vpop.f32.mrf.mxu0
        %v882 = vadd.f32 0.0, %v881
        %v883 = vpop.f32.mrf.mxu0
        %884 = vmatprep.mubr.f32.mxu0 0.0
        %885 = vmatmul.mubr.f32.gmra.mxu0 %v803
        %v886 = vpop.f32.mrf.mxu0
        %v887 = vadd.f32 0.0, %v886
        %v888 = vpop.f32.mrf.mxu0
        %889 = vmatprep.mubr.f32.mxu0 0.0
        %890 = vmatmul.mubr.f32.gmra.mxu0 %v713
        %v891 = vpop.f32.mrf.mxu0
        %v892 = vadd.f32 0.0, %v891
        %v893 = vpop.f32.mrf.mxu0
        %894 = vdwg.mxu0
        %v895 = vld [vmem:[%s6] sm:$0xff]
        %v896 = vld [vmem:[%s6 + $0x8] sm:$0xff]
        %v897 = vld [vmem:[%s6 + $0x10] sm:$0xff]
        %v898 = vld [vmem:[%s6 + $0x18] sm:$0xff]
        %v899 = vld [vmem:[%s6 + $0x20] sm:$0xff]
        %v900 = vld [vmem:[%s6 + $0x28] sm:$0xff]
        %v901 = vld [vmem:[%s6 + $0x30] sm:$0xff]
        %v902 = vld [vmem:[%s6 + $0x38] sm:$0xff]
        %903 = vmatprep.subr.mxu0 0.0
        %904 = vmatpush1.msra.mxu0 0.0
        %905 = vmatprep.subr.mxu0 0.0
        %906 = vmatpush1.msra.mxu0 0.0
        %907 = vmatprep.subr.mxu0 0.0
        %908 = vmatpush1.msra.mxu0 0.0
        %909 = vmatprep.subr.mxu0 0.0
        %910 = vmatpush1.msra.mxu0 0.0
        %911 = vmatprep.subr.mxu0 0.0
        %912 = vmatpush1.msra.mxu0 0.0
        %913 = vmatprep.subr.mxu0 0.0
        %914 = vmatpush1.msra.mxu0 0.0
        %915 = vmatprep.subr.mxu0 0.0
        %916 = vmatpush1.msra.mxu0 0.0
        %917 = vmatprep.subr.mxu0 0.0
        %918 = vmatpush1.msra.mxu0 0.0
        %919 = vmatprep.subr.mxu0 0.0
        %920 = vmatpush1.msra.mxu0 %v902
        %921 = vmatprep.subr.mxu0 0.0
        %922 = vmatpush1.msra.mxu0 %v901
        %923 = vmatprep.subr.mxu0 0.0
        %924 = vmatpush1.msra.mxu0 %v900
        %925 = vmatprep.subr.mxu0 0.0
        %926 = vmatpush1.msra.mxu0 %v899
        %927 = vmatprep.subr.mxu0 0.0
        %928 = vmatpush1.msra.mxu0 %v898
        %929 = vmatprep.subr.mxu0 0.0
        %930 = vmatpush1.msra.mxu0 %v897
        %931 = vmatprep.subr.mxu0 0.0
        %932 = vmatpush1.msra.mxu0 %v896
        %933 = vmatprep.subr.mxu0 0.0
        %934 = vmatpush1.msra.mxu0 %v895
        %935 = vmatprep.subr.mxu0 0.0
        %936 = vmatpush2.msra.mxu0 0.0
        %937 = vmatprep.subr.mxu0 0.0
        %938 = vmatpush2.msra.mxu0 0.0
        %939 = vmatprep.subr.mxu0 0.0
        %940 = vmatpush2.msra.mxu0 0.0
        %941 = vmatprep.subr.mxu0 0.0
        %942 = vmatpush2.msra.mxu0 0.0
        %943 = vmatprep.subr.mxu0 0.0
        %944 = vmatpush2.msra.mxu0 0.0
        %945 = vmatprep.subr.mxu0 0.0
        %946 = vmatpush2.msra.mxu0 0.0
        %947 = vmatprep.subr.mxu0 0.0
        %948 = vmatpush2.msra.mxu0 0.0
        %949 = vmatprep.subr.mxu0 0.0
        %950 = vmatpush2.msra.mxu0 0.0
        %951 = vmatprep.subr.mxu0 0.0
        %952 = vmatpush2.msra.mxu0 0.0
        %953 = vmatprep.subr.mxu0 0.0
        %954 = vmatpush2.msra.mxu0 0.0
        %955 = vmatprep.subr.mxu0 0.0
        %956 = vmatpush2.msra.mxu0 0.0
        %957 = vmatprep.subr.mxu0 0.0
        %958 = vmatpush2.msra.mxu0 0.0
        %959 = vmatprep.subr.mxu0 0.0
        %960 = vmatpush2.msra.mxu0 0.0
        %961 = vmatprep.subr.mxu0 0.0
        %962 = vmatpush2.msra.mxu0 0.0
        %963 = vmatprep.subr.mxu0 0.0
        %964 = vmatpush2.msra.mxu0 0.0
        %965 = vmatprep.subr.mxu0 0.0
        %966 = vmatpush2.msra.mxu0 0.0
        %967 = vmatprep.mubr.f32.mxu0 0.0
        %968 = vmatmul.mubr.f32.gmra.mxu0 %v794
        %v969 = vpop.f32.mrf.mxu0
        %v970 = vadd.f32 0.0, %v969
        %v971 = vpop.f32.mrf.mxu0
        %972 = vmatprep.mubr.f32.mxu0 0.0
        %973 = vmatmul.mubr.f32.gmra.mxu0 %v797
        %v974 = vpop.f32.mrf.mxu0
        %v975 = vadd.f32 0.0, %v974
        %v976 = vpop.f32.mrf.mxu0
        %977 = vmatprep.mubr.f32.mxu0 0.0
        %978 = vmatmul.mubr.f32.gmra.mxu0 %v800
        %v979 = vpop.f32.mrf.mxu0
        %v980 = vadd.f32 0.0, %v979
        %v981 = vpop.f32.mrf.mxu0
        %982 = vmatprep.mubr.f32.mxu0 0.0
        %983 = vmatmul.mubr.f32.gmra.mxu0 %v803
        %v984 = vpop.f32.mrf.mxu0
        %v985 = vadd.f32 0.0, %v984
        %v986 = vpop.f32.mrf.mxu0
        %987 = vmatprep.mubr.f32.mxu0 0.0
        %988 = vmatmul.mubr.f32.gmra.mxu0 %v713
        %v989 = vpop.f32.mrf.mxu0
        %v990 = vadd.f32 0.0, %v989
        %v991 = vpop.f32.mrf.mxu0
        %992 = vdwg.mxu0
        %v993 = vld [vmem:[%s15] sm:$0xff]
        %v994 = vld [vmem:[%s15 + $0x8] sm:$0xff]
        %v995 = vld [vmem:[%s15 + $0x10] sm:$0xff]
        %v996 = vld [vmem:[%s15 + $0x18] sm:$0xff]
        %v997 = vld [vmem:[%s15 + $0x20] sm:$0xff]
        %v998 = vld [vmem:[%s15 + $0x28] sm:$0xff]
        %v999 = vld [vmem:[%s15 + $0x30] sm:$0xff]
        %v1000 = vld [vmem:[%s15 + $0x38] sm:$0xff]
        %v1001 = vld [vmem:[%s16] sm:$0xf]
        %v1002 = vmul.f32 %v782, %v892
        %v1004 = vsel %vm643, %v1002, 0
        %1006 = vmatprep.subr.mxu0 0.0
        %1007 = vmatpush1.msra.mxu0 0.0
        %1008 = vmatprep.subr.mxu0 0.0
        %1009 = vmatpush1.msra.mxu0 0.0
        %1010 = vmatprep.subr.mxu0 0.0
        %1011 = vmatpush1.msra.mxu0 0.0
        %1012 = vmatprep.subr.mxu0 0.0
        %1013 = vmatpush1.msra.mxu0 0.0
        %1014 = vmatprep.subr.mxu0 0.0
        %1015 = vmatpush1.msra.mxu0 0.0
        %1016 = vmatprep.subr.mxu0 0.0
        %1017 = vmatpush1.msra.mxu0 0.0
        %1018 = vmatprep.subr.mxu0 0.0
        %1019 = vmatpush1.msra.mxu0 0.0
        %1020 = vmatprep.subr.mxu0 0.0
        %1021 = vmatpush1.msra.mxu0 0.0
        %1022 = vmatprep.subr.mxu0 0.0
        %1023 = vmatpush1.msra.mxu0 %v1000
        %1024 = vmatprep.subr.mxu0 0.0
        %1025 = vmatpush1.msra.mxu0 %v999
        %1026 = vmatprep.subr.mxu0 0.0
        %1027 = vmatpush1.msra.mxu0 %v998
        %1028 = vmatprep.subr.mxu0 0.0
        %1029 = vmatpush1.msra.mxu0 %v997
        %1030 = vmatprep.subr.mxu0 0.0
        %1031 = vmatpush1.msra.mxu0 %v996
        %1032 = vmatprep.subr.mxu0 0.0
        %1033 = vmatpush1.msra.mxu0 %v995
        %1034 = vmatprep.subr.mxu0 0.0
        %1035 = vmatpush1.msra.mxu0 %v994
        %1036 = vmatprep.subr.mxu0 0.0
        %1037 = vmatpush1.msra.mxu0 %v993
        %1038 = vmatprep.subr.mxu0 0.0
        %1039 = vmatpush2.msra.mxu0 0.0
        %1040 = vmatprep.subr.mxu0 0.0
        %1041 = vmatpush2.msra.mxu0 0.0
        %1042 = vmatprep.subr.mxu0 0.0
        %1043 = vmatpush2.msra.mxu0 0.0
        %1044 = vmatprep.subr.mxu0 0.0
        %1045 = vmatpush2.msra.mxu0 0.0
        %1046 = vmatprep.subr.mxu0 0.0
        %1047 = vmatpush2.msra.mxu0 0.0
        %1048 = vmatprep.subr.mxu0 0.0
        %1049 = vmatpush2.msra.mxu0 0.0
        %1050 = vmatprep.subr.mxu0 0.0
        %1051 = vmatpush2.msra.mxu0 0.0
        %1052 = vmatprep.subr.mxu0 0.0
        %1053 = vmatpush2.msra.mxu0 0.0
        %1054 = vmatprep.subr.mxu0 0.0
        %1055 = vmatpush2.msra.mxu0 0.0
        %1056 = vmatprep.subr.mxu0 0.0
        %1057 = vmatpush2.msra.mxu0 0.0
        %1058 = vmatprep.subr.mxu0 0.0
        %1059 = vmatpush2.msra.mxu0 0.0
        %1060 = vmatprep.subr.mxu0 0.0
        %1061 = vmatpush2.msra.mxu0 0.0
        %1062 = vmatprep.subr.mxu0 0.0
        %1063 = vmatpush2.msra.mxu0 0.0
        %1064 = vmatprep.subr.mxu0 0.0
        %1065 = vmatpush2.msra.mxu0 0.0
        %1066 = vmatprep.subr.mxu0 0.0
        %1067 = vmatpush2.msra.mxu0 0.0
        %1068 = vmatprep.subr.mxu0 0.0
        %1069 = vmatpush2.msra.mxu0 0.0
        %1070 = vmatprep.mubr.f32.mxu0 0.0
        %1071 = vmatmul.mubr.f32.gmra.mxu0 %v1004
        %v1072 = vpop.f32.mrf.mxu0
        %v1073 = vadd.f32 0.0, %v1072
        %v1074 = vpop.f32.mrf.mxu0
        %1075 = vdwg.mxu0
        %v1078 = vunpack.c.l.s4 1966171168
        %v1079 = vunpack.c.0.s8 %v1078
        %v1080 = vlaneseq
        %v1081 = vshrl.u32 %v1080, 7
        %v1082 = vsub.s32 %v1079, %v1081
        %v1083 = vrot.slane %v782, %v1082
        %v1084 = vcombine.high %v1083, %v1083
        %v1086 = vunpack.c.l.s4 1966171168
        %v1087 = vunpack.c.0.s8 %v1086
        %v1088 = vlaneseq
        %v1089 = vshrl.u32 %v1088, 7
        %v1090 = vsub.s32 %v1087, %v1089
        %v1091 = vrot.slane %v1083, %v1090
        %v1093 = vunpack.c.l.s4 1966171168
        %v1094 = vunpack.c.0.s8 %v1093
        %v1095 = vlaneseq
        %v1096 = vshrl.u32 %v1095, 7
        %v1097 = vsub.s32 %v1094, %v1096
        %v1098 = vrot.slane %v1084, %v1097
        %v1099 = vlaneseq
        %v1100 = vshrl.u32 %v1099, 7
        %v1101 = vsub.s32 0, %v1100
        %v1102 = vrot.slane %v1091, %v1101
        %v1103 = vlaneseq
        %v1104 = vshrl.u32 %v1103, 7
        %v1105 = vsub.s32 0, %v1104
        %v1106 = vrot.slane %v1098, %v1105
        %v1109 = vmul.f32 %v1102, %v872
        %v1110 = vmul.f32 %v1102, %v877
        %v1111 = vmul.f32 %v1106, %v882
        %v1112 = vmul.f32 %v1106, %v887
        %v1114 = vsel %vm643, %v1109, 0
        %v1117 = vsel %vm643, %v1110, 0
        %v1120 = vsel %vm643, %v1111, 0
        %v1123 = vsel %vm643, %v1112, 0
        %1125 = vmatprep.subr.mxu0 0.0
        %1126 = vmatpush1.msra.mxu0 0.0
        %1127 = vmatprep.subr.mxu0 0.0
        %1128 = vmatpush1.msra.mxu0 0.0
        %1129 = vmatprep.subr.mxu0 0.0
        %1130 = vmatpush1.msra.mxu0 0.0
        %1131 = vmatprep.subr.mxu0 0.0
        %1132 = vmatpush1.msra.mxu0 0.0
        %1133 = vmatprep.subr.mxu0 0.0
        %1134 = vmatpush1.msra.mxu0 0.0
        %1135 = vmatprep.subr.mxu0 0.0
        %1136 = vmatpush1.msra.mxu0 0.0
        %1137 = vmatprep.subr.mxu0 0.0
        %1138 = vmatpush1.msra.mxu0 0.0
        %1139 = vmatprep.subr.mxu0 0.0
        %1140 = vmatpush1.msra.mxu0 0.0
        %1141 = vmatprep.subr.mxu0 0.0
        %1142 = vmatpush1.msra.mxu0 %v1000
        %1143 = vmatprep.subr.mxu0 0.0
        %1144 = vmatpush1.msra.mxu0 %v999
        %1145 = vmatprep.subr.mxu0 0.0
        %1146 = vmatpush1.msra.mxu0 %v998
        %1147 = vmatprep.subr.mxu0 0.0
        %1148 = vmatpush1.msra.mxu0 %v997
        %1149 = vmatprep.subr.mxu0 0.0
        %1150 = vmatpush1.msra.mxu0 %v996
        %1151 = vmatprep.subr.mxu0 0.0
        %1152 = vmatpush1.msra.mxu0 %v995
        %1153 = vmatprep.subr.mxu0 0.0
        %1154 = vmatpush1.msra.mxu0 %v994
        %1155 = vmatprep.subr.mxu0 0.0
        %1156 = vmatpush1.msra.mxu0 %v993
        %1157 = vmatprep.subr.mxu0 0.0
        %1158 = vmatpush2.msra.mxu0 0.0
        %1159 = vmatprep.subr.mxu0 0.0
        %1160 = vmatpush2.msra.mxu0 0.0
        %1161 = vmatprep.subr.mxu0 0.0
        %1162 = vmatpush2.msra.mxu0 0.0
        %1163 = vmatprep.subr.mxu0 0.0
        %1164 = vmatpush2.msra.mxu0 0.0
        %1165 = vmatprep.subr.mxu0 0.0
        %1166 = vmatpush2.msra.mxu0 0.0
        %1167 = vmatprep.subr.mxu0 0.0
        %1168 = vmatpush2.msra.mxu0 0.0
        %1169 = vmatprep.subr.mxu0 0.0
        %1170 = vmatpush2.msra.mxu0 0.0
        %1171 = vmatprep.subr.mxu0 0.0
        %1172 = vmatpush2.msra.mxu0 0.0
        %1173 = vmatprep.subr.mxu0 0.0
        %1174 = vmatpush2.msra.mxu0 0.0
        %1175 = vmatprep.subr.mxu0 0.0
        %1176 = vmatpush2.msra.mxu0 0.0
        %1177 = vmatprep.subr.mxu0 0.0
        %1178 = vmatpush2.msra.mxu0 0.0
        %1179 = vmatprep.subr.mxu0 0.0
        %1180 = vmatpush2.msra.mxu0 0.0
        %1181 = vmatprep.subr.mxu0 0.0
        %1182 = vmatpush2.msra.mxu0 0.0
        %1183 = vmatprep.subr.mxu0 0.0
        %1184 = vmatpush2.msra.mxu0 0.0
        %1185 = vmatprep.subr.mxu0 0.0
        %1186 = vmatpush2.msra.mxu0 0.0
        %1187 = vmatprep.subr.mxu0 0.0
        %1188 = vmatpush2.msra.mxu0 0.0
        %1189 = vmatprep.mubr.f32.mxu0 0.0
        %1190 = vmatmul.mubr.f32.gmra.mxu0 %v1114
        %v1191 = vpop.f32.mrf.mxu0
        %v1192 = vadd.f32 0.0, %v1191
        %v1193 = vpop.f32.mrf.mxu0
        %1194 = vmatprep.mubr.f32.mxu0 0.0
        %1195 = vmatmul.mubr.f32.gmra.mxu0 %v1117
        %v1196 = vpop.f32.mrf.mxu0
        %v1197 = vadd.f32 0.0, %v1196
        %v1198 = vpop.f32.mrf.mxu0
        %1199 = vmatprep.mubr.f32.mxu0 0.0
        %1200 = vmatmul.mubr.f32.gmra.mxu0 %v1120
        %v1201 = vpop.f32.mrf.mxu0
        %v1202 = vadd.f32 0.0, %v1201
        %v1203 = vpop.f32.mrf.mxu0
        %1204 = vmatprep.mubr.f32.mxu0 0.0
        %1205 = vmatmul.mubr.f32.gmra.mxu0 %v1123
        %v1206 = vpop.f32.mrf.mxu0
        %v1207 = vadd.f32 0.0, %v1206
        %v1208 = vpop.f32.mrf.mxu0
        %1209 = vdwg.mxu0
        %vm1210 = vcmask 31744
        %v1211 = vsel %vm1210, %v1192, -inf
        %v1212 = vsel %vm1210, %v1197, -inf
        %v1213 = vmax.f32 %v1211, %v1212
        %v1214 = vrot.slane %v1213, 4
        %v1215 = vmax.f32 %v1213, %v1214
        %v1216 = vrot.slane %v1215, 2
        %v1217 = vmax.f32 %v1215, %v1216
        %v1218 = vrot.slane %v1217, 1
        %v1219 = vmax.f32 %v1217, %v1218
        %v1220 = vsel %vm1210, %v1202, -inf
        %v1221 = vsel %vm1210, %v1207, -inf
        %v1222 = vmax.f32 %v1220, %v1221
        %v1223 = vrot.slane %v1222, 4
        %v1224 = vmax.f32 %v1222, %v1223
        %v1225 = vrot.slane %v1224, 2
        %v1226 = vmax.f32 %v1224, %v1225
        %v1227 = vrot.slane %v1226, 1
        %v1228 = vmax.f32 %v1226, %v1227
        %vm1231 = vcmask 1041409
        %v1232 = vsel %vm1231, %v1228, %v1219
        %v1234 = vmax.f32 %v1073, %v1232
        %v1235 = vsub.f32 %v1073, %v1234
        %v1236 = vmul.f32 %v1235, 1.442695
        %v1237 = vpow.pop %v1236
        %v1240 = vunpack.c.l.s4 1966171168
        %v1241 = vunpack.c.0.s8 %v1240
        %v1242 = vlaneseq
        %v1243 = vshrl.u32 %v1242, 7
        %v1244 = vsub.s32 %v1241, %v1243
        %v1245 = vrot.slane %v1234, %v1244
        %v1246 = vcombine.high %v1245, %v1245
        %v1248 = vunpack.c.l.s4 1966171168
        %v1249 = vunpack.c.0.s8 %v1248
        %v1250 = vlaneseq
        %v1251 = vshrl.u32 %v1250, 7
        %v1252 = vsub.s32 %v1249, %v1251
        %v1253 = vrot.slane %v1245, %v1252
        %v1255 = vunpack.c.l.s4 1966171168
        %v1256 = vunpack.c.0.s8 %v1255
        %v1257 = vlaneseq
        %v1258 = vshrl.u32 %v1257, 7
        %v1259 = vsub.s32 %v1256, %v1258
        %v1260 = vrot.slane %v1246, %v1259
        %v1261 = vlaneseq
        %v1262 = vshrl.u32 %v1261, 7
        %v1263 = vsub.s32 0, %v1262
        %v1264 = vrot.slane %v1253, %v1263
        %v1265 = vlaneseq
        %v1266 = vshrl.u32 %v1265, 7
        %v1267 = vsub.s32 0, %v1266
        %v1268 = vrot.slane %v1260, %v1267
        %v1271 = vsub.f32 %v1192, %v1264
        %v1272 = vsub.f32 %v1197, %v1264
        %v1273 = vsub.f32 %v1202, %v1268
        %v1274 = vsub.f32 %v1207, %v1268
        %v1275 = vmul.f32 %v1271, 1.442695
        %v1276 = vpow.pop %v1275
        %v1277 = vmul.f32 %v1272, 1.442695
        %v1278 = vpow.pop %v1277
        %v1279 = vmul.f32 %v1273, 1.442695
        %v1280 = vpow.pop %v1279
        %v1281 = vmul.f32 %v1274, 1.442695
        %v1282 = vpow.pop %v1281
        %v1283 = vsel %vm1210, %v1276, 0.0
        %v1284 = vsel %vm1210, %v1278, 0.0
        %v1285 = vadd.f32 %v1283, %v1284
        %v1286 = vrot.slane %v1285, 4
        %v1287 = vadd.f32 %v1285, %v1286
        %v1288 = vrot.slane %v1287, 2
        %v1289 = vadd.f32 %v1287, %v1288
        %v1290 = vrot.slane %v1289, 1
        %v1291 = vadd.f32 %v1289, %v1290
        %v1292 = vsel %vm1210, %v1280, 0.0
        %v1293 = vsel %vm1210, %v1282, 0.0
        %v1294 = vadd.f32 %v1292, %v1293
        %v1295 = vrot.slane %v1294, 4
        %v1296 = vadd.f32 %v1294, %v1295
        %v1297 = vrot.slane %v1296, 2
        %v1298 = vadd.f32 %v1296, %v1297
        %v1299 = vrot.slane %v1298, 1
        %v1300 = vadd.f32 %v1298, %v1299
        %v1303 = vsel %vm1231, %v1300, %v1291
        %v1305 = vadd.f32 %v1237, %v1303
        %v1306 = vrcp.pop %v1305
        %v1307 = vmul.f32 %v1237, %v1306
        %v1310 = vunpack.c.l.s4 1966171168
        %v1311 = vunpack.c.0.s8 %v1310
        %v1312 = vlaneseq
        %v1313 = vshrl.u32 %v1312, 7
        %v1314 = vsub.s32 %v1311, %v1313
        %v1315 = vrot.slane %v1306, %v1314
        %v1316 = vcombine.high %v1315, %v1315
        %v1318 = vunpack.c.l.s4 1966171168
        %v1319 = vunpack.c.0.s8 %v1318
        %v1320 = vlaneseq
        %v1321 = vshrl.u32 %v1320, 7
        %v1322 = vsub.s32 %v1319, %v1321
        %v1323 = vrot.slane %v1315, %v1322
        %v1325 = vunpack.c.l.s4 1966171168
        %v1326 = vunpack.c.0.s8 %v1325
        %v1327 = vlaneseq
        %v1328 = vshrl.u32 %v1327, 7
        %v1329 = vsub.s32 %v1326, %v1328
        %v1330 = vrot.slane %v1316, %v1329
        %v1331 = vlaneseq
        %v1332 = vshrl.u32 %v1331, 7
        %v1333 = vsub.s32 0, %v1332
        %v1334 = vrot.slane %v1323, %v1333
        %v1335 = vlaneseq
        %v1336 = vshrl.u32 %v1335, 7
        %v1337 = vsub.s32 0, %v1336
        %v1338 = vrot.slane %v1330, %v1337
        %v1341 = vmul.f32 %v1276, %v1334
        %v1342 = vmul.f32 %v1278, %v1334
        %v1343 = vmul.f32 %v1280, %v1338
        %v1344 = vmul.f32 %v1282, %v1338
        %v1346 = vsel %vm1210, %v1307, 0
        %vm1348 = vcmask 1043456
        %v1350 = vsel %vm1348, %v1001, 0
        %1352 = vmatprep.subr.mxu0 0.0
        %1353 = vmatpush1.msra.mxu0 0.0
        %1354 = vmatprep.subr.mxu0 0.0
        %1355 = vmatpush1.msra.mxu0 0.0
        %1356 = vmatprep.subr.mxu0 0.0
        %1357 = vmatpush1.msra.mxu0 0.0
        %1358 = vmatprep.subr.mxu0 0.0
        %1359 = vmatpush1.msra.mxu0 0.0
        %1360 = vmatprep.subr.mxu0 0.0
        %1361 = vmatpush1.msra.mxu0 0.0
        %1362 = vmatprep.subr.mxu0 0.0
        %1363 = vmatpush1.msra.mxu0 0.0
        %1364 = vmatprep.subr.mxu0 0.0
        %1365 = vmatpush1.msra.mxu0 0.0
        %1366 = vmatprep.subr.mxu0 0.0
        %1367 = vmatpush1.msra.mxu0 0.0
        %1368 = vmatprep.subr.mxu0 0.0
        %1369 = vmatpush1.msra.mxu0 0.0
        %1370 = vmatprep.subr.mxu0 0.0
        %1371 = vmatpush1.msra.mxu0 0.0
        %1372 = vmatprep.subr.mxu0 0.0
        %1373 = vmatpush1.msra.mxu0 0.0
        %1374 = vmatprep.subr.mxu0 0.0
        %1375 = vmatpush1.msra.mxu0 0.0
        %1376 = vmatprep.subr.mxu0 0.0
        %1377 = vmatpush1.msra.mxu0 0.0
        %1378 = vmatprep.subr.mxu0 0.0
        %1379 = vmatpush1.msra.mxu0 0.0
        %1380 = vmatprep.subr.mxu0 0.0
        %1381 = vmatpush1.msra.mxu0 0.0
        %1382 = vmatprep.subr.mxu0 0.0
        %1383 = vmatpush1.msra.mxu0 %v1350
        %1384 = vmatprep.subr.mxu0 0.0
        %1385 = vmatpush2.msra.mxu0 0.0
        %1386 = vmatprep.subr.mxu0 0.0
        %1387 = vmatpush2.msra.mxu0 0.0
        %1388 = vmatprep.subr.mxu0 0.0
        %1389 = vmatpush2.msra.mxu0 0.0
        %1390 = vmatprep.subr.mxu0 0.0
        %1391 = vmatpush2.msra.mxu0 0.0
        %1392 = vmatprep.subr.mxu0 0.0
        %1393 = vmatpush2.msra.mxu0 0.0
        %1394 = vmatprep.subr.mxu0 0.0
        %1395 = vmatpush2.msra.mxu0 0.0
        %1396 = vmatprep.subr.mxu0 0.0
        %1397 = vmatpush2.msra.mxu0 0.0
        %1398 = vmatprep.subr.mxu0 0.0
        %1399 = vmatpush2.msra.mxu0 0.0
        %1400 = vmatprep.subr.mxu0 0.0
        %1401 = vmatpush2.msra.mxu0 0.0
        %1402 = vmatprep.subr.mxu0 0.0
        %1403 = vmatpush2.msra.mxu0 0.0
        %1404 = vmatprep.subr.mxu0 0.0
        %1405 = vmatpush2.msra.mxu0 0.0
        %1406 = vmatprep.subr.mxu0 0.0
        %1407 = vmatpush2.msra.mxu0 0.0
        %1408 = vmatprep.subr.mxu0 0.0
        %1409 = vmatpush2.msra.mxu0 0.0
        %1410 = vmatprep.subr.mxu0 0.0
        %1411 = vmatpush2.msra.mxu0 0.0
        %1412 = vmatprep.subr.mxu0 0.0
        %1413 = vmatpush2.msra.mxu0 0.0
        %1414 = vmatprep.subr.mxu0 0.0
        %1415 = vmatpush2.msra.mxu0 0.0
        %1416 = vmatprep.mubr.f32.mxu0 0.0
        %1417 = vmatmul.mubr.f32.gmra.mxu0 %v1346
        %v1418 = vpop.f32.mrf.mxu0
        %v1419 = vadd.f32 0.0, %v1418
        %v1420 = vpop.f32.mrf.mxu0
        %1421 = vdwg.mxu0
        %v1423 = vsel %vm1210, %v1341, 0
        %v1426 = vsel %vm1210, %v1342, 0
        %v1429 = vsel %vm1210, %v1343, 0
        %v1432 = vsel %vm1210, %v1344, 0
        %1434 = vmatprep.subr.mxu0 0.0
        %1435 = vmatpush1.msra.mxu0 0.0
        %1436 = vmatprep.subr.mxu0 0.0
        %1437 = vmatpush1.msra.mxu0 0.0
        %1438 = vmatprep.subr.mxu0 0.0
        %1439 = vmatpush1.msra.mxu0 0.0
        %1440 = vmatprep.subr.mxu0 0.0
        %1441 = vmatpush1.msra.mxu0 0.0
        %1442 = vmatprep.subr.mxu0 0.0
        %1443 = vmatpush1.msra.mxu0 0.0
        %1444 = vmatprep.subr.mxu0 0.0
        %1445 = vmatpush1.msra.mxu0 0.0
        %1446 = vmatprep.subr.mxu0 0.0
        %1447 = vmatpush1.msra.mxu0 0.0
        %1448 = vmatprep.subr.mxu0 0.0
        %1449 = vmatpush1.msra.mxu0 0.0
        %1450 = vmatprep.subr.mxu0 0.0
        %1451 = vmatpush1.msra.mxu0 0.0
        %1452 = vmatprep.subr.mxu0 0.0
        %1453 = vmatpush1.msra.mxu0 0.0
        %1454 = vmatprep.subr.mxu0 0.0
        %1455 = vmatpush1.msra.mxu0 0.0
        %1456 = vmatprep.subr.mxu0 0.0
        %1457 = vmatpush1.msra.mxu0 0.0
        %1458 = vmatprep.subr.mxu0 0.0
        %1459 = vmatpush1.msra.mxu0 0.0
        %1460 = vmatprep.subr.mxu0 0.0
        %1461 = vmatpush1.msra.mxu0 0.0
        %1462 = vmatprep.subr.mxu0 0.0
        %1463 = vmatpush1.msra.mxu0 0.0
        %1464 = vmatprep.subr.mxu0 0.0
        %1465 = vmatpush1.msra.mxu0 %v1350
        %1466 = vmatprep.subr.mxu0 0.0
        %1467 = vmatpush2.msra.mxu0 0.0
        %1468 = vmatprep.subr.mxu0 0.0
        %1469 = vmatpush2.msra.mxu0 0.0
        %1470 = vmatprep.subr.mxu0 0.0
        %1471 = vmatpush2.msra.mxu0 0.0
        %1472 = vmatprep.subr.mxu0 0.0
        %1473 = vmatpush2.msra.mxu0 0.0
        %1474 = vmatprep.subr.mxu0 0.0
        %1475 = vmatpush2.msra.mxu0 0.0
        %1476 = vmatprep.subr.mxu0 0.0
        %1477 = vmatpush2.msra.mxu0 0.0
        %1478 = vmatprep.subr.mxu0 0.0
        %1479 = vmatpush2.msra.mxu0 0.0
        %1480 = vmatprep.subr.mxu0 0.0
        %1481 = vmatpush2.msra.mxu0 0.0
        %1482 = vmatprep.subr.mxu0 0.0
        %1483 = vmatpush2.msra.mxu0 0.0
        %1484 = vmatprep.subr.mxu0 0.0
        %1485 = vmatpush2.msra.mxu0 0.0
        %1486 = vmatprep.subr.mxu0 0.0
        %1487 = vmatpush2.msra.mxu0 0.0
        %1488 = vmatprep.subr.mxu0 0.0
        %1489 = vmatpush2.msra.mxu0 0.0
        %1490 = vmatprep.subr.mxu0 0.0
        %1491 = vmatpush2.msra.mxu0 0.0
        %1492 = vmatprep.subr.mxu0 0.0
        %1493 = vmatpush2.msra.mxu0 0.0
        %1494 = vmatprep.subr.mxu0 0.0
        %1495 = vmatpush2.msra.mxu0 0.0
        %1496 = vmatprep.subr.mxu0 0.0
        %1497 = vmatpush2.msra.mxu0 0.0
        %1498 = vmatprep.mubr.f32.mxu0 0.0
        %1499 = vmatmul.mubr.f32.gmra.mxu0 %v1423
        %v1500 = vpop.f32.mrf.mxu0
        %v1501 = vadd.f32 0.0, %v1500
        %v1502 = vpop.f32.mrf.mxu0
        %1503 = vmatprep.mubr.f32.mxu0 0.0
        %1504 = vmatmul.mubr.f32.gmra.mxu0 %v1426
        %v1505 = vpop.f32.mrf.mxu0
        %v1506 = vadd.f32 0.0, %v1505
        %v1507 = vpop.f32.mrf.mxu0
        %1508 = vmatprep.mubr.f32.mxu0 0.0
        %1509 = vmatmul.mubr.f32.gmra.mxu0 %v1429
        %v1510 = vpop.f32.mrf.mxu0
        %v1511 = vadd.f32 0.0, %v1510
        %v1512 = vpop.f32.mrf.mxu0
        %1513 = vmatprep.mubr.f32.mxu0 0.0
        %1514 = vmatmul.mubr.f32.gmra.mxu0 %v1432
        %v1515 = vpop.f32.mrf.mxu0
        %v1516 = vadd.f32 0.0, %v1515
        %v1517 = vpop.f32.mrf.mxu0
        %1518 = vdwg.mxu0
        %v1519 = vmul.f32 %v1419, %v990
        %v1520 = vmul.f32 %v1501, %v970
        %v1521 = vmul.f32 %v1506, %v975
        %v1522 = vmul.f32 %v1511, %v980
        %v1523 = vmul.f32 %v1516, %v985
        %v1524 = vsel %vm643, %v1520, 0.0
        %v1525 = vsel %vm643, %v1521, 0.0
        %v1526 = vadd.f32 %v1524, %v1525
        %v1527 = vrot.slane %v1526, 4
        %v1528 = vadd.f32 %v1526, %v1527
        %v1529 = vrot.slane %v1528, 2
        %v1530 = vadd.f32 %v1528, %v1529
        %v1531 = vrot.slane %v1530, 1
        %v1532 = vadd.f32 %v1530, %v1531
        %v1533 = vsel %vm643, %v1522, 0.0
        %v1534 = vsel %vm643, %v1523, 0.0
        %v1535 = vadd.f32 %v1533, %v1534
        %v1536 = vrot.slane %v1535, 4
        %v1537 = vadd.f32 %v1535, %v1536
        %v1538 = vrot.slane %v1537, 2
        %v1539 = vadd.f32 %v1537, %v1538
        %v1540 = vrot.slane %v1539, 1
        %v1541 = vadd.f32 %v1539, %v1540
        %v1544 = vsel %vm1231, %v1541, %v1532
        %v1546 = vadd.f32 %v1519, %v1544
        %v1547 = vld [vmem:[%s7] sm:$0xff]
        %v1548 = vld [vmem:[%s7 + $0x8] sm:$0xff]
        %v1549 = vld [vmem:[%s7 + $0x10] sm:$0xff]
        %v1550 = vld [vmem:[%s7 + $0x18] sm:$0xff]
        %v1551 = vld [vmem:[%s7 + $0x20] sm:$0xff]
        %v1552 = vld [vmem:[%s7 + $0x28] sm:$0xff]
        %v1553 = vld [vmem:[%s7 + $0x30] sm:$0xff]
        %v1554 = vld [vmem:[%s7 + $0x38] sm:$0xff]
        %v1555 = vld [vmem:[#allocation7] sm:$0x1]
        %v1557 = vlaneseq
        %v1558 = vshrl.u32 %v1557, 7
        %v1559 = vsub.s32 0, %v1558
        %v1560 = vrot.slane %v1555, %v1559
        %v1563 = vsel %vm643, %v1546, 0
        %1565 = vmatprep.subr.mxu0 0.0
        %1566 = vmatpush1.msra.mxu0 0.0
        %1567 = vmatprep.subr.mxu0 0.0
        %1568 = vmatpush1.msra.mxu0 0.0
        %1569 = vmatprep.subr.mxu0 0.0
        %1570 = vmatpush1.msra.mxu0 0.0
        %1571 = vmatprep.subr.mxu0 0.0
        %1572 = vmatpush1.msra.mxu0 0.0
        %1573 = vmatprep.subr.mxu0 0.0
        %1574 = vmatpush1.msra.mxu0 0.0
        %1575 = vmatprep.subr.mxu0 0.0
        %1576 = vmatpush1.msra.mxu0 0.0
        %1577 = vmatprep.subr.mxu0 0.0
        %1578 = vmatpush1.msra.mxu0 0.0
        %1579 = vmatprep.subr.mxu0 0.0
        %1580 = vmatpush1.msra.mxu0 0.0
        %1581 = vmatprep.subr.mxu0 0.0
        %1582 = vmatpush1.msra.mxu0 %v1554
        %1583 = vmatprep.subr.mxu0 0.0
        %1584 = vmatpush1.msra.mxu0 %v1553
        %1585 = vmatprep.subr.mxu0 0.0
        %1586 = vmatpush1.msra.mxu0 %v1552
        %1587 = vmatprep.subr.mxu0 0.0
        %1588 = vmatpush1.msra.mxu0 %v1551
        %1589 = vmatprep.subr.mxu0 0.0
        %1590 = vmatpush1.msra.mxu0 %v1550
        %1591 = vmatprep.subr.mxu0 0.0
        %1592 = vmatpush1.msra.mxu0 %v1549
        %1593 = vmatprep.subr.mxu0 0.0
        %1594 = vmatpush1.msra.mxu0 %v1548
        %1595 = vmatprep.subr.mxu0 0.0
        %1596 = vmatpush1.msra.mxu0 %v1547
        %1597 = vmatprep.subr.mxu0 0.0
        %1598 = vmatpush2.msra.mxu0 0.0
        %1599 = vmatprep.subr.mxu0 0.0
        %1600 = vmatpush2.msra.mxu0 0.0
        %1601 = vmatprep.subr.mxu0 0.0
        %1602 = vmatpush2.msra.mxu0 0.0
        %1603 = vmatprep.subr.mxu0 0.0
        %1604 = vmatpush2.msra.mxu0 0.0
        %1605 = vmatprep.subr.mxu0 0.0
        %1606 = vmatpush2.msra.mxu0 0.0
        %1607 = vmatprep.subr.mxu0 0.0
        %1608 = vmatpush2.msra.mxu0 0.0
        %1609 = vmatprep.subr.mxu0 0.0
        %1610 = vmatpush2.msra.mxu0 0.0
        %1611 = vmatprep.subr.mxu0 0.0
        %1612 = vmatpush2.msra.mxu0 0.0
        %1613 = vmatprep.subr.mxu0 0.0
        %1614 = vmatpush2.msra.mxu0 0.0
        %1615 = vmatprep.subr.mxu0 0.0
        %1616 = vmatpush2.msra.mxu0 0.0
        %1617 = vmatprep.subr.mxu0 0.0
        %1618 = vmatpush2.msra.mxu0 0.0
        %1619 = vmatprep.subr.mxu0 0.0
        %1620 = vmatpush2.msra.mxu0 0.0
        %1621 = vmatprep.subr.mxu0 0.0
        %1622 = vmatpush2.msra.mxu0 0.0
        %1623 = vmatprep.subr.mxu0 0.0
        %1624 = vmatpush2.msra.mxu0 0.0
        %1625 = vmatprep.subr.mxu0 0.0
        %1626 = vmatpush2.msra.mxu0 0.0
        %1627 = vmatprep.subr.mxu0 0.0
        %1628 = vmatpush2.msra.mxu0 0.0
        %1629 = vmatprep.mubr.f32.mxu0 0.0
        %1630 = vmatmul.mubr.f32.gmra.mxu0 %v1563
        %v1631 = vpop.f32.mrf.mxu0
        %v1632 = vadd.f32 %v1560, %v1631
        %v1633 = vpop.f32.mrf.mxu0
        %1634 = vdwg.mxu0
        %v1635 = vadd.f32 %v607, %v1632
        %v1636 = vld [vmem:[%s9] sm:$0x1]
        %v1637 = vld [vmem:[%s10] sm:$0x1]
        %v1638 = vsel %vm614, %v1635, 0.0
        %1639 = vadd.xlane.f32.xlu0 %v1638
        %v1640 = vpop.xlane.xlu0 %1639
        %v1641 = vmul.f32 %v1640, %v618
        %v1642 = vsub.f32 %v1635, %v1641
        %v1643 = vmul.f32 %v1642, %v1642
        %v1644 = vsel %vm614, %v1643, 0.0
        %1645 = vadd.xlane.f32.xlu0 %v1644
        %v1646 = vpop.xlane.xlu0 %1645
        %v1647 = vmul.f32 %v1646, %v618
        %v1648 = vadd.f32 %v1647, 1e-05
        %v1649 = vrsqrt.pop %v1648
        %v1650 = vmul.f32 %v1642, %v1649
        %v1652 = vlaneseq
        %v1653 = vshrl.u32 %v1652, 7
        %v1654 = vsub.s32 0, %v1653
        %v1655 = vrot.slane %v1636, %v1654
        %v1657 = vmul.f32 %v1650, %v1655
        %v1659 = vlaneseq
        %v1660 = vshrl.u32 %v1659, 7
        %v1661 = vsub.s32 0, %v1660
        %v1662 = vrot.slane %v1637, %v1661
        %v1664 = vadd.f32 %v1657, %v1662
        %v1665 = vld [vmem:[%s11] sm:$0xff]
        %v1666 = vld [vmem:[%s11 + $0x8] sm:$0xff]
        %v1667 = vld [vmem:[%s11 + $0x10] sm:$0xff]
        %v1668 = vld [vmem:[%s11 + $0x18] sm:$0xff]
        %v1669 = vld [vmem:[%s11 + $0x20] sm:$0xff]
        %v1670 = vld [vmem:[%s11 + $0x28] sm:$0xff]
        %v1671 = vld [vmem:[%s11 + $0x30] sm:$0xff]
        %v1672 = vld [vmem:[%s11 + $0x38] sm:$0xff]
        %v1673 = vld [vmem:[%s11 + $0x40] sm:$0xff]
        %v1674 = vld [vmem:[%s11 + $0x48] sm:$0xff]
        %v1675 = vld [vmem:[%s11 + $0x50] sm:$0xff]
        %v1676 = vld [vmem:[%s11 + $0x58] sm:$0xff]
        %v1677 = vld [vmem:[%s11 + $0x60] sm:$0xff]
        %v1678 = vld [vmem:[%s11 + $0x68] sm:$0xff]
        %v1679 = vld [vmem:[%s11 + $0x70] sm:$0xff]
        %v1680 = vld [vmem:[%s11 + $0x78] sm:$0xff]
        %v1681 = vld [vmem:[%s12] sm:$0x3]
        %v1683 = vlaneseq
        %v1684 = vshrl.u32 %v1683, 7
        %v1685 = vsub.s32 0, %v1684
        %v1686 = vrot.slane %v1681, %v1685
        %v1687 = vlaneseq
        %v1688 = vshrl.u32 %v1687, 7
        %v1689 = vsub.s32 1, %v1688
        %v1690 = vrot.slane %v1681, %v1689
        %v1694 = vsel %vm643, %v1664, 0
        %1696 = vmatprep.subr.mxu0 0.0
        %1697 = vmatpush1.msra.mxu0 0.0
        %1698 = vmatprep.subr.mxu0 0.0
        %1699 = vmatpush1.msra.mxu0 0.0
        %1700 = vmatprep.subr.mxu0 0.0
        %1701 = vmatpush1.msra.mxu0 0.0
        %1702 = vmatprep.subr.mxu0 0.0
        %1703 = vmatpush1.msra.mxu0 0.0
        %1704 = vmatprep.subr.mxu0 0.0
        %1705 = vmatpush1.msra.mxu0 0.0
        %1706 = vmatprep.subr.mxu0 0.0
        %1707 = vmatpush1.msra.mxu0 0.0
        %1708 = vmatprep.subr.mxu0 0.0
        %1709 = vmatpush1.msra.mxu0 0.0
        %1710 = vmatprep.subr.mxu0 0.0
        %1711 = vmatpush1.msra.mxu0 0.0
        %1712 = vmatprep.subr.mxu0 %v1680
        %1713 = vmatpush1.msra.mxu0 %v1679
        %1714 = vmatprep.subr.mxu0 %v1678
        %1715 = vmatpush1.msra.mxu0 %v1677
        %1716 = vmatprep.subr.mxu0 %v1676
        %1717 = vmatpush1.msra.mxu0 %v1675
        %1718 = vmatprep.subr.mxu0 %v1674
        %1719 = vmatpush1.msra.mxu0 %v1673
        %1720 = vmatprep.subr.mxu0 %v1672
        %1721 = vmatpush1.msra.mxu0 %v1671
        %1722 = vmatprep.subr.mxu0 %v1670
        %1723 = vmatpush1.msra.mxu0 %v1669
        %1724 = vmatprep.subr.mxu0 %v1668
        %1725 = vmatpush1.msra.mxu0 %v1667
        %1726 = vmatprep.subr.mxu0 %v1666
        %1727 = vmatpush1.msra.mxu0 %v1665
        %1728 = vmatprep.subr.mxu0 0.0
        %1729 = vmatpush2.msra.mxu0 0.0
        %1730 = vmatprep.subr.mxu0 0.0
        %1731 = vmatpush2.msra.mxu0 0.0
        %1732 = vmatprep.subr.mxu0 0.0
        %1733 = vmatpush2.msra.mxu0 0.0
        %1734 = vmatprep.subr.mxu0 0.0
        %1735 = vmatpush2.msra.mxu0 0.0
        %1736 = vmatprep.subr.mxu0 0.0
        %1737 = vmatpush2.msra.mxu0 0.0
        %1738 = vmatprep.subr.mxu0 0.0
        %1739 = vmatpush2.msra.mxu0 0.0
        %1740 = vmatprep.subr.mxu0 0.0
        %1741 = vmatpush2.msra.mxu0 0.0
        %1742 = vmatprep.subr.mxu0 0.0
        %1743 = vmatpush2.msra.mxu0 0.0
        %1744 = vmatprep.subr.mxu0 0.0
        %1745 = vmatpush2.msra.mxu0 0.0
        %1746 = vmatprep.subr.mxu0 0.0
        %1747 = vmatpush2.msra.mxu0 0.0
        %1748 = vmatprep.subr.mxu0 0.0
        %1749 = vmatpush2.msra.mxu0 0.0
        %1750 = vmatprep.subr.mxu0 0.0
        %1751 = vmatpush2.msra.mxu0 0.0
        %1752 = vmatprep.subr.mxu0 0.0
        %1753 = vmatpush2.msra.mxu0 0.0
        %1754 = vmatprep.subr.mxu0 0.0
        %1755 = vmatpush2.msra.mxu0 0.0
        %1756 = vmatprep.subr.mxu0 0.0
        %1757 = vmatpush2.msra.mxu0 0.0
        %1758 = vmatprep.subr.mxu0 0.0
        %1759 = vmatpush2.msra.mxu0 0.0
        %1760 = vmatprep.mubr.f32.mxu0 0.0
        %1761 = vmatmul.mubr.f32.gmra.mxu0 %v1694
        %v1762 = vpop.f32.mrf.mxu0
        %v1763 = vadd.f32 %v1686, %v1762
        %v1764 = vpop.f32.mrf.mxu0
        %v1765 = vadd.f32 %v1690, %v1764
        %1766 = vdwg.mxu0
        %v1767 = vmul.f32 %v1763, 0.5
        %v1768 = vmul.f32 %v1765, 0.5
        %v1769 = vmul.f32 %v1763, 0.70710677
        %v1770 = vmul.f32 %v1765, 0.70710677
        %v1771 = verf.f32.pop %v1769
        %v1772 = verf.f32.pop %v1770
        %v1773 = vadd.f32 %v1771, 1.0
        %v1774 = vadd.f32 %v1772, 1.0
        %v1775 = vmul.f32 %v1767, %v1773
        %v1776 = vmul.f32 %v1768, %v1774
        %v1777 = vld [vmem:[%s13] sm:$0xff]
        %v1778 = vld [vmem:[%s13 + $0x8] sm:$0xff]
        %v1779 = vld [vmem:[%s13 + $0x10] sm:$0xff]
        %v1780 = vld [vmem:[%s13 + $0x18] sm:$0xff]
        %v1781 = vld [vmem:[%s13 + $0x20] sm:$0xff]
        %v1782 = vld [vmem:[%s13 + $0x28] sm:$0xff]
        %v1783 = vld [vmem:[%s13 + $0x30] sm:$0xff]
        %v1784 = vld [vmem:[%s13 + $0x38] sm:$0xff]
        %v1785 = vld [vmem:[%s13 + $0x40] sm:$0xff]
        %v1786 = vld [vmem:[%s13 + $0x48] sm:$0xff]
        %v1787 = vld [vmem:[%s13 + $0x50] sm:$0xff]
        %v1788 = vld [vmem:[%s13 + $0x58] sm:$0xff]
        %v1789 = vld [vmem:[%s13 + $0x60] sm:$0xff]
        %v1790 = vld [vmem:[%s13 + $0x68] sm:$0xff]
        %v1791 = vld [vmem:[%s13 + $0x70] sm:$0xff]
        %v1792 = vld [vmem:[%s13 + $0x78] sm:$0xff]
        %v1793 = vld [vmem:[%s13 + $0x80] sm:$0xff]
        %v1794 = vld [vmem:[%s13 + $0x88] sm:$0xff]
        %v1795 = vld [vmem:[%s13 + $0x90] sm:$0xff]
        %v1796 = vld [vmem:[%s13 + $0x98] sm:$0xff]
        %v1797 = vld [vmem:[%s13 + $0xa0] sm:$0xff]
        %v1798 = vld [vmem:[%s13 + $0xa8] sm:$0xff]
        %v1799 = vld [vmem:[%s13 + $0xb0] sm:$0xff]
        %v1800 = vld [vmem:[%s13 + $0xb8] sm:$0xff]
        %v1801 = vld [vmem:[%s13 + $0xc0] sm:$0xff]
        %v1802 = vld [vmem:[%s13 + $0xc8] sm:$0xff]
        %v1803 = vld [vmem:[%s13 + $0xd0] sm:$0xff]
        %v1804 = vld [vmem:[%s13 + $0xd8] sm:$0xff]
        %v1805 = vld [vmem:[%s13 + $0xe0] sm:$0xff]
        %v1806 = vld [vmem:[%s13 + $0xe8] sm:$0xff]
        %v1807 = vld [vmem:[%s13 + $0xf0] sm:$0xff]
        %v1808 = vld [vmem:[%s13 + $0xf8] sm:$0xff]
        %v1809 = vld [vmem:[%s14] sm:$0x1]
        %v1811 = vlaneseq
        %v1812 = vshrl.u32 %v1811, 7
        %v1813 = vsub.s32 0, %v1812
        %v1814 = vrot.slane %v1809, %v1813
        %1816 = vmatprep.subr.mxu0 0.0
        %1817 = vmatpush1.msra.mxu0 %v1792
        %1818 = vmatprep.subr.mxu0 0.0
        %1819 = vmatpush1.msra.mxu0 %v1791
        %1820 = vmatprep.subr.mxu0 0.0
        %1821 = vmatpush1.msra.mxu0 %v1790
        %1822 = vmatprep.subr.mxu0 0.0
        %1823 = vmatpush1.msra.mxu0 %v1789
        %1824 = vmatprep.subr.mxu0 0.0
        %1825 = vmatpush1.msra.mxu0 %v1788
        %1826 = vmatprep.subr.mxu0 0.0
        %1827 = vmatpush1.msra.mxu0 %v1787
        %1828 = vmatprep.subr.mxu0 0.0
        %1829 = vmatpush1.msra.mxu0 %v1786
        %1830 = vmatprep.subr.mxu0 0.0
        %1831 = vmatpush1.msra.mxu0 %v1785
        %1832 = vmatprep.subr.mxu0 0.0
        %1833 = vmatpush1.msra.mxu0 %v1784
        %1834 = vmatprep.subr.mxu0 0.0
        %1835 = vmatpush1.msra.mxu0 %v1783
        %1836 = vmatprep.subr.mxu0 0.0
        %1837 = vmatpush1.msra.mxu0 %v1782
        %1838 = vmatprep.subr.mxu0 0.0
        %1839 = vmatpush1.msra.mxu0 %v1781
        %1840 = vmatprep.subr.mxu0 0.0
        %1841 = vmatpush1.msra.mxu0 %v1780
        %1842 = vmatprep.subr.mxu0 0.0
        %1843 = vmatpush1.msra.mxu0 %v1779
        %1844 = vmatprep.subr.mxu0 0.0
        %1845 = vmatpush1.msra.mxu0 %v1778
        %1846 = vmatprep.subr.mxu0 0.0
        %1847 = vmatpush1.msra.mxu0 %v1777
        %1848 = vmatprep.subr.mxu0 0.0
        %1849 = vmatpush2.msra.mxu0 %v1808
        %1850 = vmatprep.subr.mxu0 0.0
        %1851 = vmatpush2.msra.mxu0 %v1807
        %1852 = vmatprep.subr.mxu0 0.0
        %1853 = vmatpush2.msra.mxu0 %v1806
        %1854 = vmatprep.subr.mxu0 0.0
        %1855 = vmatpush2.msra.mxu0 %v1805
        %1856 = vmatprep.subr.mxu0 0.0
        %1857 = vmatpush2.msra.mxu0 %v1804
        %1858 = vmatprep.subr.mxu0 0.0
        %1859 = vmatpush2.msra.mxu0 %v1803
        %1860 = vmatprep.subr.mxu0 0.0
        %1861 = vmatpush2.msra.mxu0 %v1802
        %1862 = vmatprep.subr.mxu0 0.0
        %1863 = vmatpush2.msra.mxu0 %v1801
        %1864 = vmatprep.subr.mxu0 0.0
        %1865 = vmatpush2.msra.mxu0 %v1800
        %1866 = vmatprep.subr.mxu0 0.0
        %1867 = vmatpush2.msra.mxu0 %v1799
        %1868 = vmatprep.subr.mxu0 0.0
        %1869 = vmatpush2.msra.mxu0 %v1798
        %1870 = vmatprep.subr.mxu0 0.0
        %1871 = vmatpush2.msra.mxu0 %v1797
        %1872 = vmatprep.subr.mxu0 0.0
        %1873 = vmatpush2.msra.mxu0 %v1796
        %1874 = vmatprep.subr.mxu0 0.0
        %1875 = vmatpush2.msra.mxu0 %v1795
        %1876 = vmatprep.subr.mxu0 0.0
        %1877 = vmatpush2.msra.mxu0 %v1794
        %1878 = vmatprep.subr.mxu0 0.0
        %1879 = vmatpush2.msra.mxu0 %v1793
        %1880 = vmatprep.mubr.f32.mxu0 %v1776
        %1881 = vmatmul.mubr.f32.gmra.mxu0 %v1775
        %v1882 = vpop.f32.mrf.mxu0
        %v1883 = vadd.f32 %v1814, %v1882
        %v1884 = vpop.f32.mrf.mxu0
        %1885 = vdwg.mxu0
        %v1886 = vadd.f32 %v1635, %v1883
        %1887 = vst.msk [vmem:[%s595] sm:$0x3] %vm614, %v1886
        %s1888 = sand.u32 %s408, 1
        %s1889 = scalar_lea.sflag [#allocation4], %s1888
        %s1890 = sand.u32 %s408, 1
        %s1891 = smul.addr %s1890, 2
        %s1892 = scalar_lea.vmem [#allocation8], %s1891
        // Predicated region
        $region101: #{tpu_custom_call.1} parent=87 // pred_check
          %p1893 = pneg %p418
        $region102: #{tpu_custom_call.1} parent=87 // pred_check_branch
          %1895 = sbr.rel (%p1893) target = $region104
        $region103: #{tpu_custom_call.1} parent=87 // pred_region
          %s1897 = ssub.s32 32, 32
          %1898 = vsyncadd %s1889, %s1897
          %s1899 = smul.addr %s33, 32
          %s1900 = scalar_lea.hbm %s17, %s1899
          %s1902 = sshll.u32 %s1892, 4
          %s1903 = int_to_ptr.vmem [resolvable:$true] %s1902
          %1905 = dma.vmem_to_hbm [thread:$0]  %s1903, 32, %s1900, %s1889
        $region104: #{tpu_custom_call.1} parent=87 // pred_fallthru
          _
      $region88: #{tpu_custom_call.1} parent=5 // pred_fallthru
        _
      %p1906 = scmp.le.s32.totalorder 2, %s28
      // Predicated region
      $region105: #{tpu_custom_call.1} parent=5 // pred_check
        %p1907 = pneg %p1906
      $region106: #{tpu_custom_call.1} parent=5 // pred_check_branch
        %1909 = sbr.rel (%p1907) target = $region108
      $region107: #{tpu_custom_call.1} parent=5 // pred_region
        %s1910 = ssub.s32 %s28, 2
        // Predicated region
        $region109: #{tpu_custom_call.1} parent=107 // pred_check
          %p1911 = pneg %p424
        $region110: #{tpu_custom_call.1} parent=107 // pred_check_branch
          %1913 = sbr.rel (%p1911) target = $region112
        $region111: #{tpu_custom_call.1} parent=107 // pred_region
          %s1914 = sand.u32 %s409, 1
          %s1915 = scalar_lea.sflag [#allocation4], %s1914
          %s1916 = sand.u32 %s409, 1
          %s1917 = smul.addr %s1916, 2
          %s1918 = scalar_lea.vmem [#allocation8], %s1917
          %1919 = dma.done %s1915, 32
        $region112: #{tpu_custom_call.1} parent=107 // pred_fallthru
          _
      $region108: #{tpu_custom_call.1} parent=5 // pred_fallthru
        _
    $region6: #{tpu_custom_call.1} parent=1 // loop_footer
      %s32 = sadd.s32 1, %s28
    $region7: #{tpu_custom_call.1} parent=1 // loop_footer_branch
      %27 = sbr.rel target = $region3
    $region8: #{tpu_custom_call.1} parent=1 // loop_exit
      _
    %1920 = vsyncpa [#allocation3], 1
    %s1921 = scalar_lea.sflag [#allocation3], 1
    %1922 = vsyncpa %s1921, 1
    %1923 = vsyncpa [#allocation6], 1
    %1924 = vsyncpa [#allocation4], 1
    %s1925 = scalar_lea.sflag [#allocation4], 1
    %1926 = vsyncpa %s1925, 1

</llo_original>
